<compile_context>
chip_gen: v7x
topology: tpu7x:2x2x1
jax: 0.10.0
libtpu: 0.0.40
codegen_flags: <defaults>
</compile_context>

<pallas_src>
import functools

import numpy as np
import jax
import jax.numpy as jnp
from jax.experimental import pallas as pl
from jax.experimental.pallas import tpu as pltpu


def build_gcn_norm(edge_index, num_nodes):
    """Dense symmetric-normalized adjacency used by PyG GCNConv (with self loops).

    Guards against pre-existing self loops (do not double count) and isolated
    nodes (deg == 0), matching PyG's gcn_norm behaviour.
    """
    a = np.zeros((num_nodes, num_nodes), np.float32)
    src, dst = edge_index
    a[dst, src] = 1.0
    np.fill_diagonal(a, np.maximum(np.diag(a), 1.0))     # add self loops only where missing
    deg = a.sum(axis=1)
    dinv = np.where(deg > 0, 1.0 / np.sqrt(np.maximum(deg, 1e-12)), 0.0).astype(np.float32)
    return (dinv[:, None] * a) * dinv[None, :]


def grn_decoder_kernel(x0_ref, h0_ref, wg_ref, bg_ref,
                       wir_ref, wiz_ref, win_ref,
                       whr_ref, whz_ref, whn_ref,
                       br_ref, bz_ref, bin_ref, bhn_ref,
                       wfc_ref, bfc_ref, out_ref, *, T):
    """Single-invocation kernel: full forecast recurrence, one HBM writeback."""
    x = x0_ref[...]                       # (B, N)   autoregressive input carry
    h = h0_ref[...]                       # (B, H)   GRU hidden carry

    wg = wg_ref[...]                      # (N, N*Hg)  fused GCN weight
    bg = bg_ref[...]                      # (1, N*Hg)
    wir, wiz, win = wir_ref[...], wiz_ref[...], win_ref[...]   # (N*Hg, H)
    whr, whz, whn = whr_ref[...], whz_ref[...], whn_ref[...]   # (H, H)
    b_r, b_z = br_ref[...], bz_ref[...]   # (1, H)   b_ih + b_hh pre-summed (r, z gates)
    b_in, b_hn = bin_ref[...], bhn_ref[...]
    wfc, bfc = wfc_ref[...], bfc_ref[...]  # (H, N), (1, N)

    # T (forecast_steps) is small & static -> unrolled loop with static output indices,
    # giving the scheduler full cross-step visibility and a single final HBM writeback.
    for t in range(T):
        # --- fused GCN layer: relu(x @ W_fused + b_fused)  ==  flat (B, N*Hg) ---
        flat = jnp.maximum(
            jnp.dot(x, wg, preferred_element_type=jnp.float32) + bg, 0.0)

        # --- GRU cell, per-gate weights (PyTorch gate order r, z, n) ---
        r = jax.nn.sigmoid(jnp.dot(flat, wir, preferred_element_type=jnp.float32)
                           + jnp.dot(h, whr, preferred_element_type=jnp.float32) + b_r)
        z = jax.nn.sigmoid(jnp.dot(flat, wiz, preferred_element_type=jnp.float32)
                           + jnp.dot(h, whz, preferred_element_type=jnp.float32) + b_z)
        n = jnp.tanh(jnp.dot(flat, win, preferred_element_type=jnp.float32) + b_in
                     + r * (jnp.dot(h, whn, preferred_element_type=jnp.float32) + b_hn))
        h = (1.0 - z) * n + z * h

        # --- output projection ---
        out = jnp.dot(h, wfc, preferred_element_type=jnp.float32) + bfc   # (B, N)
        out_ref[:, t:t + 1, :] = out[:, None, :]          # VMEM write; HBM store once at end

        # autoregressive feedback: next decoder input is this step's prediction.
        # TODO(synk): teacher forcing (host-side random.random() + targets) has no in-kernel
        # equivalent; this implements the targets=None path of the PyTorch forward.
        x = out


def grn_decoder_forward(decoder_input, hidden, a_norm, torch_params, forecast_steps):
    """decoder_input: (B, N, 1); hidden: (B, H). Params in PyTorch layouts.

    Returns (B, forecast_steps, N), matching the PyTorch module (targets=None path).
    """
    w_gcn, b_gcn, w_ih, b_ih, w_hh, b_hh, w_fc, b_fc = torch_params
    B, N, _ = decoder_input.shape
    H = hidden.shape[1]
    Hg = w_gcn.shape[0]

    # ---- fuse the rank-1 GCN into a single (N, N*Hg) matmul weight ----
    # flat[b, m*Hg + h] = relu( sum_n x[b,n] * A[m,n] * w_gcn[h,0] + b_gcn[h] )
    wg_vec = w_gcn[:, 0]                                              # (Hg,)
    w_gcn_fused = (a_norm.T[:, :, None] * wg_vec[None, None, :]).reshape(N, N * Hg)
    b_gcn_fused = jnp.tile(b_gcn, N)[None, :]                         # (1, N*Hg)

    # ---- split GRU gate weights per gate (avoid intra-vreg gate slicing) ----
    w_ih_r, w_ih_z, w_ih_n = (w_ih[i * H:(i + 1) * H].T for i in range(3))  # (N*Hg, H)
    w_hh_r, w_hh_z, w_hh_n = (w_hh[i * H:(i + 1) * H].T for i in range(3))  # (H, H)
    b_r = (b_ih[:H] + b_hh[:H])[None, :]
    b_z = (b_ih[H:2 * H] + b_hh[H:2 * H])[None, :]
    b_in = b_ih[2 * H:][None, :]
    b_hn = b_hh[2 * H:][None, :]

    w_fc_t = w_fc.T                                                   # (H, N)
    b_fc2 = b_fc[None, :]                                             # (1, N)

    # ---- pad batch to the f32 sublane granularity (8 rows) ----
    B_pad = ((B + 7) // 8) * 8
    x0 = decoder_input[..., 0]                                        # (B, N)
    x0p = jnp.pad(x0, ((0, B_pad - B), (0, 0)))
    hp = jnp.pad(hidden, ((0, B_pad - B), (0, 0)))

    kernel = functools.partial(grn_decoder_kernel, T=forecast_steps)
    vmem = pl.BlockSpec(memory_space=pltpu.MemorySpace.VMEM)

    out = pl.pallas_call(
        kernel,
        out_shape=jax.ShapeDtypeStruct((B_pad, forecast_steps, N), jnp.float32),
        in_specs=[vmem] * 16,
        out_specs=vmem,
    )(x0p, hp, w_gcn_fused, b_gcn_fused,
      w_ih_r, w_ih_z, w_ih_n, w_hh_r, w_hh_z, w_hh_n,
      b_r, b_z, b_in, b_hn, w_fc_t, b_fc2)

    return out[:B]                                                    # (B, T, N)


def reference_forward(decoder_input, hidden, a_norm, torch_params, forecast_steps):
    """Pure-JAX reference matching the PyTorch forward (targets=None path)."""
    w_gcn, b_gcn, w_ih, b_ih, w_hh, b_hh, w_fc, b_fc = torch_params
    B, H = hidden.shape
    x = decoder_input[..., 0]
    h = hidden
    outs = []
    for _ in range(forecast_steps):
        xw = x[:, :, None] * w_gcn[:, 0][None, None, :]               # (B, N, Hg)
        emb = jnp.einsum('mn,bnh->bmh', a_norm, xw)
        emb = jax.nn.relu(emb + b_gcn[None, None, :])
        flat = emb.reshape(B, -1)
        gi = flat @ w_ih.T + b_ih
        gh = h @ w_hh.T + b_hh
        r = jax.nn.sigmoid(gi[:, :H] + gh[:, :H])
        z = jax.nn.sigmoid(gi[:, H:2 * H] + gh[:, H:2 * H])
        n = jnp.tanh(gi[:, 2 * H:] + r * gh[:, 2 * H:])
        h = (1.0 - z) * n + z * h
        out = h @ w_fc.T + b_fc
        outs.append(out)
        x = out
    return jnp.stack(outs, axis=1)                                    # (B, T, N)


if __name__ == "__main__":
    # Small shapes implied by the module: decoder_input_dim=1 (autoregressive feedback).
    B, N, D_in, Hg, H, T = 2, 8, 1, 16, 32, 4

    key = jax.random.PRNGKey(0)
    k = jax.random.split(key, 10)

    # edge_index: undirected ring graph over N nodes (stocks), shape (2, 2N)
    src = np.arange(N)
    dst = (src + 1) % N
    edge_index = np.stack([np.concatenate([src, dst]),
                           np.concatenate([dst, src])], axis=0).astype(np.int32)
    a_norm = jnp.asarray(build_gcn_norm(edge_index, N))

    def uni(kk, shape, fan_in):
        s = 1.0 / np.sqrt(fan_in)
        return jax.random.uniform(kk, shape, jnp.float32, -s, s)

    # Parameters in PyTorch layouts (layout fusion / transposition happens in the wrapper).
    w_gcn = uni(k[0], (Hg, D_in), D_in)        # GCNConv.lin.weight
    b_gcn = uni(k[1], (Hg,), D_in)             # GCNConv.bias
    w_ih = uni(k[2], (3 * H, N * Hg), H)       # GRUCell.weight_ih
    b_ih = uni(k[3], (3 * H,), H)
    w_hh = uni(k[4], (3 * H, H), H)            # GRUCell.weight_hh
    b_hh = uni(k[5], (3 * H,), H)
    w_fc = uni(k[6], (N, H), H)                # fc.weight
    b_fc = uni(k[7], (N,), H)

    torch_params = (w_gcn, b_gcn, w_ih, b_ih, w_hh, b_hh, w_fc, b_fc)

    decoder_input = jax.random.normal(k[8], (B, N, D_in), jnp.float32)
    hidden = jax.random.normal(k[9], (B, H), jnp.float32)

    out = grn_decoder_forward(decoder_input, hidden, a_norm, torch_params, T)
    out = jax.block_until_ready(out)

    ref = reference_forward(decoder_input, hidden, a_norm, torch_params, T)
    np.testing.assert_allclose(np.asarray(out), np.asarray(ref), rtol=1e-4, atol=1e-4)
    assert out.shape == (B, T, N)
    print("KERNEL_OK")
</pallas_src>

<mosaic_0001>
module attributes {stable_mosaic.version = 11 : i64} {
  func.func @grn_decoder_kernel(%arg0: memref<8x8xf32, #tpu.memory_space<vmem>>, %arg1: memref<8x32xf32, #tpu.memory_space<vmem>>, %arg2: memref<8x128xf32, #tpu.memory_space<vmem>>, %arg3: memref<1x128xf32, #tpu.memory_space<vmem>>, %arg4: memref<128x32xf32, #tpu.memory_space<vmem>>, %arg5: memref<128x32xf32, #tpu.memory_space<vmem>>, %arg6: memref<128x32xf32, #tpu.memory_space<vmem>>, %arg7: memref<32x32xf32, #tpu.memory_space<vmem>>, %arg8: memref<32x32xf32, #tpu.memory_space<vmem>>, %arg9: memref<32x32xf32, #tpu.memory_space<vmem>>, %arg10: memref<1x32xf32, #tpu.memory_space<vmem>>, %arg11: memref<1x32xf32, #tpu.memory_space<vmem>>, %arg12: memref<1x32xf32, #tpu.memory_space<vmem>>, %arg13: memref<1x32xf32, #tpu.memory_space<vmem>>, %arg14: memref<32x8xf32, #tpu.memory_space<vmem>>, %arg15: memref<1x8xf32, #tpu.memory_space<vmem>>, %arg16: memref<8x4x8xf32, #tpu.memory_space<vmem>>) attributes {dimension_semantics = [], scalar_prefetch = 0 : i64, scratch_operands = 0 : i64, tpu.core_type = #tpu.core_type<tc>} {
    %c0 = arith.constant 0 : index
    %c0_0 = arith.constant 0 : index
    %0 = vector.load %arg0[%c0, %c0_0] : memref<8x8xf32, #tpu.memory_space<vmem>>, vector<8x8xf32>
    %c0_1 = arith.constant 0 : index
    %c0_2 = arith.constant 0 : index
    %1 = vector.load %arg1[%c0_1, %c0_2] : memref<8x32xf32, #tpu.memory_space<vmem>>, vector<8x32xf32>
    %c0_3 = arith.constant 0 : index
    %c0_4 = arith.constant 0 : index
    %2 = vector.load %arg2[%c0_3, %c0_4] : memref<8x128xf32, #tpu.memory_space<vmem>>, vector<8x128xf32>
    %c0_5 = arith.constant 0 : index
    %c0_6 = arith.constant 0 : index
    %3 = vector.load %arg3[%c0_5, %c0_6] : memref<1x128xf32, #tpu.memory_space<vmem>>, vector<1x128xf32>
    %c0_7 = arith.constant 0 : index
    %c0_8 = arith.constant 0 : index
    %4 = vector.load %arg4[%c0_7, %c0_8] : memref<128x32xf32, #tpu.memory_space<vmem>>, vector<128x32xf32>
    %c0_9 = arith.constant 0 : index
    %c0_10 = arith.constant 0 : index
    %5 = vector.load %arg5[%c0_9, %c0_10] : memref<128x32xf32, #tpu.memory_space<vmem>>, vector<128x32xf32>
    %c0_11 = arith.constant 0 : index
    %c0_12 = arith.constant 0 : index
    %6 = vector.load %arg6[%c0_11, %c0_12] : memref<128x32xf32, #tpu.memory_space<vmem>>, vector<128x32xf32>
    %c0_13 = arith.constant 0 : index
    %c0_14 = arith.constant 0 : index
    %7 = vector.load %arg7[%c0_13, %c0_14] : memref<32x32xf32, #tpu.memory_space<vmem>>, vector<32x32xf32>
    %c0_15 = arith.constant 0 : index
    %c0_16 = arith.constant 0 : index
    %8 = vector.load %arg8[%c0_15, %c0_16] : memref<32x32xf32, #tpu.memory_space<vmem>>, vector<32x32xf32>
    %c0_17 = arith.constant 0 : index
    %c0_18 = arith.constant 0 : index
    %9 = vector.load %arg9[%c0_17, %c0_18] : memref<32x32xf32, #tpu.memory_space<vmem>>, vector<32x32xf32>
    %c0_19 = arith.constant 0 : index
    %c0_20 = arith.constant 0 : index
    %10 = vector.load %arg10[%c0_19, %c0_20] : memref<1x32xf32, #tpu.memory_space<vmem>>, vector<1x32xf32>
    %c0_21 = arith.constant 0 : index
    %c0_22 = arith.constant 0 : index
    %11 = vector.load %arg11[%c0_21, %c0_22] : memref<1x32xf32, #tpu.memory_space<vmem>>, vector<1x32xf32>
    %c0_23 = arith.constant 0 : index
    %c0_24 = arith.constant 0 : index
    %12 = vector.load %arg12[%c0_23, %c0_24] : memref<1x32xf32, #tpu.memory_space<vmem>>, vector<1x32xf32>
    %c0_25 = arith.constant 0 : index
    %c0_26 = arith.constant 0 : index
    %13 = vector.load %arg13[%c0_25, %c0_26] : memref<1x32xf32, #tpu.memory_space<vmem>>, vector<1x32xf32>
    %c0_27 = arith.constant 0 : index
    %c0_28 = arith.constant 0 : index
    %14 = vector.load %arg14[%c0_27, %c0_28] : memref<32x8xf32, #tpu.memory_space<vmem>>, vector<32x8xf32>
    %c0_29 = arith.constant 0 : index
    %c0_30 = arith.constant 0 : index
    %15 = vector.load %arg15[%c0_29, %c0_30] : memref<1x8xf32, #tpu.memory_space<vmem>>, vector<1x8xf32>
    %cst = arith.constant dense<0.000000e+00> : vector<8x128xf32>
    %16 = tpu.matmul %0, %2, %cst {dimension_numbers = #tpu.dot_dimension_numbers<[1], [0], [0], [1], [0, 0, 1, 1], [], []>} : vector<8x8xf32>, vector<8x128xf32>, vector<8x128xf32> -> vector<8x128xf32>
    %17 = vector.broadcast %3 : vector<1x128xf32> to vector<8x128xf32>
    %18 = arith.addf %16, %17 : vector<8x128xf32>
    %cst_31 = arith.constant 0.000000e+00 : f32
    %19 = vector.broadcast %cst_31 : f32 to vector<8x128xf32>
    %20 = arith.maximumf %18, %19 : vector<8x128xf32>
    %cst_32 = arith.constant dense<0.000000e+00> : vector<8x32xf32>
    %21 = tpu.matmul %20, %4, %cst_32 {dimension_numbers = #tpu.dot_dimension_numbers<[1], [0], [0], [1], [0, 0, 1, 1], [], []>} : vector<8x128xf32>, vector<128x32xf32>, vector<8x32xf32> -> vector<8x32xf32>
    %cst_33 = arith.constant dense<0.000000e+00> : vector<8x32xf32>
    %22 = tpu.matmul %1, %7, %cst_33 {dimension_numbers = #tpu.dot_dimension_numbers<[1], [0], [0], [1], [0, 0, 1, 1], [], []>} : vector<8x32xf32>, vector<32x32xf32>, vector<8x32xf32> -> vector<8x32xf32>
    %23 = arith.addf %21, %22 : vector<8x32xf32>
    %24 = vector.broadcast %10 : vector<1x32xf32> to vector<8x32xf32>
    %25 = arith.addf %23, %24 : vector<8x32xf32>
    %26 = arith.negf %25 : vector<8x32xf32>
    %27 = math.exp %26 : vector<8x32xf32>
    %cst_34 = arith.constant 1.000000e+00 : f32
    %28 = vector.broadcast %cst_34 : f32 to vector<8x32xf32>
    %29 = arith.addf %28, %27 : vector<8x32xf32>
    %30 = arith.divf %28, %29 : vector<8x32xf32>
    %cst_35 = arith.constant dense<0.000000e+00> : vector<8x32xf32>
    %31 = tpu.matmul %20, %5, %cst_35 {dimension_numbers = #tpu.dot_dimension_numbers<[1], [0], [0], [1], [0, 0, 1, 1], [], []>} : vector<8x128xf32>, vector<128x32xf32>, vector<8x32xf32> -> vector<8x32xf32>
    %cst_36 = arith.constant dense<0.000000e+00> : vector<8x32xf32>
    %32 = tpu.matmul %1, %8, %cst_36 {dimension_numbers = #tpu.dot_dimension_numbers<[1], [0], [0], [1], [0, 0, 1, 1], [], []>} : vector<8x32xf32>, vector<32x32xf32>, vector<8x32xf32> -> vector<8x32xf32>
    %33 = arith.addf %31, %32 : vector<8x32xf32>
    %34 = vector.broadcast %11 : vector<1x32xf32> to vector<8x32xf32>
    %35 = arith.addf %33, %34 : vector<8x32xf32>
    %36 = arith.negf %35 : vector<8x32xf32>
    %37 = math.exp %36 : vector<8x32xf32>
    %cst_37 = arith.constant 1.000000e+00 : f32
    %38 = vector.broadcast %cst_37 : f32 to vector<8x32xf32>
    %39 = arith.addf %38, %37 : vector<8x32xf32>
    %40 = arith.divf %38, %39 : vector<8x32xf32>
    %cst_38 = arith.constant dense<0.000000e+00> : vector<8x32xf32>
    %41 = tpu.matmul %20, %6, %cst_38 {dimension_numbers = #tpu.dot_dimension_numbers<[1], [0], [0], [1], [0, 0, 1, 1], [], []>} : vector<8x128xf32>, vector<128x32xf32>, vector<8x32xf32> -> vector<8x32xf32>
    %42 = vector.broadcast %12 : vector<1x32xf32> to vector<8x32xf32>
    %43 = arith.addf %41, %42 : vector<8x32xf32>
    %cst_39 = arith.constant dense<0.000000e+00> : vector<8x32xf32>
    %44 = tpu.matmul %1, %9, %cst_39 {dimension_numbers = #tpu.dot_dimension_numbers<[1], [0], [0], [1], [0, 0, 1, 1], [], []>} : vector<8x32xf32>, vector<32x32xf32>, vector<8x32xf32> -> vector<8x32xf32>
    %45 = vector.broadcast %13 : vector<1x32xf32> to vector<8x32xf32>
    %46 = arith.addf %44, %45 : vector<8x32xf32>
    %47 = arith.mulf %30, %46 : vector<8x32xf32>
    %48 = arith.addf %43, %47 : vector<8x32xf32>
    %49 = math.tanh %48 : vector<8x32xf32>
    %cst_40 = arith.constant 1.000000e+00 : f32
    %50 = vector.broadcast %cst_40 : f32 to vector<8x32xf32>
    %51 = arith.subf %50, %40 : vector<8x32xf32>
    %52 = arith.mulf %51, %49 : vector<8x32xf32>
    %53 = arith.mulf %40, %1 : vector<8x32xf32>
    %54 = arith.addf %52, %53 : vector<8x32xf32>
    %cst_41 = arith.constant dense<0.000000e+00> : vector<8x8xf32>
    %55 = tpu.matmul %54, %14, %cst_41 {dimension_numbers = #tpu.dot_dimension_numbers<[1], [0], [0], [1], [0, 0, 1, 1], [], []>} : vector<8x32xf32>, vector<32x8xf32>, vector<8x8xf32> -> vector<8x8xf32>
    %56 = vector.broadcast %15 : vector<1x8xf32> to vector<8x8xf32>
    %57 = arith.addf %55, %56 : vector<8x8xf32>
    %58 = vector.shape_cast %57 : vector<8x8xf32> to vector<8x1x8xf32>
    %c0_42 = arith.constant 0 : index
    %c0_43 = arith.constant 0 : index
    %c0_44 = arith.constant 0 : index
    %59 = vector.load %arg16[%c0_42, %c0_43, %c0_44] : memref<8x4x8xf32, #tpu.memory_space<vmem>>, vector<8x1x8xf32>
    tpu.vector_store %arg16[%c0_42, %c0_43, %c0_44], %58 {strides = array<i32>} : memref<8x4x8xf32, #tpu.memory_space<vmem>>, vector<8x1x8xf32>,
    %cst_45 = arith.constant dense<0.000000e+00> : vector<8x128xf32>
    %60 = tpu.matmul %57, %2, %cst_45 {dimension_numbers = #tpu.dot_dimension_numbers<[1], [0], [0], [1], [0, 0, 1, 1], [], []>} : vector<8x8xf32>, vector<8x128xf32>, vector<8x128xf32> -> vector<8x128xf32>
    %61 = vector.broadcast %3 : vector<1x128xf32> to vector<8x128xf32>
    %62 = arith.addf %60, %61 : vector<8x128xf32>
    %cst_46 = arith.constant 0.000000e+00 : f32
    %63 = vector.broadcast %cst_46 : f32 to vector<8x128xf32>
    %64 = arith.maximumf %62, %63 : vector<8x128xf32>
    %cst_47 = arith.constant dense<0.000000e+00> : vector<8x32xf32>
    %65 = tpu.matmul %64, %4, %cst_47 {dimension_numbers = #tpu.dot_dimension_numbers<[1], [0], [0], [1], [0, 0, 1, 1], [], []>} : vector<8x128xf32>, vector<128x32xf32>, vector<8x32xf32> -> vector<8x32xf32>
    %cst_48 = arith.constant dense<0.000000e+00> : vector<8x32xf32>
    %66 = tpu.matmul %54, %7, %cst_48 {dimension_numbers = #tpu.dot_dimension_numbers<[1], [0], [0], [1], [0, 0, 1, 1], [], []>} : vector<8x32xf32>, vector<32x32xf32>, vector<8x32xf32> -> vector<8x32xf32>
    %67 = arith.addf %65, %66 : vector<8x32xf32>
    %68 = vector.broadcast %10 : vector<1x32xf32> to vector<8x32xf32>
    %69 = arith.addf %67, %68 : vector<8x32xf32>
    %70 = arith.negf %69 : vector<8x32xf32>
    %71 = math.exp %70 : vector<8x32xf32>
    %cst_49 = arith.constant 1.000000e+00 : f32
    %72 = vector.broadcast %cst_49 : f32 to vector<8x32xf32>
    %73 = arith.addf %72, %71 : vector<8x32xf32>
    %74 = arith.divf %72, %73 : vector<8x32xf32>
    %cst_50 = arith.constant dense<0.000000e+00> : vector<8x32xf32>
    %75 = tpu.matmul %64, %5, %cst_50 {dimension_numbers = #tpu.dot_dimension_numbers<[1], [0], [0], [1], [0, 0, 1, 1], [], []>} : vector<8x128xf32>, vector<128x32xf32>, vector<8x32xf32> -> vector<8x32xf32>
    %cst_51 = arith.constant dense<0.000000e+00> : vector<8x32xf32>
    %76 = tpu.matmul %54, %8, %cst_51 {dimension_numbers = #tpu.dot_dimension_numbers<[1], [0], [0], [1], [0, 0, 1, 1], [], []>} : vector<8x32xf32>, vector<32x32xf32>, vector<8x32xf32> -> vector<8x32xf32>
    %77 = arith.addf %75, %76 : vector<8x32xf32>
    %78 = vector.broadcast %11 : vector<1x32xf32> to vector<8x32xf32>
    %79 = arith.addf %77, %78 : vector<8x32xf32>
    %80 = arith.negf %79 : vector<8x32xf32>
    %81 = math.exp %80 : vector<8x32xf32>
    %cst_52 = arith.constant 1.000000e+00 : f32
    %82 = vector.broadcast %cst_52 : f32 to vector<8x32xf32>
    %83 = arith.addf %82, %81 : vector<8x32xf32>
    %84 = arith.divf %82, %83 : vector<8x32xf32>
    %cst_53 = arith.constant dense<0.000000e+00> : vector<8x32xf32>
    %85 = tpu.matmul %64, %6, %cst_53 {dimension_numbers = #tpu.dot_dimension_numbers<[1], [0], [0], [1], [0, 0, 1, 1], [], []>} : vector<8x128xf32>, vector<128x32xf32>, vector<8x32xf32> -> vector<8x32xf32>
    %86 = vector.broadcast %12 : vector<1x32xf32> to vector<8x32xf32>
    %87 = arith.addf %85, %86 : vector<8x32xf32>
    %cst_54 = arith.constant dense<0.000000e+00> : vector<8x32xf32>
    %88 = tpu.matmul %54, %9, %cst_54 {dimension_numbers = #tpu.dot_dimension_numbers<[1], [0], [0], [1], [0, 0, 1, 1], [], []>} : vector<8x32xf32>, vector<32x32xf32>, vector<8x32xf32> -> vector<8x32xf32>
    %89 = vector.broadcast %13 : vector<1x32xf32> to vector<8x32xf32>
    %90 = arith.addf %88, %89 : vector<8x32xf32>
    %91 = arith.mulf %74, %90 : vector<8x32xf32>
    %92 = arith.addf %87, %91 : vector<8x32xf32>
    %93 = math.tanh %92 : vector<8x32xf32>
    %cst_55 = arith.constant 1.000000e+00 : f32
    %94 = vector.broadcast %cst_55 : f32 to vector<8x32xf32>
    %95 = arith.subf %94, %84 : vector<8x32xf32>
    %96 = arith.mulf %95, %93 : vector<8x32xf32>
    %97 = arith.mulf %84, %54 : vector<8x32xf32>
    %98 = arith.addf %96, %97 : vector<8x32xf32>
    %cst_56 = arith.constant dense<0.000000e+00> : vector<8x8xf32>
    %99 = tpu.matmul %98, %14, %cst_56 {dimension_numbers = #tpu.dot_dimension_numbers<[1], [0], [0], [1], [0, 0, 1, 1], [], []>} : vector<8x32xf32>, vector<32x8xf32>, vector<8x8xf32> -> vector<8x8xf32>
    %100 = vector.broadcast %15 : vector<1x8xf32> to vector<8x8xf32>
    %101 = arith.addf %99, %100 : vector<8x8xf32>
    %102 = vector.shape_cast %101 : vector<8x8xf32> to vector<8x1x8xf32>
    %c0_57 = arith.constant 0 : index
    %c1 = arith.constant 1 : index
    %c0_58 = arith.constant 0 : index
    %103 = vector.load %arg16[%c0_57, %c1, %c0_58] : memref<8x4x8xf32, #tpu.memory_space<vmem>>, vector<8x1x8xf32>
    tpu.vector_store %arg16[%c0_57, %c1, %c0_58], %102 {strides = array<i32>} : memref<8x4x8xf32, #tpu.memory_space<vmem>>, vector<8x1x8xf32>,
    %cst_59 = arith.constant dense<0.000000e+00> : vector<8x128xf32>
    %104 = tpu.matmul %101, %2, %cst_59 {dimension_numbers = #tpu.dot_dimension_numbers<[1], [0], [0], [1], [0, 0, 1, 1], [], []>} : vector<8x8xf32>, vector<8x128xf32>, vector<8x128xf32> -> vector<8x128xf32>
    %105 = vector.broadcast %3 : vector<1x128xf32> to vector<8x128xf32>
    %106 = arith.addf %104, %105 : vector<8x128xf32>
    %cst_60 = arith.constant 0.000000e+00 : f32
    %107 = vector.broadcast %cst_60 : f32 to vector<8x128xf32>
    %108 = arith.maximumf %106, %107 : vector<8x128xf32>
    %cst_61 = arith.constant dense<0.000000e+00> : vector<8x32xf32>
    %109 = tpu.matmul %108, %4, %cst_61 {dimension_numbers = #tpu.dot_dimension_numbers<[1], [0], [0], [1], [0, 0, 1, 1], [], []>} : vector<8x128xf32>, vector<128x32xf32>, vector<8x32xf32> -> vector<8x32xf32>
    %cst_62 = arith.constant dense<0.000000e+00> : vector<8x32xf32>
    %110 = tpu.matmul %98, %7, %cst_62 {dimension_numbers = #tpu.dot_dimension_numbers<[1], [0], [0], [1], [0, 0, 1, 1], [], []>} : vector<8x32xf32>, vector<32x32xf32>, vector<8x32xf32> -> vector<8x32xf32>
    %111 = arith.addf %109, %110 : vector<8x32xf32>
    %112 = vector.broadcast %10 : vector<1x32xf32> to vector<8x32xf32>
    %113 = arith.addf %111, %112 : vector<8x32xf32>
    %114 = arith.negf %113 : vector<8x32xf32>
    %115 = math.exp %114 : vector<8x32xf32>
    %cst_63 = arith.constant 1.000000e+00 : f32
    %116 = vector.broadcast %cst_63 : f32 to vector<8x32xf32>
    %117 = arith.addf %116, %115 : vector<8x32xf32>
    %118 = arith.divf %116, %117 : vector<8x32xf32>
    %cst_64 = arith.constant dense<0.000000e+00> : vector<8x32xf32>
    %119 = tpu.matmul %108, %5, %cst_64 {dimension_numbers = #tpu.dot_dimension_numbers<[1], [0], [0], [1], [0, 0, 1, 1], [], []>} : vector<8x128xf32>, vector<128x32xf32>, vector<8x32xf32> -> vector<8x32xf32>
    %cst_65 = arith.constant dense<0.000000e+00> : vector<8x32xf32>
    %120 = tpu.matmul %98, %8, %cst_65 {dimension_numbers = #tpu.dot_dimension_numbers<[1], [0], [0], [1], [0, 0, 1, 1], [], []>} : vector<8x32xf32>, vector<32x32xf32>, vector<8x32xf32> -> vector<8x32xf32>
    %121 = arith.addf %119, %120 : vector<8x32xf32>
    %122 = vector.broadcast %11 : vector<1x32xf32> to vector<8x32xf32>
    %123 = arith.addf %121, %122 : vector<8x32xf32>
    %124 = arith.negf %123 : vector<8x32xf32>
    %125 = math.exp %124 : vector<8x32xf32>
    %cst_66 = arith.constant 1.000000e+00 : f32
    %126 = vector.broadcast %cst_66 : f32 to vector<8x32xf32>
    %127 = arith.addf %126, %125 : vector<8x32xf32>
    %128 = arith.divf %126, %127 : vector<8x32xf32>
    %cst_67 = arith.constant dense<0.000000e+00> : vector<8x32xf32>
    %129 = tpu.matmul %108, %6, %cst_67 {dimension_numbers = #tpu.dot_dimension_numbers<[1], [0], [0], [1], [0, 0, 1, 1], [], []>} : vector<8x128xf32>, vector<128x32xf32>, vector<8x32xf32> -> vector<8x32xf32>
    %130 = vector.broadcast %12 : vector<1x32xf32> to vector<8x32xf32>
    %131 = arith.addf %129, %130 : vector<8x32xf32>
    %cst_68 = arith.constant dense<0.000000e+00> : vector<8x32xf32>
    %132 = tpu.matmul %98, %9, %cst_68 {dimension_numbers = #tpu.dot_dimension_numbers<[1], [0], [0], [1], [0, 0, 1, 1], [], []>} : vector<8x32xf32>, vector<32x32xf32>, vector<8x32xf32> -> vector<8x32xf32>
    %133 = vector.broadcast %13 : vector<1x32xf32> to vector<8x32xf32>
    %134 = arith.addf %132, %133 : vector<8x32xf32>
    %135 = arith.mulf %118, %134 : vector<8x32xf32>
    %136 = arith.addf %131, %135 : vector<8x32xf32>
    %137 = math.tanh %136 : vector<8x32xf32>
    %cst_69 = arith.constant 1.000000e+00 : f32
    %138 = vector.broadcast %cst_69 : f32 to vector<8x32xf32>
    %139 = arith.subf %138, %128 : vector<8x32xf32>
    %140 = arith.mulf %139, %137 : vector<8x32xf32>
    %141 = arith.mulf %128, %98 : vector<8x32xf32>
    %142 = arith.addf %140, %141 : vector<8x32xf32>
    %cst_70 = arith.constant dense<0.000000e+00> : vector<8x8xf32>
    %143 = tpu.matmul %142, %14, %cst_70 {dimension_numbers = #tpu.dot_dimension_numbers<[1], [0], [0], [1], [0, 0, 1, 1], [], []>} : vector<8x32xf32>, vector<32x8xf32>, vector<8x8xf32> -> vector<8x8xf32>
    %144 = vector.broadcast %15 : vector<1x8xf32> to vector<8x8xf32>
    %145 = arith.addf %143, %144 : vector<8x8xf32>
    %146 = vector.shape_cast %145 : vector<8x8xf32> to vector<8x1x8xf32>
    %c0_71 = arith.constant 0 : index
    %c2 = arith.constant 2 : index
    %c0_72 = arith.constant 0 : index
    %147 = vector.load %arg16[%c0_71, %c2, %c0_72] : memref<8x4x8xf32, #tpu.memory_space<vmem>>, vector<8x1x8xf32>
    tpu.vector_store %arg16[%c0_71, %c2, %c0_72], %146 {strides = array<i32>} : memref<8x4x8xf32, #tpu.memory_space<vmem>>, vector<8x1x8xf32>,
    %cst_73 = arith.constant dense<0.000000e+00> : vector<8x128xf32>
    %148 = tpu.matmul %145, %2, %cst_73 {dimension_numbers = #tpu.dot_dimension_numbers<[1], [0], [0], [1], [0, 0, 1, 1], [], []>} : vector<8x8xf32>, vector<8x128xf32>, vector<8x128xf32> -> vector<8x128xf32>
    %149 = vector.broadcast %3 : vector<1x128xf32> to vector<8x128xf32>
    %150 = arith.addf %148, %149 : vector<8x128xf32>
    %cst_74 = arith.constant 0.000000e+00 : f32
    %151 = vector.broadcast %cst_74 : f32 to vector<8x128xf32>
    %152 = arith.maximumf %150, %151 : vector<8x128xf32>
    %cst_75 = arith.constant dense<0.000000e+00> : vector<8x32xf32>
    %153 = tpu.matmul %152, %4, %cst_75 {dimension_numbers = #tpu.dot_dimension_numbers<[1], [0], [0], [1], [0, 0, 1, 1], [], []>} : vector<8x128xf32>, vector<128x32xf32>, vector<8x32xf32> -> vector<8x32xf32>
    %cst_76 = arith.constant dense<0.000000e+00> : vector<8x32xf32>
    %154 = tpu.matmul %142, %7, %cst_76 {dimension_numbers = #tpu.dot_dimension_numbers<[1], [0], [0], [1], [0, 0, 1, 1], [], []>} : vector<8x32xf32>, vector<32x32xf32>, vector<8x32xf32> -> vector<8x32xf32>
    %155 = arith.addf %153, %154 : vector<8x32xf32>
    %156 = vector.broadcast %10 : vector<1x32xf32> to vector<8x32xf32>
    %157 = arith.addf %155, %156 : vector<8x32xf32>
    %158 = arith.negf %157 : vector<8x32xf32>
    %159 = math.exp %158 : vector<8x32xf32>
    %cst_77 = arith.constant 1.000000e+00 : f32
    %160 = vector.broadcast %cst_77 : f32 to vector<8x32xf32>
    %161 = arith.addf %160, %159 : vector<8x32xf32>
    %162 = arith.divf %160, %161 : vector<8x32xf32>
    %cst_78 = arith.constant dense<0.000000e+00> : vector<8x32xf32>
    %163 = tpu.matmul %152, %5, %cst_78 {dimension_numbers = #tpu.dot_dimension_numbers<[1], [0], [0], [1], [0, 0, 1, 1], [], []>} : vector<8x128xf32>, vector<128x32xf32>, vector<8x32xf32> -> vector<8x32xf32>
    %cst_79 = arith.constant dense<0.000000e+00> : vector<8x32xf32>
    %164 = tpu.matmul %142, %8, %cst_79 {dimension_numbers = #tpu.dot_dimension_numbers<[1], [0], [0], [1], [0, 0, 1, 1], [], []>} : vector<8x32xf32>, vector<32x32xf32>, vector<8x32xf32> -> vector<8x32xf32>
    %165 = arith.addf %163, %164 : vector<8x32xf32>
    %166 = vector.broadcast %11 : vector<1x32xf32> to vector<8x32xf32>
    %167 = arith.addf %165, %166 : vector<8x32xf32>
    %168 = arith.negf %167 : vector<8x32xf32>
    %169 = math.exp %168 : vector<8x32xf32>
    %cst_80 = arith.constant 1.000000e+00 : f32
    %170 = vector.broadcast %cst_80 : f32 to vector<8x32xf32>
    %171 = arith.addf %170, %169 : vector<8x32xf32>
    %172 = arith.divf %170, %171 : vector<8x32xf32>
    %cst_81 = arith.constant dense<0.000000e+00> : vector<8x32xf32>
    %173 = tpu.matmul %152, %6, %cst_81 {dimension_numbers = #tpu.dot_dimension_numbers<[1], [0], [0], [1], [0, 0, 1, 1], [], []>} : vector<8x128xf32>, vector<128x32xf32>, vector<8x32xf32> -> vector<8x32xf32>
    %174 = vector.broadcast %12 : vector<1x32xf32> to vector<8x32xf32>
    %175 = arith.addf %173, %174 : vector<8x32xf32>
    %cst_82 = arith.constant dense<0.000000e+00> : vector<8x32xf32>
    %176 = tpu.matmul %142, %9, %cst_82 {dimension_numbers = #tpu.dot_dimension_numbers<[1], [0], [0], [1], [0, 0, 1, 1], [], []>} : vector<8x32xf32>, vector<32x32xf32>, vector<8x32xf32> -> vector<8x32xf32>
    %177 = vector.broadcast %13 : vector<1x32xf32> to vector<8x32xf32>
    %178 = arith.addf %176, %177 : vector<8x32xf32>
    %179 = arith.mulf %162, %178 : vector<8x32xf32>
    %180 = arith.addf %175, %179 : vector<8x32xf32>
    %181 = math.tanh %180 : vector<8x32xf32>
    %cst_83 = arith.constant 1.000000e+00 : f32
    %182 = vector.broadcast %cst_83 : f32 to vector<8x32xf32>
    %183 = arith.subf %182, %172 : vector<8x32xf32>
    %184 = arith.mulf %183, %181 : vector<8x32xf32>
    %185 = arith.mulf %172, %142 : vector<8x32xf32>
    %186 = arith.addf %184, %185 : vector<8x32xf32>
    %cst_84 = arith.constant dense<0.000000e+00> : vector<8x8xf32>
    %187 = tpu.matmul %186, %14, %cst_84 {dimension_numbers = #tpu.dot_dimension_numbers<[1], [0], [0], [1], [0, 0, 1, 1], [], []>} : vector<8x32xf32>, vector<32x8xf32>, vector<8x8xf32> -> vector<8x8xf32>
    %188 = vector.broadcast %15 : vector<1x8xf32> to vector<8x8xf32>
    %189 = arith.addf %187, %188 : vector<8x8xf32>
    %190 = vector.shape_cast %189 : vector<8x8xf32> to vector<8x1x8xf32>
    %c0_85 = arith.constant 0 : index
    %c3 = arith.constant 3 : index
    %c0_86 = arith.constant 0 : index
    %191 = vector.load %arg16[%c0_85, %c3, %c0_86] : memref<8x4x8xf32, #tpu.memory_space<vmem>>, vector<8x1x8xf32>
    tpu.vector_store %arg16[%c0_85, %c3, %c0_86], %190 {strides = array<i32>} : memref<8x4x8xf32, #tpu.memory_space<vmem>>, vector<8x1x8xf32>,
    return
  }
}

</mosaic_0001>

<llo_original>
// kernel: tpu_custom_call.1
$region0: #{tpu_custom_call.1}
  #allocation0 [shape = 'u32[]', space=smem, size = 0x4, offset = 0x4, fixed_abs, tag = 'smem constant byte address 0x4 - core index']
  #allocation1 [shape = 'u32[144,128]{1,0:T(1,128)}', space=vmem, size = 0x12000, scoped, tag = 'internal scratch']
  %s0 = inlined_call_operand.vmem [shape: f32[8,8], index: 0, kind: input, shape index: {}]
  %s1 = inlined_call_operand.vmem [shape: f32[8,32], index: 1, kind: input, shape index: {}]
  %s2 = inlined_call_operand.vmem [shape: f32[8,128], index: 2, kind: input, shape index: {}]
  %s3 = inlined_call_operand.vmem [shape: f32[1,128], index: 3, kind: input, shape index: {}]
  %s4 = inlined_call_operand.vmem [shape: f32[128,32], index: 4, kind: input, shape index: {}]
  %s5 = inlined_call_operand.vmem [shape: f32[128,32], index: 5, kind: input, shape index: {}]
  %s6 = inlined_call_operand.vmem [shape: f32[128,32], index: 6, kind: input, shape index: {}]
  %s7 = inlined_call_operand.vmem [shape: f32[32,32], index: 7, kind: input, shape index: {}]
  %s8 = inlined_call_operand.vmem [shape: f32[32,32], index: 8, kind: input, shape index: {}]
  %s9 = inlined_call_operand.vmem [shape: f32[32,32], index: 9, kind: input, shape index: {}]
  %s10 = inlined_call_operand.vmem [shape: f32[1,32], index: 10, kind: input, shape index: {}]
  %s11 = inlined_call_operand.vmem [shape: f32[1,32], index: 11, kind: input, shape index: {}]
  %s12 = inlined_call_operand.vmem [shape: f32[1,32], index: 12, kind: input, shape index: {}]
  %s13 = inlined_call_operand.vmem [shape: f32[1,32], index: 13, kind: input, shape index: {}]
  %s14 = inlined_call_operand.vmem [shape: f32[32,8], index: 14, kind: input, shape index: {}]
  %s15 = inlined_call_operand.vmem [shape: f32[1,8], index: 15, kind: input, shape index: {}]
  %s16 = inlined_call_operand.hbm [shape: f32[8,4,8], index: 16, kind: output, shape index: {}]
  %s17 = sld [smem:[#allocation0]]
  $region74: #{tpu_custom_call.1} parent=0
    _
  %s19 = ssub.s32 1, %s17
  %s20 = scalar_select 0, %s19, %s17
  $region1: #{tpu_custom_call.1} parent=0
    #allocation2 [shape = 'u8[16384]{0}', space=vmem, size = 0x4000, scoped, tag = 'output window, operand 0, single buffered']
    #allocation3 [shape = 's32[1]{0}', space=sflag, size = 0x4, scoped, tag = 'scoped memory for tpu_custom_call.1']
    %21 = vsyncpa [#allocation3], 0
    // Predicated region
    $region2: #{tpu_custom_call.1} parent=1 // pred_check
      _
    $region3: #{tpu_custom_call.1} parent=1 // pred_check_branch
      %23 = sbr.rel (0) target = $region5
    $region4: #{tpu_custom_call.1} parent=1 // pred_region
      _
    $region5: #{tpu_custom_call.1} parent=1 // pred_fallthru
      _
    // Predicated region
    $region6: #{tpu_custom_call.1} parent=1 // pred_check
      _
    $region7: #{tpu_custom_call.1} parent=1 // pred_check_branch
      %25 = sbr.rel (0) target = $region9
    $region8: #{tpu_custom_call.1} parent=1 // pred_region
      _
    $region9: #{tpu_custom_call.1} parent=1 // pred_fallthru
      _
    // Predicated region
    $region10: #{tpu_custom_call.1} parent=1 // pred_check
      _
    $region11: #{tpu_custom_call.1} parent=1 // pred_check_branch
      %27 = sbr.rel (0) target = $region13
    $region12: #{tpu_custom_call.1} parent=1 // pred_region
      _
    $region13: #{tpu_custom_call.1} parent=1 // pred_fallthru
      _
    // Predicated region
    $region14: #{tpu_custom_call.1} parent=1 // pred_check
      _
    $region15: #{tpu_custom_call.1} parent=1 // pred_check_branch
      %29 = sbr.rel (0) target = $region17
    $region16: #{tpu_custom_call.1} parent=1 // pred_region
      _
    $region17: #{tpu_custom_call.1} parent=1 // pred_fallthru
      _
    // Predicated region
    $region18: #{tpu_custom_call.1} parent=1 // pred_check
      _
    $region19: #{tpu_custom_call.1} parent=1 // pred_check_branch
      %31 = sbr.rel (0) target = $region21
    $region20: #{tpu_custom_call.1} parent=1 // pred_region
      _
    $region21: #{tpu_custom_call.1} parent=1 // pred_fallthru
      _
    // Predicated region
    $region22: #{tpu_custom_call.1} parent=1 // pred_check
      _
    $region23: #{tpu_custom_call.1} parent=1 // pred_check_branch
      %33 = sbr.rel (0) target = $region25
    $region24: #{tpu_custom_call.1} parent=1 // pred_region
      _
    $region25: #{tpu_custom_call.1} parent=1 // pred_fallthru
      _
    // Predicated region
    $region26: #{tpu_custom_call.1} parent=1 // pred_check
      _
    $region27: #{tpu_custom_call.1} parent=1 // pred_check_branch
      %35 = sbr.rel (0) target = $region29
    $region28: #{tpu_custom_call.1} parent=1 // pred_region
      _
    $region29: #{tpu_custom_call.1} parent=1 // pred_fallthru
      _
    // Predicated region
    $region30: #{tpu_custom_call.1} parent=1 // pred_check
      _
    $region31: #{tpu_custom_call.1} parent=1 // pred_check_branch
      %37 = sbr.rel (0) target = $region33
    $region32: #{tpu_custom_call.1} parent=1 // pred_region
      _
    $region33: #{tpu_custom_call.1} parent=1 // pred_fallthru
      _
    // Predicated region
    $region34: #{tpu_custom_call.1} parent=1 // pred_check
      _
    $region35: #{tpu_custom_call.1} parent=1 // pred_check_branch
      %39 = sbr.rel (0) target = $region37
    $region36: #{tpu_custom_call.1} parent=1 // pred_region
      _
    $region37: #{tpu_custom_call.1} parent=1 // pred_fallthru
      _
    // Predicated region
    $region38: #{tpu_custom_call.1} parent=1 // pred_check
      _
    $region39: #{tpu_custom_call.1} parent=1 // pred_check_branch
      %41 = sbr.rel (0) target = $region41
    $region40: #{tpu_custom_call.1} parent=1 // pred_region
      _
    $region41: #{tpu_custom_call.1} parent=1 // pred_fallthru
      _
    // Predicated region
    $region42: #{tpu_custom_call.1} parent=1 // pred_check
      _
    $region43: #{tpu_custom_call.1} parent=1 // pred_check_branch
      %43 = sbr.rel (0) target = $region45
    $region44: #{tpu_custom_call.1} parent=1 // pred_region
      _
    $region45: #{tpu_custom_call.1} parent=1 // pred_fallthru
      _
    // Predicated region
    $region46: #{tpu_custom_call.1} parent=1 // pred_check
      _
    $region47: #{tpu_custom_call.1} parent=1 // pred_check_branch
      %45 = sbr.rel (0) target = $region49
    $region48: #{tpu_custom_call.1} parent=1 // pred_region
      _
    $region49: #{tpu_custom_call.1} parent=1 // pred_fallthru
      _
    // Predicated region
    $region50: #{tpu_custom_call.1} parent=1 // pred_check
      _
    $region51: #{tpu_custom_call.1} parent=1 // pred_check_branch
      %47 = sbr.rel (0) target = $region53
    $region52: #{tpu_custom_call.1} parent=1 // pred_region
      _
    $region53: #{tpu_custom_call.1} parent=1 // pred_fallthru
      _
    // Predicated region
    $region54: #{tpu_custom_call.1} parent=1 // pred_check
      _
    $region55: #{tpu_custom_call.1} parent=1 // pred_check_branch
      %49 = sbr.rel (0) target = $region57
    $region56: #{tpu_custom_call.1} parent=1 // pred_region
      _
    $region57: #{tpu_custom_call.1} parent=1 // pred_fallthru
      _
    // Predicated region
    $region58: #{tpu_custom_call.1} parent=1 // pred_check
      _
    $region59: #{tpu_custom_call.1} parent=1 // pred_check_branch
      %51 = sbr.rel (0) target = $region61
    $region60: #{tpu_custom_call.1} parent=1 // pred_region
      _
    $region61: #{tpu_custom_call.1} parent=1 // pred_fallthru
      _
    // Predicated region
    $region62: #{tpu_custom_call.1} parent=1 // pred_check
      _
    $region63: #{tpu_custom_call.1} parent=1 // pred_check_branch
      %53 = sbr.rel (0) target = $region65
    $region64: #{tpu_custom_call.1} parent=1 // pred_region
      _
    $region65: #{tpu_custom_call.1} parent=1 // pred_fallthru
      _
    %v54 = vld [vmem:[%s0] sm:$0xff]
    %v55 = vld [vmem:[%s1] sm:$0xff]
    %v56 = vld [vmem:[%s2] sm:$0xff]
    %v57 = vld [vmem:[%s3] sm:$0x1]
    %v58 = vld [vmem:[%s4] sm:$0xff]
    %v59 = vld [vmem:[%s4 + $0x8] sm:$0xff]
    %v60 = vld [vmem:[%s4 + $0x10] sm:$0xff]
    %v61 = vld [vmem:[%s4 + $0x18] sm:$0xff]
    %v62 = vld [vmem:[%s4 + $0x20] sm:$0xff]
    %v63 = vld [vmem:[%s4 + $0x28] sm:$0xff]
    %v64 = vld [vmem:[%s4 + $0x30] sm:$0xff]
    %v65 = vld [vmem:[%s4 + $0x38] sm:$0xff]
    %v66 = vld [vmem:[%s4 + $0x40] sm:$0xff]
    %v67 = vld [vmem:[%s4 + $0x48] sm:$0xff]
    %v68 = vld [vmem:[%s4 + $0x50] sm:$0xff]
    %v69 = vld [vmem:[%s4 + $0x58] sm:$0xff]
    %v70 = vld [vmem:[%s4 + $0x60] sm:$0xff]
    %v71 = vld [vmem:[%s4 + $0x68] sm:$0xff]
    %v72 = vld [vmem:[%s4 + $0x70] sm:$0xff]
    %v73 = vld [vmem:[%s4 + $0x78] sm:$0xff]
    %v74 = vld [vmem:[%s5] sm:$0xff]
    %v75 = vld [vmem:[%s5 + $0x8] sm:$0xff]
    %v76 = vld [vmem:[%s5 + $0x10] sm:$0xff]
    %v77 = vld [vmem:[%s5 + $0x18] sm:$0xff]
    %v78 = vld [vmem:[%s5 + $0x20] sm:$0xff]
    %v79 = vld [vmem:[%s5 + $0x28] sm:$0xff]
    %v80 = vld [vmem:[%s5 + $0x30] sm:$0xff]
    %v81 = vld [vmem:[%s5 + $0x38] sm:$0xff]
    %v82 = vld [vmem:[%s5 + $0x40] sm:$0xff]
    %v83 = vld [vmem:[%s5 + $0x48] sm:$0xff]
    %v84 = vld [vmem:[%s5 + $0x50] sm:$0xff]
    %v85 = vld [vmem:[%s5 + $0x58] sm:$0xff]
    %v86 = vld [vmem:[%s5 + $0x60] sm:$0xff]
    %v87 = vld [vmem:[%s5 + $0x68] sm:$0xff]
    %v88 = vld [vmem:[%s5 + $0x70] sm:$0xff]
    %v89 = vld [vmem:[%s5 + $0x78] sm:$0xff]
    %v90 = vld [vmem:[%s6] sm:$0xff]
    %v91 = vld [vmem:[%s6 + $0x8] sm:$0xff]
    %v92 = vld [vmem:[%s6 + $0x10] sm:$0xff]
    %v93 = vld [vmem:[%s6 + $0x18] sm:$0xff]
    %v94 = vld [vmem:[%s6 + $0x20] sm:$0xff]
    %v95 = vld [vmem:[%s6 + $0x28] sm:$0xff]
    %v96 = vld [vmem:[%s6 + $0x30] sm:$0xff]
    %v97 = vld [vmem:[%s6 + $0x38] sm:$0xff]
    %v98 = vld [vmem:[%s6 + $0x40] sm:$0xff]
    %v99 = vld [vmem:[%s6 + $0x48] sm:$0xff]
    %v100 = vld [vmem:[%s6 + $0x50] sm:$0xff]
    %v101 = vld [vmem:[%s6 + $0x58] sm:$0xff]
    %v102 = vld [vmem:[%s6 + $0x60] sm:$0xff]
    %v103 = vld [vmem:[%s6 + $0x68] sm:$0xff]
    %v104 = vld [vmem:[%s6 + $0x70] sm:$0xff]
    %v105 = vld [vmem:[%s6 + $0x78] sm:$0xff]
    %v106 = vld [vmem:[%s7] sm:$0xff]
    %v107 = vld [vmem:[%s7 + $0x8] sm:$0xff]
    %v108 = vld [vmem:[%s7 + $0x10] sm:$0xff]
    %v109 = vld [vmem:[%s7 + $0x18] sm:$0xff]
    %v110 = vld [vmem:[%s8] sm:$0xff]
    %v111 = vld [vmem:[%s8 + $0x8] sm:$0xff]
    %v112 = vld [vmem:[%s8 + $0x10] sm:$0xff]
    %v113 = vld [vmem:[%s8 + $0x18] sm:$0xff]
    %v114 = vld [vmem:[%s9] sm:$0xff]
    %v115 = vld [vmem:[%s9 + $0x8] sm:$0xff]
    %v116 = vld [vmem:[%s9 + $0x10] sm:$0xff]
    %v117 = vld [vmem:[%s9 + $0x18] sm:$0xff]
    %v118 = vld [vmem:[%s10] sm:$0x1]
    %v119 = vld [vmem:[%s11] sm:$0x1]
    %v120 = vld [vmem:[%s12] sm:$0x1]
    %v121 = vld [vmem:[%s13] sm:$0x1]
    %v122 = vld [vmem:[%s14] sm:$0xff]
    %v123 = vld [vmem:[%s14 + $0x8] sm:$0xff]
    %v124 = vld [vmem:[%s14 + $0x10] sm:$0xff]
    %v125 = vld [vmem:[%s14 + $0x18] sm:$0xff]
    %v126 = vld [vmem:[%s15] sm:$0x1]
    %v128 = vlaneseq
    %v129 = vshrl.u32 %v128, 7
    %v130 = vsub.s32 0, %v129
    %v131 = vrot.slane %v57, %v130
    %vm133 = vcmask 64512
    %v135 = vsel %vm133, %v54, 0
    %137 = vmatprep.subr.mxu0 0.0
    %138 = vmatpush1.msra.mxu0 %v56
    %139 = vmatprep.subr.mxu0 0.0
    %140 = vmatpush1.msra.mxu0 0.0
    %141 = vmatprep.subr.mxu0 0.0
    %142 = vmatpush1.msra.mxu0 0.0
    %143 = vmatprep.subr.mxu0 0.0
    %144 = vmatpush1.msra.mxu0 0.0
    %145 = vmatprep.subr.mxu0 0.0
    %146 = vmatpush1.msra.mxu0 0.0
    %147 = vmatprep.subr.mxu0 0.0
    %148 = vmatpush1.msra.mxu0 0.0
    %149 = vmatprep.subr.mxu0 0.0
    %150 = vmatpush1.msra.mxu0 0.0
    %151 = vmatprep.subr.mxu0 0.0
    %152 = vmatpush1.msra.mxu0 0.0
    %153 = vmatprep.subr.mxu0 0.0
    %154 = vmatpush1.msra.mxu0 0.0
    %155 = vmatprep.subr.mxu0 0.0
    %156 = vmatpush1.msra.mxu0 0.0
    %157 = vmatprep.subr.mxu0 0.0
    %158 = vmatpush1.msra.mxu0 0.0
    %159 = vmatprep.subr.mxu0 0.0
    %160 = vmatpush1.msra.mxu0 0.0
    %161 = vmatprep.subr.mxu0 0.0
    %162 = vmatpush1.msra.mxu0 0.0
    %163 = vmatprep.subr.mxu0 0.0
    %164 = vmatpush1.msra.mxu0 0.0
    %165 = vmatprep.subr.mxu0 0.0
    %166 = vmatpush1.msra.mxu0 0.0
    %167 = vmatprep.subr.mxu0 0.0
    %168 = vmatpush1.msra.mxu0 0.0
    %169 = vmatprep.subr.mxu0 0.0
    %170 = vmatpush1.msra.mxu0 0.0
    %171 = vmatprep.subr.mxu0 0.0
    %172 = vmatpush1.msra.mxu0 0.0
    %173 = vmatprep.subr.mxu0 0.0
    %174 = vmatpush1.msra.mxu0 0.0
    %175 = vmatprep.subr.mxu0 0.0
    %176 = vmatpush1.msra.mxu0 0.0
    %177 = vmatprep.subr.mxu0 0.0
    %178 = vmatpush1.msra.mxu0 0.0
    %179 = vmatprep.subr.mxu0 0.0
    %180 = vmatpush1.msra.mxu0 0.0
    %181 = vmatprep.subr.mxu0 0.0
    %182 = vmatpush1.msra.mxu0 0.0
    %183 = vmatprep.subr.mxu0 0.0
    %184 = vmatpush1.msra.mxu0 0.0
    %185 = vmatprep.subr.mxu0 0.0
    %186 = vmatpush1.msra.mxu0 0.0
    %187 = vmatprep.subr.mxu0 0.0
    %188 = vmatpush1.msra.mxu0 0.0
    %189 = vmatprep.subr.mxu0 0.0
    %190 = vmatpush1.msra.mxu0 0.0
    %191 = vmatprep.subr.mxu0 0.0
    %192 = vmatpush1.msra.mxu0 0.0
    %193 = vmatprep.subr.mxu0 0.0
    %194 = vmatpush1.msra.mxu0 0.0
    %195 = vmatprep.subr.mxu0 0.0
    %196 = vmatpush1.msra.mxu0 0.0
    %197 = vmatprep.subr.mxu0 0.0
    %198 = vmatpush1.msra.mxu0 0.0
    %199 = vmatprep.subr.mxu0 0.0
    %200 = vmatpush1.msra.mxu0 0.0
    %201 = vmatprep.mubr.f32.mxu0 0.0
    %202 = vmatmul.mubr.f32.gmra.mrb[0].mxu0 %v135
    %v203 = vpop.f32.mrb[0].mxu0
    %v204 = vadd.f32 %v131, %v203
    %v205 = vpop.f32.mrb[0].mxu0
    %206 = vdwg.mxu0
    %v207 = vmax.f32 %v204, 0.0
    %vm208 = vcmask 261120
    %v210 = vsel %vm208, %v55, 0
    %212 = vmatprep.subr.mxu0 0.0
    %213 = vmatpush1.msra.mxu0 %v106
    %214 = vmatprep.subr.mxu0 0.0
    %215 = vmatpush1.msra.mxu0 %v107
    %216 = vmatprep.subr.mxu0 0.0
    %217 = vmatpush1.msra.mxu0 %v108
    %218 = vmatprep.subr.mxu0 0.0
    %219 = vmatpush1.msra.mxu0 %v109
    %220 = vmatprep.subr.mxu0 0.0
    %221 = vmatpush1.msra.mxu0 0.0
    %222 = vmatprep.subr.mxu0 0.0
    %223 = vmatpush1.msra.mxu0 0.0
    %224 = vmatprep.subr.mxu0 0.0
    %225 = vmatpush1.msra.mxu0 0.0
    %226 = vmatprep.subr.mxu0 0.0
    %227 = vmatpush1.msra.mxu0 0.0
    %228 = vmatprep.subr.mxu0 0.0
    %229 = vmatpush1.msra.mxu0 0.0
    %230 = vmatprep.subr.mxu0 0.0
    %231 = vmatpush1.msra.mxu0 0.0
    %232 = vmatprep.subr.mxu0 0.0
    %233 = vmatpush1.msra.mxu0 0.0
    %234 = vmatprep.subr.mxu0 0.0
    %235 = vmatpush1.msra.mxu0 0.0
    %236 = vmatprep.subr.mxu0 0.0
    %237 = vmatpush1.msra.mxu0 0.0
    %238 = vmatprep.subr.mxu0 0.0
    %239 = vmatpush1.msra.mxu0 0.0
    %240 = vmatprep.subr.mxu0 0.0
    %241 = vmatpush1.msra.mxu0 0.0
    %242 = vmatprep.subr.mxu0 0.0
    %243 = vmatpush1.msra.mxu0 0.0
    %244 = vmatprep.subr.mxu0 0.0
    %245 = vmatpush1.msra.mxu0 0.0
    %246 = vmatprep.subr.mxu0 0.0
    %247 = vmatpush1.msra.mxu0 0.0
    %248 = vmatprep.subr.mxu0 0.0
    %249 = vmatpush1.msra.mxu0 0.0
    %250 = vmatprep.subr.mxu0 0.0
    %251 = vmatpush1.msra.mxu0 0.0
    %252 = vmatprep.subr.mxu0 0.0
    %253 = vmatpush1.msra.mxu0 0.0
    %254 = vmatprep.subr.mxu0 0.0
    %255 = vmatpush1.msra.mxu0 0.0
    %256 = vmatprep.subr.mxu0 0.0
    %257 = vmatpush1.msra.mxu0 0.0
    %258 = vmatprep.subr.mxu0 0.0
    %259 = vmatpush1.msra.mxu0 0.0
    %260 = vmatprep.subr.mxu0 0.0
    %261 = vmatpush1.msra.mxu0 0.0
    %262 = vmatprep.subr.mxu0 0.0
    %263 = vmatpush1.msra.mxu0 0.0
    %264 = vmatprep.subr.mxu0 0.0
    %265 = vmatpush1.msra.mxu0 0.0
    %266 = vmatprep.subr.mxu0 0.0
    %267 = vmatpush1.msra.mxu0 0.0
    %268 = vmatprep.subr.mxu0 0.0
    %269 = vmatpush1.msra.mxu0 0.0
    %270 = vmatprep.subr.mxu0 0.0
    %271 = vmatpush1.msra.mxu0 0.0
    %272 = vmatprep.subr.mxu0 0.0
    %273 = vmatpush1.msra.mxu0 0.0
    %274 = vmatprep.subr.mxu0 0.0
    %275 = vmatpush1.msra.mxu0 0.0
    %276 = vmatprep.mubr.f32.mxu0 0.0
    %277 = vmatmul.mubr.f32.gmra.mrb[0].mxu0 %v210
    %v278 = vpop.f32.mrb[0].mxu0
    %v279 = vadd.f32 0.0, %v278
    %v280 = vpop.f32.mrb[0].mxu0
    %281 = vdwg.mxu0
    %282 = vmatprep.subr.mxu0 0.0
    %283 = vmatpush1.msra.mxu0 %v58
    %284 = vmatprep.subr.mxu0 0.0
    %285 = vmatpush1.msra.mxu0 %v59
    %286 = vmatprep.subr.mxu0 0.0
    %287 = vmatpush1.msra.mxu0 %v60
    %288 = vmatprep.subr.mxu0 0.0
    %289 = vmatpush1.msra.mxu0 %v61
    %290 = vmatprep.subr.mxu0 0.0
    %291 = vmatpush1.msra.mxu0 %v62
    %292 = vmatprep.subr.mxu0 0.0
    %293 = vmatpush1.msra.mxu0 %v63
    %294 = vmatprep.subr.mxu0 0.0
    %295 = vmatpush1.msra.mxu0 %v64
    %296 = vmatprep.subr.mxu0 0.0
    %297 = vmatpush1.msra.mxu0 %v65
    %298 = vmatprep.subr.mxu0 0.0
    %299 = vmatpush1.msra.mxu0 %v66
    %300 = vmatprep.subr.mxu0 0.0
    %301 = vmatpush1.msra.mxu0 %v67
    %302 = vmatprep.subr.mxu0 0.0
    %303 = vmatpush1.msra.mxu0 %v68
    %304 = vmatprep.subr.mxu0 0.0
    %305 = vmatpush1.msra.mxu0 %v69
    %306 = vmatprep.subr.mxu0 0.0
    %307 = vmatpush1.msra.mxu0 %v70
    %308 = vmatprep.subr.mxu0 0.0
    %309 = vmatpush1.msra.mxu0 %v71
    %310 = vmatprep.subr.mxu0 0.0
    %311 = vmatpush1.msra.mxu0 %v72
    %312 = vmatprep.subr.mxu0 0.0
    %313 = vmatpush1.msra.mxu0 %v73
    %314 = vmatprep.subr.mxu0 0.0
    %315 = vmatpush1.msra.mxu0 0.0
    %316 = vmatprep.subr.mxu0 0.0
    %317 = vmatpush1.msra.mxu0 0.0
    %318 = vmatprep.subr.mxu0 0.0
    %319 = vmatpush1.msra.mxu0 0.0
    %320 = vmatprep.subr.mxu0 0.0
    %321 = vmatpush1.msra.mxu0 0.0
    %322 = vmatprep.subr.mxu0 0.0
    %323 = vmatpush1.msra.mxu0 0.0
    %324 = vmatprep.subr.mxu0 0.0
    %325 = vmatpush1.msra.mxu0 0.0
    %326 = vmatprep.subr.mxu0 0.0
    %327 = vmatpush1.msra.mxu0 0.0
    %328 = vmatprep.subr.mxu0 0.0
    %329 = vmatpush1.msra.mxu0 0.0
    %330 = vmatprep.subr.mxu0 0.0
    %331 = vmatpush1.msra.mxu0 0.0
    %332 = vmatprep.subr.mxu0 0.0
    %333 = vmatpush1.msra.mxu0 0.0
    %334 = vmatprep.subr.mxu0 0.0
    %335 = vmatpush1.msra.mxu0 0.0
    %336 = vmatprep.subr.mxu0 0.0
    %337 = vmatpush1.msra.mxu0 0.0
    %338 = vmatprep.subr.mxu0 0.0
    %339 = vmatpush1.msra.mxu0 0.0
    %340 = vmatprep.subr.mxu0 0.0
    %341 = vmatpush1.msra.mxu0 0.0
    %342 = vmatprep.subr.mxu0 0.0
    %343 = vmatpush1.msra.mxu0 0.0
    %344 = vmatprep.subr.mxu0 0.0
    %345 = vmatpush1.msra.mxu0 0.0
    %346 = vmatprep.mubr.f32.mxu0 0.0
    %347 = vmatmul.mubr.f32.gmra.mrb[0].mxu0 %v207
    %v348 = vpop.f32.mrb[0].mxu0
    %v349 = vadd.f32 %v279, %v348
    %v350 = vpop.f32.mrb[0].mxu0
    %351 = vdwg.mxu0
    %v353 = vlaneseq
    %v354 = vshrl.u32 %v353, 7
    %v355 = vsub.s32 0, %v354
    %v356 = vrot.slane %v118, %v355
    %v358 = vadd.f32 %v349, %v356
    %v359 = vxor.u32 %v358, 2147483648
    %v360 = vmul.f32 %v359, 1.442695
    %v361 = vpow.pop %v360
    %v362 = vadd.f32 %v361, 1.0
    %v363 = vrcp.pop %v362
    %v364 = vmul.f32 1.0, %v363
    %365 = vmatprep.subr.mxu0 0.0
    %366 = vmatpush1.msra.mxu0 %v110
    %367 = vmatprep.subr.mxu0 0.0
    %368 = vmatpush1.msra.mxu0 %v111
    %369 = vmatprep.subr.mxu0 0.0
    %370 = vmatpush1.msra.mxu0 %v112
    %371 = vmatprep.subr.mxu0 0.0
    %372 = vmatpush1.msra.mxu0 %v113
    %373 = vmatprep.subr.mxu0 0.0
    %374 = vmatpush1.msra.mxu0 0.0
    %375 = vmatprep.subr.mxu0 0.0
    %376 = vmatpush1.msra.mxu0 0.0
    %377 = vmatprep.subr.mxu0 0.0
    %378 = vmatpush1.msra.mxu0 0.0
    %379 = vmatprep.subr.mxu0 0.0
    %380 = vmatpush1.msra.mxu0 0.0
    %381 = vmatprep.subr.mxu0 0.0
    %382 = vmatpush1.msra.mxu0 0.0
    %383 = vmatprep.subr.mxu0 0.0
    %384 = vmatpush1.msra.mxu0 0.0
    %385 = vmatprep.subr.mxu0 0.0
    %386 = vmatpush1.msra.mxu0 0.0
    %387 = vmatprep.subr.mxu0 0.0
    %388 = vmatpush1.msra.mxu0 0.0
    %389 = vmatprep.subr.mxu0 0.0
    %390 = vmatpush1.msra.mxu0 0.0
    %391 = vmatprep.subr.mxu0 0.0
    %392 = vmatpush1.msra.mxu0 0.0
    %393 = vmatprep.subr.mxu0 0.0
    %394 = vmatpush1.msra.mxu0 0.0
    %395 = vmatprep.subr.mxu0 0.0
    %396 = vmatpush1.msra.mxu0 0.0
    %397 = vmatprep.subr.mxu0 0.0
    %398 = vmatpush1.msra.mxu0 0.0
    %399 = vmatprep.subr.mxu0 0.0
    %400 = vmatpush1.msra.mxu0 0.0
    %401 = vmatprep.subr.mxu0 0.0
    %402 = vmatpush1.msra.mxu0 0.0
    %403 = vmatprep.subr.mxu0 0.0
    %404 = vmatpush1.msra.mxu0 0.0
    %405 = vmatprep.subr.mxu0 0.0
    %406 = vmatpush1.msra.mxu0 0.0
    %407 = vmatprep.subr.mxu0 0.0
    %408 = vmatpush1.msra.mxu0 0.0
    %409 = vmatprep.subr.mxu0 0.0
    %410 = vmatpush1.msra.mxu0 0.0
    %411 = vmatprep.subr.mxu0 0.0
    %412 = vmatpush1.msra.mxu0 0.0
    %413 = vmatprep.subr.mxu0 0.0
    %414 = vmatpush1.msra.mxu0 0.0
    %415 = vmatprep.subr.mxu0 0.0
    %416 = vmatpush1.msra.mxu0 0.0
    %417 = vmatprep.subr.mxu0 0.0
    %418 = vmatpush1.msra.mxu0 0.0
    %419 = vmatprep.subr.mxu0 0.0
    %420 = vmatpush1.msra.mxu0 0.0
    %421 = vmatprep.subr.mxu0 0.0
    %422 = vmatpush1.msra.mxu0 0.0
    %423 = vmatprep.subr.mxu0 0.0
    %424 = vmatpush1.msra.mxu0 0.0
    %425 = vmatprep.subr.mxu0 0.0
    %426 = vmatpush1.msra.mxu0 0.0
    %427 = vmatprep.subr.mxu0 0.0
    %428 = vmatpush1.msra.mxu0 0.0
    %429 = vmatprep.mubr.f32.mxu0 0.0
    %430 = vmatmul.mubr.f32.gmra.mrb[0].mxu0 %v210
    %v431 = vpop.f32.mrb[0].mxu0
    %v432 = vadd.f32 0.0, %v431
    %v433 = vpop.f32.mrb[0].mxu0
    %434 = vdwg.mxu0
    %435 = vmatprep.subr.mxu0 0.0
    %436 = vmatpush1.msra.mxu0 %v74
    %437 = vmatprep.subr.mxu0 0.0
    %438 = vmatpush1.msra.mxu0 %v75
    %439 = vmatprep.subr.mxu0 0.0
    %440 = vmatpush1.msra.mxu0 %v76
    %441 = vmatprep.subr.mxu0 0.0
    %442 = vmatpush1.msra.mxu0 %v77
    %443 = vmatprep.subr.mxu0 0.0
    %444 = vmatpush1.msra.mxu0 %v78
    %445 = vmatprep.subr.mxu0 0.0
    %446 = vmatpush1.msra.mxu0 %v79
    %447 = vmatprep.subr.mxu0 0.0
    %448 = vmatpush1.msra.mxu0 %v80
    %449 = vmatprep.subr.mxu0 0.0
    %450 = vmatpush1.msra.mxu0 %v81
    %451 = vmatprep.subr.mxu0 0.0
    %452 = vmatpush1.msra.mxu0 %v82
    %453 = vmatprep.subr.mxu0 0.0
    %454 = vmatpush1.msra.mxu0 %v83
    %455 = vmatprep.subr.mxu0 0.0
    %456 = vmatpush1.msra.mxu0 %v84
    %457 = vmatprep.subr.mxu0 0.0
    %458 = vmatpush1.msra.mxu0 %v85
    %459 = vmatprep.subr.mxu0 0.0
    %460 = vmatpush1.msra.mxu0 %v86
    %461 = vmatprep.subr.mxu0 0.0
    %462 = vmatpush1.msra.mxu0 %v87
    %463 = vmatprep.subr.mxu0 0.0
    %464 = vmatpush1.msra.mxu0 %v88
    %465 = vmatprep.subr.mxu0 0.0
    %466 = vmatpush1.msra.mxu0 %v89
    %467 = vmatprep.subr.mxu0 0.0
    %468 = vmatpush1.msra.mxu0 0.0
    %469 = vmatprep.subr.mxu0 0.0
    %470 = vmatpush1.msra.mxu0 0.0
    %471 = vmatprep.subr.mxu0 0.0
    %472 = vmatpush1.msra.mxu0 0.0
    %473 = vmatprep.subr.mxu0 0.0
    %474 = vmatpush1.msra.mxu0 0.0
    %475 = vmatprep.subr.mxu0 0.0
    %476 = vmatpush1.msra.mxu0 0.0
    %477 = vmatprep.subr.mxu0 0.0
    %478 = vmatpush1.msra.mxu0 0.0
    %479 = vmatprep.subr.mxu0 0.0
    %480 = vmatpush1.msra.mxu0 0.0
    %481 = vmatprep.subr.mxu0 0.0
    %482 = vmatpush1.msra.mxu0 0.0
    %483 = vmatprep.subr.mxu0 0.0
    %484 = vmatpush1.msra.mxu0 0.0
    %485 = vmatprep.subr.mxu0 0.0
    %486 = vmatpush1.msra.mxu0 0.0
    %487 = vmatprep.subr.mxu0 0.0
    %488 = vmatpush1.msra.mxu0 0.0
    %489 = vmatprep.subr.mxu0 0.0
    %490 = vmatpush1.msra.mxu0 0.0
    %491 = vmatprep.subr.mxu0 0.0
    %492 = vmatpush1.msra.mxu0 0.0
    %493 = vmatprep.subr.mxu0 0.0
    %494 = vmatpush1.msra.mxu0 0.0
    %495 = vmatprep.subr.mxu0 0.0
    %496 = vmatpush1.msra.mxu0 0.0
    %497 = vmatprep.subr.mxu0 0.0
    %498 = vmatpush1.msra.mxu0 0.0
    %499 = vmatprep.mubr.f32.mxu0 0.0
    %500 = vmatmul.mubr.f32.gmra.mrb[0].mxu0 %v207
    %v501 = vpop.f32.mrb[0].mxu0
    %v502 = vadd.f32 %v432, %v501
    %v503 = vpop.f32.mrb[0].mxu0
    %504 = vdwg.mxu0
    %v506 = vlaneseq
    %v507 = vshrl.u32 %v506, 7
    %v508 = vsub.s32 0, %v507
    %v509 = vrot.slane %v119, %v508
    %v511 = vadd.f32 %v502, %v509
    %v512 = vxor.u32 %v511, 2147483648
    %v513 = vmul.f32 %v512, 1.442695
    %v514 = vpow.pop %v513
    %v515 = vadd.f32 %v514, 1.0
    %v516 = vrcp.pop %v515
    %v517 = vmul.f32 1.0, %v516
    %v519 = vlaneseq
    %v520 = vshrl.u32 %v519, 7
    %v521 = vsub.s32 0, %v520
    %v522 = vrot.slane %v120, %v521
    %524 = vmatprep.subr.mxu0 0.0
    %525 = vmatpush1.msra.mxu0 %v90
    %526 = vmatprep.subr.mxu0 0.0
    %527 = vmatpush1.msra.mxu0 %v91
    %528 = vmatprep.subr.mxu0 0.0
    %529 = vmatpush1.msra.mxu0 %v92
    %530 = vmatprep.subr.mxu0 0.0
    %531 = vmatpush1.msra.mxu0 %v93
    %532 = vmatprep.subr.mxu0 0.0
    %533 = vmatpush1.msra.mxu0 %v94
    %534 = vmatprep.subr.mxu0 0.0
    %535 = vmatpush1.msra.mxu0 %v95
    %536 = vmatprep.subr.mxu0 0.0
    %537 = vmatpush1.msra.mxu0 %v96
    %538 = vmatprep.subr.mxu0 0.0
    %539 = vmatpush1.msra.mxu0 %v97
    %540 = vmatprep.subr.mxu0 0.0
    %541 = vmatpush1.msra.mxu0 %v98
    %542 = vmatprep.subr.mxu0 0.0
    %543 = vmatpush1.msra.mxu0 %v99
    %544 = vmatprep.subr.mxu0 0.0
    %545 = vmatpush1.msra.mxu0 %v100
    %546 = vmatprep.subr.mxu0 0.0
    %547 = vmatpush1.msra.mxu0 %v101
    %548 = vmatprep.subr.mxu0 0.0
    %549 = vmatpush1.msra.mxu0 %v102
    %550 = vmatprep.subr.mxu0 0.0
    %551 = vmatpush1.msra.mxu0 %v103
    %552 = vmatprep.subr.mxu0 0.0
    %553 = vmatpush1.msra.mxu0 %v104
    %554 = vmatprep.subr.mxu0 0.0
    %555 = vmatpush1.msra.mxu0 %v105
    %556 = vmatprep.subr.mxu0 0.0
    %557 = vmatpush1.msra.mxu0 0.0
    %558 = vmatprep.subr.mxu0 0.0
    %559 = vmatpush1.msra.mxu0 0.0
    %560 = vmatprep.subr.mxu0 0.0
    %561 = vmatpush1.msra.mxu0 0.0
    %562 = vmatprep.subr.mxu0 0.0
    %563 = vmatpush1.msra.mxu0 0.0
    %564 = vmatprep.subr.mxu0 0.0
    %565 = vmatpush1.msra.mxu0 0.0
    %566 = vmatprep.subr.mxu0 0.0
    %567 = vmatpush1.msra.mxu0 0.0
    %568 = vmatprep.subr.mxu0 0.0
    %569 = vmatpush1.msra.mxu0 0.0
    %570 = vmatprep.subr.mxu0 0.0
    %571 = vmatpush1.msra.mxu0 0.0
    %572 = vmatprep.subr.mxu0 0.0
    %573 = vmatpush1.msra.mxu0 0.0
    %574 = vmatprep.subr.mxu0 0.0
    %575 = vmatpush1.msra.mxu0 0.0
    %576 = vmatprep.subr.mxu0 0.0
    %577 = vmatpush1.msra.mxu0 0.0
    %578 = vmatprep.subr.mxu0 0.0
    %579 = vmatpush1.msra.mxu0 0.0
    %580 = vmatprep.subr.mxu0 0.0
    %581 = vmatpush1.msra.mxu0 0.0
    %582 = vmatprep.subr.mxu0 0.0
    %583 = vmatpush1.msra.mxu0 0.0
    %584 = vmatprep.subr.mxu0 0.0
    %585 = vmatpush1.msra.mxu0 0.0
    %586 = vmatprep.subr.mxu0 0.0
    %587 = vmatpush1.msra.mxu0 0.0
    %588 = vmatprep.mubr.f32.mxu0 0.0
    %589 = vmatmul.mubr.f32.gmra.mrb[0].mxu0 %v207
    %v590 = vpop.f32.mrb[0].mxu0
    %v591 = vadd.f32 %v522, %v590
    %v592 = vpop.f32.mrb[0].mxu0
    %593 = vdwg.mxu0
    %v595 = vlaneseq
    %v596 = vshrl.u32 %v595, 7
    %v597 = vsub.s32 0, %v596
    %v598 = vrot.slane %v121, %v597
    %600 = vmatprep.subr.mxu0 0.0
    %601 = vmatpush1.msra.mxu0 %v114
    %602 = vmatprep.subr.mxu0 0.0
    %603 = vmatpush1.msra.mxu0 %v115
    %604 = vmatprep.subr.mxu0 0.0
    %605 = vmatpush1.msra.mxu0 %v116
    %606 = vmatprep.subr.mxu0 0.0
    %607 = vmatpush1.msra.mxu0 %v117
    %608 = vmatprep.subr.mxu0 0.0
    %609 = vmatpush1.msra.mxu0 0.0
    %610 = vmatprep.subr.mxu0 0.0
    %611 = vmatpush1.msra.mxu0 0.0
    %612 = vmatprep.subr.mxu0 0.0
    %613 = vmatpush1.msra.mxu0 0.0
    %614 = vmatprep.subr.mxu0 0.0
    %615 = vmatpush1.msra.mxu0 0.0
    %616 = vmatprep.subr.mxu0 0.0
    %617 = vmatpush1.msra.mxu0 0.0
    %618 = vmatprep.subr.mxu0 0.0
    %619 = vmatpush1.msra.mxu0 0.0
    %620 = vmatprep.subr.mxu0 0.0
    %621 = vmatpush1.msra.mxu0 0.0
    %622 = vmatprep.subr.mxu0 0.0
    %623 = vmatpush1.msra.mxu0 0.0
    %624 = vmatprep.subr.mxu0 0.0
    %625 = vmatpush1.msra.mxu0 0.0
    %626 = vmatprep.subr.mxu0 0.0
    %627 = vmatpush1.msra.mxu0 0.0
    %628 = vmatprep.subr.mxu0 0.0
    %629 = vmatpush1.msra.mxu0 0.0
    %630 = vmatprep.subr.mxu0 0.0
    %631 = vmatpush1.msra.mxu0 0.0
    %632 = vmatprep.subr.mxu0 0.0
    %633 = vmatpush1.msra.mxu0 0.0
    %634 = vmatprep.subr.mxu0 0.0
    %635 = vmatpush1.msra.mxu0 0.0
    %636 = vmatprep.subr.mxu0 0.0
    %637 = vmatpush1.msra.mxu0 0.0
    %638 = vmatprep.subr.mxu0 0.0
    %639 = vmatpush1.msra.mxu0 0.0
    %640 = vmatprep.subr.mxu0 0.0
    %641 = vmatpush1.msra.mxu0 0.0
    %642 = vmatprep.subr.mxu0 0.0
    %643 = vmatpush1.msra.mxu0 0.0
    %644 = vmatprep.subr.mxu0 0.0
    %645 = vmatpush1.msra.mxu0 0.0
    %646 = vmatprep.subr.mxu0 0.0
    %647 = vmatpush1.msra.mxu0 0.0
    %648 = vmatprep.subr.mxu0 0.0
    %649 = vmatpush1.msra.mxu0 0.0
    %650 = vmatprep.subr.mxu0 0.0
    %651 = vmatpush1.msra.mxu0 0.0
    %652 = vmatprep.subr.mxu0 0.0
    %653 = vmatpush1.msra.mxu0 0.0
    %654 = vmatprep.subr.mxu0 0.0
    %655 = vmatpush1.msra.mxu0 0.0
    %656 = vmatprep.subr.mxu0 0.0
    %657 = vmatpush1.msra.mxu0 0.0
    %658 = vmatprep.subr.mxu0 0.0
    %659 = vmatpush1.msra.mxu0 0.0
    %660 = vmatprep.subr.mxu0 0.0
    %661 = vmatpush1.msra.mxu0 0.0
    %662 = vmatprep.subr.mxu0 0.0
    %663 = vmatpush1.msra.mxu0 0.0
    %664 = vmatprep.mubr.f32.mxu0 0.0
    %665 = vmatmul.mubr.f32.gmra.mrb[0].mxu0 %v210
    %v666 = vpop.f32.mrb[0].mxu0
    %v667 = vadd.f32 %v598, %v666
    %v668 = vpop.f32.mrb[0].mxu0
    %669 = vdwg.mxu0
    %v670 = vmul.f32 %v364, %v667
    %v671 = vadd.f32 %v591, %v670
    %v672 = vtanh.pop %v671
    %v673 = vsub.f32 1.0, %v517
    %v674 = vmul.f32 %v673, %v672
    %v675 = vmul.f32 %v517, %v55
    %v676 = vadd.f32 %v674, %v675
    %v678 = vlaneseq
    %v679 = vshrl.u32 %v678, 7
    %v680 = vsub.s32 0, %v679
    %v681 = vrot.slane %v126, %v680
    %v684 = vsel %vm208, %v676, 0
    %686 = vmatprep.subr.mxu0 0.0
    %687 = vmatpush1.msra.mxu0 %v122
    %688 = vmatprep.subr.mxu0 0.0
    %689 = vmatpush1.msra.mxu0 %v123
    %690 = vmatprep.subr.mxu0 0.0
    %691 = vmatpush1.msra.mxu0 %v124
    %692 = vmatprep.subr.mxu0 0.0
    %693 = vmatpush1.msra.mxu0 %v125
    %694 = vmatprep.subr.mxu0 0.0
    %695 = vmatpush1.msra.mxu0 0.0
    %696 = vmatprep.subr.mxu0 0.0
    %697 = vmatpush1.msra.mxu0 0.0
    %698 = vmatprep.subr.mxu0 0.0
    %699 = vmatpush1.msra.mxu0 0.0
    %700 = vmatprep.subr.mxu0 0.0
    %701 = vmatpush1.msra.mxu0 0.0
    %702 = vmatprep.subr.mxu0 0.0
    %703 = vmatpush1.msra.mxu0 0.0
    %704 = vmatprep.subr.mxu0 0.0
    %705 = vmatpush1.msra.mxu0 0.0
    %706 = vmatprep.subr.mxu0 0.0
    %707 = vmatpush1.msra.mxu0 0.0
    %708 = vmatprep.subr.mxu0 0.0
    %709 = vmatpush1.msra.mxu0 0.0
    %710 = vmatprep.subr.mxu0 0.0
    %711 = vmatpush1.msra.mxu0 0.0
    %712 = vmatprep.subr.mxu0 0.0
    %713 = vmatpush1.msra.mxu0 0.0
    %714 = vmatprep.subr.mxu0 0.0
    %715 = vmatpush1.msra.mxu0 0.0
    %716 = vmatprep.subr.mxu0 0.0
    %717 = vmatpush1.msra.mxu0 0.0
    %718 = vmatprep.subr.mxu0 0.0
    %719 = vmatpush1.msra.mxu0 0.0
    %720 = vmatprep.subr.mxu0 0.0
    %721 = vmatpush1.msra.mxu0 0.0
    %722 = vmatprep.subr.mxu0 0.0
    %723 = vmatpush1.msra.mxu0 0.0
    %724 = vmatprep.subr.mxu0 0.0
    %725 = vmatpush1.msra.mxu0 0.0
    %726 = vmatprep.subr.mxu0 0.0
    %727 = vmatpush1.msra.mxu0 0.0
    %728 = vmatprep.subr.mxu0 0.0
    %729 = vmatpush1.msra.mxu0 0.0
    %730 = vmatprep.subr.mxu0 0.0
    %731 = vmatpush1.msra.mxu0 0.0
    %732 = vmatprep.subr.mxu0 0.0
    %733 = vmatpush1.msra.mxu0 0.0
    %734 = vmatprep.subr.mxu0 0.0
    %735 = vmatpush1.msra.mxu0 0.0
    %736 = vmatprep.subr.mxu0 0.0
    %737 = vmatpush1.msra.mxu0 0.0
    %738 = vmatprep.subr.mxu0 0.0
    %739 = vmatpush1.msra.mxu0 0.0
    %740 = vmatprep.subr.mxu0 0.0
    %741 = vmatpush1.msra.mxu0 0.0
    %742 = vmatprep.subr.mxu0 0.0
    %743 = vmatpush1.msra.mxu0 0.0
    %744 = vmatprep.subr.mxu0 0.0
    %745 = vmatpush1.msra.mxu0 0.0
    %746 = vmatprep.subr.mxu0 0.0
    %747 = vmatpush1.msra.mxu0 0.0
    %748 = vmatprep.subr.mxu0 0.0
    %749 = vmatpush1.msra.mxu0 0.0
    %750 = vmatprep.mubr.f32.mxu0 0.0
    %751 = vmatmul.mubr.f32.gmra.mrb[0].mxu0 %v684
    %v752 = vpop.f32.mrb[0].mxu0
    %v753 = vadd.f32 %v681, %v752
    %v754 = vpop.f32.mrb[0].mxu0
    %755 = vdwg.mxu0
    %v757 = vcombine.high %v753, %v753
    %v759 = vunpack.c.l.s4 1966171168
    %v760 = vunpack.c.0.s8 %v759
    %v761 = vlaneseq
    %v762 = vshrl.u32 %v761, 7
    %v763 = vsub.s32 %v760, %v762
    %v764 = vrot.slane %v753, %v763
    %v766 = vunpack.c.l.s4 1966171168
    %v767 = vunpack.c.0.s8 %v766
    %v768 = vlaneseq
    %v769 = vshrl.u32 %v768, 7
    %v770 = vsub.s32 %v767, %v769
    %v771 = vrot.slane %v757, %v770
    %v772 = vcombine.high %v764, %v764
    %v773 = vcombine.high %v771, %v771
    %v775 = vunpack.c.l.s4 1966171168
    %v776 = vunpack.c.0.s8 %v775
    %v777 = vlaneseq
    %v778 = vshrl.u32 %v777, 7
    %v779 = vsub.s32 %v776, %v778
    %v780 = vrot.slane %v764, %v779
    %v782 = vunpack.c.l.s4 1966171168
    %v783 = vunpack.c.0.s8 %v782
    %v784 = vlaneseq
    %v785 = vshrl.u32 %v784, 7
    %v786 = vsub.s32 %v783, %v785
    %v787 = vrot.slane %v771, %v786
    %v789 = vunpack.c.l.s4 1966171168
    %v790 = vunpack.c.0.s8 %v789
    %v791 = vlaneseq
    %v792 = vshrl.u32 %v791, 7
    %v793 = vsub.s32 %v790, %v792
    %v794 = vrot.slane %v772, %v793
    %v796 = vunpack.c.l.s4 1966171168
    %v797 = vunpack.c.0.s8 %v796
    %v798 = vlaneseq
    %v799 = vshrl.u32 %v798, 7
    %v800 = vsub.s32 %v797, %v799
    %v801 = vrot.slane %v773, %v800
    %v802 = vcombine.high %v780, %v780
    %v803 = vcombine.high %v787, %v787
    %v804 = vcombine.high %v794, %v794
    %v805 = vcombine.high %v801, %v801
    %vm814 = vcmask 57344
    %815 = vst.msk [vmem:[#allocation2] sm:$0x1] %vm814, %v780
    %816 = vst.msk [vmem:[#allocation2 + $0x4] sm:$0x1] %vm814, %v794
    %817 = vst.msk [vmem:[#allocation2 + $0x8] sm:$0x1] %vm814, %v802
    %818 = vst.msk [vmem:[#allocation2 + $0xc] sm:$0x1] %vm814, %v804
    %819 = vst.msk [vmem:[#allocation2 + $0x10] sm:$0x1] %vm814, %v787
    %820 = vst.msk [vmem:[#allocation2 + $0x14] sm:$0x1] %vm814, %v801
    %821 = vst.msk [vmem:[#allocation2 + $0x18] sm:$0x1] %vm814, %v803
    %822 = vst.msk [vmem:[#allocation2 + $0x1c] sm:$0x1] %vm814, %v805
    %v823 = vsel %vm133, %v753, 0
    %825 = vmatprep.subr.mxu0 0.0
    %826 = vmatpush1.msra.mxu0 %v56
    %827 = vmatprep.subr.mxu0 0.0
    %828 = vmatpush1.msra.mxu0 0.0
    %829 = vmatprep.subr.mxu0 0.0
    %830 = vmatpush1.msra.mxu0 0.0
    %831 = vmatprep.subr.mxu0 0.0
    %832 = vmatpush1.msra.mxu0 0.0
    %833 = vmatprep.subr.mxu0 0.0
    %834 = vmatpush1.msra.mxu0 0.0
    %835 = vmatprep.subr.mxu0 0.0
    %836 = vmatpush1.msra.mxu0 0.0
    %837 = vmatprep.subr.mxu0 0.0
    %838 = vmatpush1.msra.mxu0 0.0
    %839 = vmatprep.subr.mxu0 0.0
    %840 = vmatpush1.msra.mxu0 0.0
    %841 = vmatprep.subr.mxu0 0.0
    %842 = vmatpush1.msra.mxu0 0.0
    %843 = vmatprep.subr.mxu0 0.0
    %844 = vmatpush1.msra.mxu0 0.0
    %845 = vmatprep.subr.mxu0 0.0
    %846 = vmatpush1.msra.mxu0 0.0
    %847 = vmatprep.subr.mxu0 0.0
    %848 = vmatpush1.msra.mxu0 0.0
    %849 = vmatprep.subr.mxu0 0.0
    %850 = vmatpush1.msra.mxu0 0.0
    %851 = vmatprep.subr.mxu0 0.0
    %852 = vmatpush1.msra.mxu0 0.0
    %853 = vmatprep.subr.mxu0 0.0
    %854 = vmatpush1.msra.mxu0 0.0
    %855 = vmatprep.subr.mxu0 0.0
    %856 = vmatpush1.msra.mxu0 0.0
    %857 = vmatprep.subr.mxu0 0.0
    %858 = vmatpush1.msra.mxu0 0.0
    %859 = vmatprep.subr.mxu0 0.0
    %860 = vmatpush1.msra.mxu0 0.0
    %861 = vmatprep.subr.mxu0 0.0
    %862 = vmatpush1.msra.mxu0 0.0
    %863 = vmatprep.subr.mxu0 0.0
    %864 = vmatpush1.msra.mxu0 0.0
    %865 = vmatprep.subr.mxu0 0.0
    %866 = vmatpush1.msra.mxu0 0.0
    %867 = vmatprep.subr.mxu0 0.0
    %868 = vmatpush1.msra.mxu0 0.0
    %869 = vmatprep.subr.mxu0 0.0
    %870 = vmatpush1.msra.mxu0 0.0
    %871 = vmatprep.subr.mxu0 0.0
    %872 = vmatpush1.msra.mxu0 0.0
    %873 = vmatprep.subr.mxu0 0.0
    %874 = vmatpush1.msra.mxu0 0.0
    %875 = vmatprep.subr.mxu0 0.0
    %876 = vmatpush1.msra.mxu0 0.0
    %877 = vmatprep.subr.mxu0 0.0
    %878 = vmatpush1.msra.mxu0 0.0
    %879 = vmatprep.subr.mxu0 0.0
    %880 = vmatpush1.msra.mxu0 0.0
    %881 = vmatprep.subr.mxu0 0.0
    %882 = vmatpush1.msra.mxu0 0.0
    %883 = vmatprep.subr.mxu0 0.0
    %884 = vmatpush1.msra.mxu0 0.0
    %885 = vmatprep.subr.mxu0 0.0
    %886 = vmatpush1.msra.mxu0 0.0
    %887 = vmatprep.subr.mxu0 0.0
    %888 = vmatpush1.msra.mxu0 0.0
    %889 = vmatprep.mubr.f32.mxu0 0.0
    %890 = vmatmul.mubr.f32.gmra.mrb[0].mxu0 %v823
    %v891 = vpop.f32.mrb[0].mxu0
    %v892 = vadd.f32 %v131, %v891
    %v893 = vpop.f32.mrb[0].mxu0
    %894 = vdwg.mxu0
    %v895 = vmax.f32 %v892, 0.0
    %896 = vmatprep.subr.mxu0 0.0
    %897 = vmatpush1.msra.mxu0 %v106
    %898 = vmatprep.subr.mxu0 0.0
    %899 = vmatpush1.msra.mxu0 %v107
    %900 = vmatprep.subr.mxu0 0.0
    %901 = vmatpush1.msra.mxu0 %v108
    %902 = vmatprep.subr.mxu0 0.0
    %903 = vmatpush1.msra.mxu0 %v109
    %904 = vmatprep.subr.mxu0 0.0
    %905 = vmatpush1.msra.mxu0 0.0
    %906 = vmatprep.subr.mxu0 0.0
    %907 = vmatpush1.msra.mxu0 0.0
    %908 = vmatprep.subr.mxu0 0.0
    %909 = vmatpush1.msra.mxu0 0.0
    %910 = vmatprep.subr.mxu0 0.0
    %911 = vmatpush1.msra.mxu0 0.0
    %912 = vmatprep.subr.mxu0 0.0
    %913 = vmatpush1.msra.mxu0 0.0
    %914 = vmatprep.subr.mxu0 0.0
    %915 = vmatpush1.msra.mxu0 0.0
    %916 = vmatprep.subr.mxu0 0.0
    %917 = vmatpush1.msra.mxu0 0.0
    %918 = vmatprep.subr.mxu0 0.0
    %919 = vmatpush1.msra.mxu0 0.0
    %920 = vmatprep.subr.mxu0 0.0
    %921 = vmatpush1.msra.mxu0 0.0
    %922 = vmatprep.subr.mxu0 0.0
    %923 = vmatpush1.msra.mxu0 0.0
    %924 = vmatprep.subr.mxu0 0.0
    %925 = vmatpush1.msra.mxu0 0.0
    %926 = vmatprep.subr.mxu0 0.0
    %927 = vmatpush1.msra.mxu0 0.0
    %928 = vmatprep.subr.mxu0 0.0
    %929 = vmatpush1.msra.mxu0 0.0
    %930 = vmatprep.subr.mxu0 0.0
    %931 = vmatpush1.msra.mxu0 0.0
    %932 = vmatprep.subr.mxu0 0.0
    %933 = vmatpush1.msra.mxu0 0.0
    %934 = vmatprep.subr.mxu0 0.0
    %935 = vmatpush1.msra.mxu0 0.0
    %936 = vmatprep.subr.mxu0 0.0
    %937 = vmatpush1.msra.mxu0 0.0
    %938 = vmatprep.subr.mxu0 0.0
    %939 = vmatpush1.msra.mxu0 0.0
    %940 = vmatprep.subr.mxu0 0.0
    %941 = vmatpush1.msra.mxu0 0.0
    %942 = vmatprep.subr.mxu0 0.0
    %943 = vmatpush1.msra.mxu0 0.0
    %944 = vmatprep.subr.mxu0 0.0
    %945 = vmatpush1.msra.mxu0 0.0
    %946 = vmatprep.subr.mxu0 0.0
    %947 = vmatpush1.msra.mxu0 0.0
    %948 = vmatprep.subr.mxu0 0.0
    %949 = vmatpush1.msra.mxu0 0.0
    %950 = vmatprep.subr.mxu0 0.0
    %951 = vmatpush1.msra.mxu0 0.0
    %952 = vmatprep.subr.mxu0 0.0
    %953 = vmatpush1.msra.mxu0 0.0
    %954 = vmatprep.subr.mxu0 0.0
    %955 = vmatpush1.msra.mxu0 0.0
    %956 = vmatprep.subr.mxu0 0.0
    %957 = vmatpush1.msra.mxu0 0.0
    %958 = vmatprep.subr.mxu0 0.0
    %959 = vmatpush1.msra.mxu0 0.0
    %960 = vmatprep.mubr.f32.mxu0 0.0
    %961 = vmatmul.mubr.f32.gmra.mrb[0].mxu0 %v684
    %v962 = vpop.f32.mrb[0].mxu0
    %v963 = vadd.f32 0.0, %v962
    %v964 = vpop.f32.mrb[0].mxu0
    %965 = vdwg.mxu0
    %966 = vmatprep.subr.mxu0 0.0
    %967 = vmatpush1.msra.mxu0 %v58
    %968 = vmatprep.subr.mxu0 0.0
    %969 = vmatpush1.msra.mxu0 %v59
    %970 = vmatprep.subr.mxu0 0.0
    %971 = vmatpush1.msra.mxu0 %v60
    %972 = vmatprep.subr.mxu0 0.0
    %973 = vmatpush1.msra.mxu0 %v61
    %974 = vmatprep.subr.mxu0 0.0
    %975 = vmatpush1.msra.mxu0 %v62
    %976 = vmatprep.subr.mxu0 0.0
    %977 = vmatpush1.msra.mxu0 %v63
    %978 = vmatprep.subr.mxu0 0.0
    %979 = vmatpush1.msra.mxu0 %v64
    %980 = vmatprep.subr.mxu0 0.0
    %981 = vmatpush1.msra.mxu0 %v65
    %982 = vmatprep.subr.mxu0 0.0
    %983 = vmatpush1.msra.mxu0 %v66
    %984 = vmatprep.subr.mxu0 0.0
    %985 = vmatpush1.msra.mxu0 %v67
    %986 = vmatprep.subr.mxu0 0.0
    %987 = vmatpush1.msra.mxu0 %v68
    %988 = vmatprep.subr.mxu0 0.0
    %989 = vmatpush1.msra.mxu0 %v69
    %990 = vmatprep.subr.mxu0 0.0
    %991 = vmatpush1.msra.mxu0 %v70
    %992 = vmatprep.subr.mxu0 0.0
    %993 = vmatpush1.msra.mxu0 %v71
    %994 = vmatprep.subr.mxu0 0.0
    %995 = vmatpush1.msra.mxu0 %v72
    %996 = vmatprep.subr.mxu0 0.0
    %997 = vmatpush1.msra.mxu0 %v73
    %998 = vmatprep.subr.mxu0 0.0
    %999 = vmatpush1.msra.mxu0 0.0
    %1000 = vmatprep.subr.mxu0 0.0
    %1001 = vmatpush1.msra.mxu0 0.0
    %1002 = vmatprep.subr.mxu0 0.0
    %1003 = vmatpush1.msra.mxu0 0.0
    %1004 = vmatprep.subr.mxu0 0.0
    %1005 = vmatpush1.msra.mxu0 0.0
    %1006 = vmatprep.subr.mxu0 0.0
    %1007 = vmatpush1.msra.mxu0 0.0
    %1008 = vmatprep.subr.mxu0 0.0
    %1009 = vmatpush1.msra.mxu0 0.0
    %1010 = vmatprep.subr.mxu0 0.0
    %1011 = vmatpush1.msra.mxu0 0.0
    %1012 = vmatprep.subr.mxu0 0.0
    %1013 = vmatpush1.msra.mxu0 0.0
    %1014 = vmatprep.subr.mxu0 0.0
    %1015 = vmatpush1.msra.mxu0 0.0
    %1016 = vmatprep.subr.mxu0 0.0
    %1017 = vmatpush1.msra.mxu0 0.0
    %1018 = vmatprep.subr.mxu0 0.0
    %1019 = vmatpush1.msra.mxu0 0.0
    %1020 = vmatprep.subr.mxu0 0.0
    %1021 = vmatpush1.msra.mxu0 0.0
    %1022 = vmatprep.subr.mxu0 0.0
    %1023 = vmatpush1.msra.mxu0 0.0
    %1024 = vmatprep.subr.mxu0 0.0
    %1025 = vmatpush1.msra.mxu0 0.0
    %1026 = vmatprep.subr.mxu0 0.0
    %1027 = vmatpush1.msra.mxu0 0.0
    %1028 = vmatprep.subr.mxu0 0.0
    %1029 = vmatpush1.msra.mxu0 0.0
    %1030 = vmatprep.mubr.f32.mxu0 0.0
    %1031 = vmatmul.mubr.f32.gmra.mrb[0].mxu0 %v895
    %v1032 = vpop.f32.mrb[0].mxu0
    %v1033 = vadd.f32 %v963, %v1032
    %v1034 = vpop.f32.mrb[0].mxu0
    %1035 = vdwg.mxu0
    %v1036 = vadd.f32 %v1033, %v356
    %v1037 = vxor.u32 %v1036, 2147483648
    %v1038 = vmul.f32 %v1037, 1.442695
    %v1039 = vpow.pop %v1038
    %v1040 = vadd.f32 %v1039, 1.0
    %v1041 = vrcp.pop %v1040
    %v1042 = vmul.f32 1.0, %v1041
    %1043 = vmatprep.subr.mxu0 0.0
    %1044 = vmatpush1.msra.mxu0 %v110
    %1045 = vmatprep.subr.mxu0 0.0
    %1046 = vmatpush1.msra.mxu0 %v111
    %1047 = vmatprep.subr.mxu0 0.0
    %1048 = vmatpush1.msra.mxu0 %v112
    %1049 = vmatprep.subr.mxu0 0.0
    %1050 = vmatpush1.msra.mxu0 %v113
    %1051 = vmatprep.subr.mxu0 0.0
    %1052 = vmatpush1.msra.mxu0 0.0
    %1053 = vmatprep.subr.mxu0 0.0
    %1054 = vmatpush1.msra.mxu0 0.0
    %1055 = vmatprep.subr.mxu0 0.0
    %1056 = vmatpush1.msra.mxu0 0.0
    %1057 = vmatprep.subr.mxu0 0.0
    %1058 = vmatpush1.msra.mxu0 0.0
    %1059 = vmatprep.subr.mxu0 0.0
    %1060 = vmatpush1.msra.mxu0 0.0
    %1061 = vmatprep.subr.mxu0 0.0
    %1062 = vmatpush1.msra.mxu0 0.0
    %1063 = vmatprep.subr.mxu0 0.0
    %1064 = vmatpush1.msra.mxu0 0.0
    %1065 = vmatprep.subr.mxu0 0.0
    %1066 = vmatpush1.msra.mxu0 0.0
    %1067 = vmatprep.subr.mxu0 0.0
    %1068 = vmatpush1.msra.mxu0 0.0
    %1069 = vmatprep.subr.mxu0 0.0
    %1070 = vmatpush1.msra.mxu0 0.0
    %1071 = vmatprep.subr.mxu0 0.0
    %1072 = vmatpush1.msra.mxu0 0.0
    %1073 = vmatprep.subr.mxu0 0.0
    %1074 = vmatpush1.msra.mxu0 0.0
    %1075 = vmatprep.subr.mxu0 0.0
    %1076 = vmatpush1.msra.mxu0 0.0
    %1077 = vmatprep.subr.mxu0 0.0
    %1078 = vmatpush1.msra.mxu0 0.0
    %1079 = vmatprep.subr.mxu0 0.0
    %1080 = vmatpush1.msra.mxu0 0.0
    %1081 = vmatprep.subr.mxu0 0.0
    %1082 = vmatpush1.msra.mxu0 0.0
    %1083 = vmatprep.subr.mxu0 0.0
    %1084 = vmatpush1.msra.mxu0 0.0
    %1085 = vmatprep.subr.mxu0 0.0
    %1086 = vmatpush1.msra.mxu0 0.0
    %1087 = vmatprep.subr.mxu0 0.0
    %1088 = vmatpush1.msra.mxu0 0.0
    %1089 = vmatprep.subr.mxu0 0.0
    %1090 = vmatpush1.msra.mxu0 0.0
    %1091 = vmatprep.subr.mxu0 0.0
    %1092 = vmatpush1.msra.mxu0 0.0
    %1093 = vmatprep.subr.mxu0 0.0
    %1094 = vmatpush1.msra.mxu0 0.0
    %1095 = vmatprep.subr.mxu0 0.0
    %1096 = vmatpush1.msra.mxu0 0.0
    %1097 = vmatprep.subr.mxu0 0.0
    %1098 = vmatpush1.msra.mxu0 0.0
    %1099 = vmatprep.subr.mxu0 0.0
    %1100 = vmatpush1.msra.mxu0 0.0
    %1101 = vmatprep.subr.mxu0 0.0
    %1102 = vmatpush1.msra.mxu0 0.0
    %1103 = vmatprep.subr.mxu0 0.0
    %1104 = vmatpush1.msra.mxu0 0.0
    %1105 = vmatprep.subr.mxu0 0.0
    %1106 = vmatpush1.msra.mxu0 0.0
    %1107 = vmatprep.mubr.f32.mxu0 0.0
    %1108 = vmatmul.mubr.f32.gmra.mrb[0].mxu0 %v684
    %v1109 = vpop.f32.mrb[0].mxu0
    %v1110 = vadd.f32 0.0, %v1109
    %v1111 = vpop.f32.mrb[0].mxu0
    %1112 = vdwg.mxu0
    %1113 = vmatprep.subr.mxu0 0.0
    %1114 = vmatpush1.msra.mxu0 %v74
    %1115 = vmatprep.subr.mxu0 0.0
    %1116 = vmatpush1.msra.mxu0 %v75
    %1117 = vmatprep.subr.mxu0 0.0
    %1118 = vmatpush1.msra.mxu0 %v76
    %1119 = vmatprep.subr.mxu0 0.0
    %1120 = vmatpush1.msra.mxu0 %v77
    %1121 = vmatprep.subr.mxu0 0.0
    %1122 = vmatpush1.msra.mxu0 %v78
    %1123 = vmatprep.subr.mxu0 0.0
    %1124 = vmatpush1.msra.mxu0 %v79
    %1125 = vmatprep.subr.mxu0 0.0
    %1126 = vmatpush1.msra.mxu0 %v80
    %1127 = vmatprep.subr.mxu0 0.0
    %1128 = vmatpush1.msra.mxu0 %v81
    %1129 = vmatprep.subr.mxu0 0.0
    %1130 = vmatpush1.msra.mxu0 %v82
    %1131 = vmatprep.subr.mxu0 0.0
    %1132 = vmatpush1.msra.mxu0 %v83
    %1133 = vmatprep.subr.mxu0 0.0
    %1134 = vmatpush1.msra.mxu0 %v84
    %1135 = vmatprep.subr.mxu0 0.0
    %1136 = vmatpush1.msra.mxu0 %v85
    %1137 = vmatprep.subr.mxu0 0.0
    %1138 = vmatpush1.msra.mxu0 %v86
    %1139 = vmatprep.subr.mxu0 0.0
    %1140 = vmatpush1.msra.mxu0 %v87
    %1141 = vmatprep.subr.mxu0 0.0
    %1142 = vmatpush1.msra.mxu0 %v88
    %1143 = vmatprep.subr.mxu0 0.0
    %1144 = vmatpush1.msra.mxu0 %v89
    %1145 = vmatprep.subr.mxu0 0.0
    %1146 = vmatpush1.msra.mxu0 0.0
    %1147 = vmatprep.subr.mxu0 0.0
    %1148 = vmatpush1.msra.mxu0 0.0
    %1149 = vmatprep.subr.mxu0 0.0
    %1150 = vmatpush1.msra.mxu0 0.0
    %1151 = vmatprep.subr.mxu0 0.0
    %1152 = vmatpush1.msra.mxu0 0.0
    %1153 = vmatprep.subr.mxu0 0.0
    %1154 = vmatpush1.msra.mxu0 0.0
    %1155 = vmatprep.subr.mxu0 0.0
    %1156 = vmatpush1.msra.mxu0 0.0
    %1157 = vmatprep.subr.mxu0 0.0
    %1158 = vmatpush1.msra.mxu0 0.0
    %1159 = vmatprep.subr.mxu0 0.0
    %1160 = vmatpush1.msra.mxu0 0.0
    %1161 = vmatprep.subr.mxu0 0.0
    %1162 = vmatpush1.msra.mxu0 0.0
    %1163 = vmatprep.subr.mxu0 0.0
    %1164 = vmatpush1.msra.mxu0 0.0
    %1165 = vmatprep.subr.mxu0 0.0
    %1166 = vmatpush1.msra.mxu0 0.0
    %1167 = vmatprep.subr.mxu0 0.0
    %1168 = vmatpush1.msra.mxu0 0.0
    %1169 = vmatprep.subr.mxu0 0.0
    %1170 = vmatpush1.msra.mxu0 0.0
    %1171 = vmatprep.subr.mxu0 0.0
    %1172 = vmatpush1.msra.mxu0 0.0
    %1173 = vmatprep.subr.mxu0 0.0
    %1174 = vmatpush1.msra.mxu0 0.0
    %1175 = vmatprep.subr.mxu0 0.0
    %1176 = vmatpush1.msra.mxu0 0.0
    %1177 = vmatprep.mubr.f32.mxu0 0.0
    %1178 = vmatmul.mubr.f32.gmra.mrb[0].mxu0 %v895
    %v1179 = vpop.f32.mrb[0].mxu0
    %v1180 = vadd.f32 %v1110, %v1179
    %v1181 = vpop.f32.mrb[0].mxu0
    %1182 = vdwg.mxu0
    %v1183 = vadd.f32 %v1180, %v509
    %v1184 = vxor.u32 %v1183, 2147483648
    %v1185 = vmul.f32 %v1184, 1.442695
    %v1186 = vpow.pop %v1185
    %v1187 = vadd.f32 %v1186, 1.0
    %v1188 = vrcp.pop %v1187
    %v1189 = vmul.f32 1.0, %v1188
    %1190 = vmatprep.subr.mxu0 0.0
    %1191 = vmatpush1.msra.mxu0 %v90
    %1192 = vmatprep.subr.mxu0 0.0
    %1193 = vmatpush1.msra.mxu0 %v91
    %1194 = vmatprep.subr.mxu0 0.0
    %1195 = vmatpush1.msra.mxu0 %v92
    %1196 = vmatprep.subr.mxu0 0.0
    %1197 = vmatpush1.msra.mxu0 %v93
    %1198 = vmatprep.subr.mxu0 0.0
    %1199 = vmatpush1.msra.mxu0 %v94
    %1200 = vmatprep.subr.mxu0 0.0
    %1201 = vmatpush1.msra.mxu0 %v95
    %1202 = vmatprep.subr.mxu0 0.0
    %1203 = vmatpush1.msra.mxu0 %v96
    %1204 = vmatprep.subr.mxu0 0.0
    %1205 = vmatpush1.msra.mxu0 %v97
    %1206 = vmatprep.subr.mxu0 0.0
    %1207 = vmatpush1.msra.mxu0 %v98
    %1208 = vmatprep.subr.mxu0 0.0
    %1209 = vmatpush1.msra.mxu0 %v99
    %1210 = vmatprep.subr.mxu0 0.0
    %1211 = vmatpush1.msra.mxu0 %v100
    %1212 = vmatprep.subr.mxu0 0.0
    %1213 = vmatpush1.msra.mxu0 %v101
    %1214 = vmatprep.subr.mxu0 0.0
    %1215 = vmatpush1.msra.mxu0 %v102
    %1216 = vmatprep.subr.mxu0 0.0
    %1217 = vmatpush1.msra.mxu0 %v103
    %1218 = vmatprep.subr.mxu0 0.0
    %1219 = vmatpush1.msra.mxu0 %v104
    %1220 = vmatprep.subr.mxu0 0.0
    %1221 = vmatpush1.msra.mxu0 %v105
    %1222 = vmatprep.subr.mxu0 0.0
    %1223 = vmatpush1.msra.mxu0 0.0
    %1224 = vmatprep.subr.mxu0 0.0
    %1225 = vmatpush1.msra.mxu0 0.0
    %1226 = vmatprep.subr.mxu0 0.0
    %1227 = vmatpush1.msra.mxu0 0.0
    %1228 = vmatprep.subr.mxu0 0.0
    %1229 = vmatpush1.msra.mxu0 0.0
    %1230 = vmatprep.subr.mxu0 0.0
    %1231 = vmatpush1.msra.mxu0 0.0
    %1232 = vmatprep.subr.mxu0 0.0
    %1233 = vmatpush1.msra.mxu0 0.0
    %1234 = vmatprep.subr.mxu0 0.0
    %1235 = vmatpush1.msra.mxu0 0.0
    %1236 = vmatprep.subr.mxu0 0.0
    %1237 = vmatpush1.msra.mxu0 0.0
    %1238 = vmatprep.subr.mxu0 0.0
    %1239 = vmatpush1.msra.mxu0 0.0
    %1240 = vmatprep.subr.mxu0 0.0
    %1241 = vmatpush1.msra.mxu0 0.0
    %1242 = vmatprep.subr.mxu0 0.0
    %1243 = vmatpush1.msra.mxu0 0.0
    %1244 = vmatprep.subr.mxu0 0.0
    %1245 = vmatpush1.msra.mxu0 0.0
    %1246 = vmatprep.subr.mxu0 0.0
    %1247 = vmatpush1.msra.mxu0 0.0
    %1248 = vmatprep.subr.mxu0 0.0
    %1249 = vmatpush1.msra.mxu0 0.0
    %1250 = vmatprep.subr.mxu0 0.0
    %1251 = vmatpush1.msra.mxu0 0.0
    %1252 = vmatprep.subr.mxu0 0.0
    %1253 = vmatpush1.msra.mxu0 0.0
    %1254 = vmatprep.mubr.f32.mxu0 0.0
    %1255 = vmatmul.mubr.f32.gmra.mrb[0].mxu0 %v895
    %v1256 = vpop.f32.mrb[0].mxu0
    %v1257 = vadd.f32 %v522, %v1256
    %v1258 = vpop.f32.mrb[0].mxu0
    %1259 = vdwg.mxu0
    %1260 = vmatprep.subr.mxu0 0.0
    %1261 = vmatpush1.msra.mxu0 %v114
    %1262 = vmatprep.subr.mxu0 0.0
    %1263 = vmatpush1.msra.mxu0 %v115
    %1264 = vmatprep.subr.mxu0 0.0
    %1265 = vmatpush1.msra.mxu0 %v116
    %1266 = vmatprep.subr.mxu0 0.0
    %1267 = vmatpush1.msra.mxu0 %v117
    %1268 = vmatprep.subr.mxu0 0.0
    %1269 = vmatpush1.msra.mxu0 0.0
    %1270 = vmatprep.subr.mxu0 0.0
    %1271 = vmatpush1.msra.mxu0 0.0
    %1272 = vmatprep.subr.mxu0 0.0
    %1273 = vmatpush1.msra.mxu0 0.0
    %1274 = vmatprep.subr.mxu0 0.0
    %1275 = vmatpush1.msra.mxu0 0.0
    %1276 = vmatprep.subr.mxu0 0.0
    %1277 = vmatpush1.msra.mxu0 0.0
    %1278 = vmatprep.subr.mxu0 0.0
    %1279 = vmatpush1.msra.mxu0 0.0
    %1280 = vmatprep.subr.mxu0 0.0
    %1281 = vmatpush1.msra.mxu0 0.0
    %1282 = vmatprep.subr.mxu0 0.0
    %1283 = vmatpush1.msra.mxu0 0.0
    %1284 = vmatprep.subr.mxu0 0.0
    %1285 = vmatpush1.msra.mxu0 0.0
    %1286 = vmatprep.subr.mxu0 0.0
    %1287 = vmatpush1.msra.mxu0 0.0
    %1288 = vmatprep.subr.mxu0 0.0
    %1289 = vmatpush1.msra.mxu0 0.0
    %1290 = vmatprep.subr.mxu0 0.0
    %1291 = vmatpush1.msra.mxu0 0.0
    %1292 = vmatprep.subr.mxu0 0.0
    %1293 = vmatpush1.msra.mxu0 0.0
    %1294 = vmatprep.subr.mxu0 0.0
    %1295 = vmatpush1.msra.mxu0 0.0
    %1296 = vmatprep.subr.mxu0 0.0
    %1297 = vmatpush1.msra.mxu0 0.0
    %1298 = vmatprep.subr.mxu0 0.0
    %1299 = vmatpush1.msra.mxu0 0.0
    %1300 = vmatprep.subr.mxu0 0.0
    %1301 = vmatpush1.msra.mxu0 0.0
    %1302 = vmatprep.subr.mxu0 0.0
    %1303 = vmatpush1.msra.mxu0 0.0
    %1304 = vmatprep.subr.mxu0 0.0
    %1305 = vmatpush1.msra.mxu0 0.0
    %1306 = vmatprep.subr.mxu0 0.0
    %1307 = vmatpush1.msra.mxu0 0.0
    %1308 = vmatprep.subr.mxu0 0.0
    %1309 = vmatpush1.msra.mxu0 0.0
    %1310 = vmatprep.subr.mxu0 0.0
    %1311 = vmatpush1.msra.mxu0 0.0
    %1312 = vmatprep.subr.mxu0 0.0
    %1313 = vmatpush1.msra.mxu0 0.0
    %1314 = vmatprep.subr.mxu0 0.0
    %1315 = vmatpush1.msra.mxu0 0.0
    %1316 = vmatprep.subr.mxu0 0.0
    %1317 = vmatpush1.msra.mxu0 0.0
    %1318 = vmatprep.subr.mxu0 0.0
    %1319 = vmatpush1.msra.mxu0 0.0
    %1320 = vmatprep.subr.mxu0 0.0
    %1321 = vmatpush1.msra.mxu0 0.0
    %1322 = vmatprep.subr.mxu0 0.0
    %1323 = vmatpush1.msra.mxu0 0.0
    %1324 = vmatprep.mubr.f32.mxu0 0.0
    %1325 = vmatmul.mubr.f32.gmra.mrb[0].mxu0 %v684
    %v1326 = vpop.f32.mrb[0].mxu0
    %v1327 = vadd.f32 %v598, %v1326
    %v1328 = vpop.f32.mrb[0].mxu0
    %1329 = vdwg.mxu0
    %v1330 = vmul.f32 %v1042, %v1327
    %v1331 = vadd.f32 %v1257, %v1330
    %v1332 = vtanh.pop %v1331
    %v1333 = vsub.f32 1.0, %v1189
    %v1334 = vmul.f32 %v1333, %v1332
    %v1335 = vmul.f32 %v1189, %v676
    %v1336 = vadd.f32 %v1334, %v1335
    %v1338 = vsel %vm208, %v1336, 0
    %1340 = vmatprep.subr.mxu0 0.0
    %1341 = vmatpush1.msra.mxu0 %v122
    %1342 = vmatprep.subr.mxu0 0.0
    %1343 = vmatpush1.msra.mxu0 %v123
    %1344 = vmatprep.subr.mxu0 0.0
    %1345 = vmatpush1.msra.mxu0 %v124
    %1346 = vmatprep.subr.mxu0 0.0
    %1347 = vmatpush1.msra.mxu0 %v125
    %1348 = vmatprep.subr.mxu0 0.0
    %1349 = vmatpush1.msra.mxu0 0.0
    %1350 = vmatprep.subr.mxu0 0.0
    %1351 = vmatpush1.msra.mxu0 0.0
    %1352 = vmatprep.subr.mxu0 0.0
    %1353 = vmatpush1.msra.mxu0 0.0
    %1354 = vmatprep.subr.mxu0 0.0
    %1355 = vmatpush1.msra.mxu0 0.0
    %1356 = vmatprep.subr.mxu0 0.0
    %1357 = vmatpush1.msra.mxu0 0.0
    %1358 = vmatprep.subr.mxu0 0.0
    %1359 = vmatpush1.msra.mxu0 0.0
    %1360 = vmatprep.subr.mxu0 0.0
    %1361 = vmatpush1.msra.mxu0 0.0
    %1362 = vmatprep.subr.mxu0 0.0
    %1363 = vmatpush1.msra.mxu0 0.0
    %1364 = vmatprep.subr.mxu0 0.0
    %1365 = vmatpush1.msra.mxu0 0.0
    %1366 = vmatprep.subr.mxu0 0.0
    %1367 = vmatpush1.msra.mxu0 0.0
    %1368 = vmatprep.subr.mxu0 0.0
    %1369 = vmatpush1.msra.mxu0 0.0
    %1370 = vmatprep.subr.mxu0 0.0
    %1371 = vmatpush1.msra.mxu0 0.0
    %1372 = vmatprep.subr.mxu0 0.0
    %1373 = vmatpush1.msra.mxu0 0.0
    %1374 = vmatprep.subr.mxu0 0.0
    %1375 = vmatpush1.msra.mxu0 0.0
    %1376 = vmatprep.subr.mxu0 0.0
    %1377 = vmatpush1.msra.mxu0 0.0
    %1378 = vmatprep.subr.mxu0 0.0
    %1379 = vmatpush1.msra.mxu0 0.0
    %1380 = vmatprep.subr.mxu0 0.0
    %1381 = vmatpush1.msra.mxu0 0.0
    %1382 = vmatprep.subr.mxu0 0.0
    %1383 = vmatpush1.msra.mxu0 0.0
    %1384 = vmatprep.subr.mxu0 0.0
    %1385 = vmatpush1.msra.mxu0 0.0
    %1386 = vmatprep.subr.mxu0 0.0
    %1387 = vmatpush1.msra.mxu0 0.0
    %1388 = vmatprep.subr.mxu0 0.0
    %1389 = vmatpush1.msra.mxu0 0.0
    %1390 = vmatprep.subr.mxu0 0.0
    %1391 = vmatpush1.msra.mxu0 0.0
    %1392 = vmatprep.subr.mxu0 0.0
    %1393 = vmatpush1.msra.mxu0 0.0
    %1394 = vmatprep.subr.mxu0 0.0
    %1395 = vmatpush1.msra.mxu0 0.0
    %1396 = vmatprep.subr.mxu0 0.0
    %1397 = vmatpush1.msra.mxu0 0.0
    %1398 = vmatprep.subr.mxu0 0.0
    %1399 = vmatpush1.msra.mxu0 0.0
    %1400 = vmatprep.subr.mxu0 0.0
    %1401 = vmatpush1.msra.mxu0 0.0
    %1402 = vmatprep.subr.mxu0 0.0
    %1403 = vmatpush1.msra.mxu0 0.0
    %1404 = vmatprep.mubr.f32.mxu0 0.0
    %1405 = vmatmul.mubr.f32.gmra.mrb[0].mxu0 %v1338
    %v1406 = vpop.f32.mrb[0].mxu0
    %v1407 = vadd.f32 %v681, %v1406
    %v1408 = vpop.f32.mrb[0].mxu0
    %1409 = vdwg.mxu0
    %v1411 = vcombine.high %v1407, %v1407
    %v1413 = vunpack.c.l.s4 1966171168
    %v1414 = vunpack.c.0.s8 %v1413
    %v1415 = vlaneseq
    %v1416 = vshrl.u32 %v1415, 7
    %v1417 = vsub.s32 %v1414, %v1416
    %v1418 = vrot.slane %v1407, %v1417
    %v1420 = vunpack.c.l.s4 1966171168
    %v1421 = vunpack.c.0.s8 %v1420
    %v1422 = vlaneseq
    %v1423 = vshrl.u32 %v1422, 7
    %v1424 = vsub.s32 %v1421, %v1423
    %v1425 = vrot.slane %v1411, %v1424
    %v1426 = vcombine.high %v1418, %v1418
    %v1427 = vcombine.high %v1425, %v1425
    %v1429 = vunpack.c.l.s4 1966171168
    %v1430 = vunpack.c.0.s8 %v1429
    %v1431 = vlaneseq
    %v1432 = vshrl.u32 %v1431, 7
    %v1433 = vsub.s32 %v1430, %v1432
    %v1434 = vrot.slane %v1418, %v1433
    %v1436 = vunpack.c.l.s4 1966171168
    %v1437 = vunpack.c.0.s8 %v1436
    %v1438 = vlaneseq
    %v1439 = vshrl.u32 %v1438, 7
    %v1440 = vsub.s32 %v1437, %v1439
    %v1441 = vrot.slane %v1425, %v1440
    %v1443 = vunpack.c.l.s4 1966171168
    %v1444 = vunpack.c.0.s8 %v1443
    %v1445 = vlaneseq
    %v1446 = vshrl.u32 %v1445, 7
    %v1447 = vsub.s32 %v1444, %v1446
    %v1448 = vrot.slane %v1426, %v1447
    %v1450 = vunpack.c.l.s4 1966171168
    %v1451 = vunpack.c.0.s8 %v1450
    %v1452 = vlaneseq
    %v1453 = vshrl.u32 %v1452, 7
    %v1454 = vsub.s32 %v1451, %v1453
    %v1455 = vrot.slane %v1427, %v1454
    %v1456 = vcombine.high %v1434, %v1434
    %v1457 = vcombine.high %v1441, %v1441
    %v1458 = vcombine.high %v1448, %v1448
    %v1459 = vcombine.high %v1455, %v1455
    %1468 = vst.msk [vmem:[#allocation2 + $0x1] sm:$0x1] %vm814, %v1434
    %1469 = vst.msk [vmem:[#allocation2 + $0x5] sm:$0x1] %vm814, %v1448
    %1470 = vst.msk [vmem:[#allocation2 + $0x9] sm:$0x1] %vm814, %v1456
    %1471 = vst.msk [vmem:[#allocation2 + $0xd] sm:$0x1] %vm814, %v1458
    %1472 = vst.msk [vmem:[#allocation2 + $0x11] sm:$0x1] %vm814, %v1441
    %1473 = vst.msk [vmem:[#allocation2 + $0x15] sm:$0x1] %vm814, %v1455
    %1474 = vst.msk [vmem:[#allocation2 + $0x19] sm:$0x1] %vm814, %v1457
    %1475 = vst.msk [vmem:[#allocation2 + $0x1d] sm:$0x1] %vm814, %v1459
    %v1476 = vsel %vm133, %v1407, 0
    %1478 = vmatprep.subr.mxu0 0.0
    %1479 = vmatpush1.msra.mxu0 %v56
    %1480 = vmatprep.subr.mxu0 0.0
    %1481 = vmatpush1.msra.mxu0 0.0
    %1482 = vmatprep.subr.mxu0 0.0
    %1483 = vmatpush1.msra.mxu0 0.0
    %1484 = vmatprep.subr.mxu0 0.0
    %1485 = vmatpush1.msra.mxu0 0.0
    %1486 = vmatprep.subr.mxu0 0.0
    %1487 = vmatpush1.msra.mxu0 0.0
    %1488 = vmatprep.subr.mxu0 0.0
    %1489 = vmatpush1.msra.mxu0 0.0
    %1490 = vmatprep.subr.mxu0 0.0
    %1491 = vmatpush1.msra.mxu0 0.0
    %1492 = vmatprep.subr.mxu0 0.0
    %1493 = vmatpush1.msra.mxu0 0.0
    %1494 = vmatprep.subr.mxu0 0.0
    %1495 = vmatpush1.msra.mxu0 0.0
    %1496 = vmatprep.subr.mxu0 0.0
    %1497 = vmatpush1.msra.mxu0 0.0
    %1498 = vmatprep.subr.mxu0 0.0
    %1499 = vmatpush1.msra.mxu0 0.0
    %1500 = vmatprep.subr.mxu0 0.0
    %1501 = vmatpush1.msra.mxu0 0.0
    %1502 = vmatprep.subr.mxu0 0.0
    %1503 = vmatpush1.msra.mxu0 0.0
    %1504 = vmatprep.subr.mxu0 0.0
    %1505 = vmatpush1.msra.mxu0 0.0
    %1506 = vmatprep.subr.mxu0 0.0
    %1507 = vmatpush1.msra.mxu0 0.0
    %1508 = vmatprep.subr.mxu0 0.0
    %1509 = vmatpush1.msra.mxu0 0.0
    %1510 = vmatprep.subr.mxu0 0.0
    %1511 = vmatpush1.msra.mxu0 0.0
    %1512 = vmatprep.subr.mxu0 0.0
    %1513 = vmatpush1.msra.mxu0 0.0
    %1514 = vmatprep.subr.mxu0 0.0
    %1515 = vmatpush1.msra.mxu0 0.0
    %1516 = vmatprep.subr.mxu0 0.0
    %1517 = vmatpush1.msra.mxu0 0.0
    %1518 = vmatprep.subr.mxu0 0.0
    %1519 = vmatpush1.msra.mxu0 0.0
    %1520 = vmatprep.subr.mxu0 0.0
    %1521 = vmatpush1.msra.mxu0 0.0
    %1522 = vmatprep.subr.mxu0 0.0
    %1523 = vmatpush1.msra.mxu0 0.0
    %1524 = vmatprep.subr.mxu0 0.0
    %1525 = vmatpush1.msra.mxu0 0.0
    %1526 = vmatprep.subr.mxu0 0.0
    %1527 = vmatpush1.msra.mxu0 0.0
    %1528 = vmatprep.subr.mxu0 0.0
    %1529 = vmatpush1.msra.mxu0 0.0
    %1530 = vmatprep.subr.mxu0 0.0
    %1531 = vmatpush1.msra.mxu0 0.0
    %1532 = vmatprep.subr.mxu0 0.0
    %1533 = vmatpush1.msra.mxu0 0.0
    %1534 = vmatprep.subr.mxu0 0.0
    %1535 = vmatpush1.msra.mxu0 0.0
    %1536 = vmatprep.subr.mxu0 0.0
    %1537 = vmatpush1.msra.mxu0 0.0
    %1538 = vmatprep.subr.mxu0 0.0
    %1539 = vmatpush1.msra.mxu0 0.0
    %1540 = vmatprep.subr.mxu0 0.0
    %1541 = vmatpush1.msra.mxu0 0.0
    %1542 = vmatprep.mubr.f32.mxu0 0.0
    %1543 = vmatmul.mubr.f32.gmra.mrb[0].mxu0 %v1476
    %v1544 = vpop.f32.mrb[0].mxu0
    %v1545 = vadd.f32 %v131, %v1544
    %v1546 = vpop.f32.mrb[0].mxu0
    %1547 = vdwg.mxu0
    %v1548 = vmax.f32 %v1545, 0.0
    %1549 = vmatprep.subr.mxu0 0.0
    %1550 = vmatpush1.msra.mxu0 %v106
    %1551 = vmatprep.subr.mxu0 0.0
    %1552 = vmatpush1.msra.mxu0 %v107
    %1553 = vmatprep.subr.mxu0 0.0
    %1554 = vmatpush1.msra.mxu0 %v108
    %1555 = vmatprep.subr.mxu0 0.0
    %1556 = vmatpush1.msra.mxu0 %v109
    %1557 = vmatprep.subr.mxu0 0.0
    %1558 = vmatpush1.msra.mxu0 0.0
    %1559 = vmatprep.subr.mxu0 0.0
    %1560 = vmatpush1.msra.mxu0 0.0
    %1561 = vmatprep.subr.mxu0 0.0
    %1562 = vmatpush1.msra.mxu0 0.0
    %1563 = vmatprep.subr.mxu0 0.0
    %1564 = vmatpush1.msra.mxu0 0.0
    %1565 = vmatprep.subr.mxu0 0.0
    %1566 = vmatpush1.msra.mxu0 0.0
    %1567 = vmatprep.subr.mxu0 0.0
    %1568 = vmatpush1.msra.mxu0 0.0
    %1569 = vmatprep.subr.mxu0 0.0
    %1570 = vmatpush1.msra.mxu0 0.0
    %1571 = vmatprep.subr.mxu0 0.0
    %1572 = vmatpush1.msra.mxu0 0.0
    %1573 = vmatprep.subr.mxu0 0.0
    %1574 = vmatpush1.msra.mxu0 0.0
    %1575 = vmatprep.subr.mxu0 0.0
    %1576 = vmatpush1.msra.mxu0 0.0
    %1577 = vmatprep.subr.mxu0 0.0
    %1578 = vmatpush1.msra.mxu0 0.0
    %1579 = vmatprep.subr.mxu0 0.0
    %1580 = vmatpush1.msra.mxu0 0.0
    %1581 = vmatprep.subr.mxu0 0.0
    %1582 = vmatpush1.msra.mxu0 0.0
    %1583 = vmatprep.subr.mxu0 0.0
    %1584 = vmatpush1.msra.mxu0 0.0
    %1585 = vmatprep.subr.mxu0 0.0
    %1586 = vmatpush1.msra.mxu0 0.0
    %1587 = vmatprep.subr.mxu0 0.0
    %1588 = vmatpush1.msra.mxu0 0.0
    %1589 = vmatprep.subr.mxu0 0.0
    %1590 = vmatpush1.msra.mxu0 0.0
    %1591 = vmatprep.subr.mxu0 0.0
    %1592 = vmatpush1.msra.mxu0 0.0
    %1593 = vmatprep.subr.mxu0 0.0
    %1594 = vmatpush1.msra.mxu0 0.0
    %1595 = vmatprep.subr.mxu0 0.0
    %1596 = vmatpush1.msra.mxu0 0.0
    %1597 = vmatprep.subr.mxu0 0.0
    %1598 = vmatpush1.msra.mxu0 0.0
    %1599 = vmatprep.subr.mxu0 0.0
    %1600 = vmatpush1.msra.mxu0 0.0
    %1601 = vmatprep.subr.mxu0 0.0
    %1602 = vmatpush1.msra.mxu0 0.0
    %1603 = vmatprep.subr.mxu0 0.0
    %1604 = vmatpush1.msra.mxu0 0.0
    %1605 = vmatprep.subr.mxu0 0.0
    %1606 = vmatpush1.msra.mxu0 0.0
    %1607 = vmatprep.subr.mxu0 0.0
    %1608 = vmatpush1.msra.mxu0 0.0
    %1609 = vmatprep.subr.mxu0 0.0
    %1610 = vmatpush1.msra.mxu0 0.0
    %1611 = vmatprep.subr.mxu0 0.0
    %1612 = vmatpush1.msra.mxu0 0.0
    %1613 = vmatprep.mubr.f32.mxu0 0.0
    %1614 = vmatmul.mubr.f32.gmra.mrb[0].mxu0 %v1338
    %v1615 = vpop.f32.mrb[0].mxu0
    %v1616 = vadd.f32 0.0, %v1615
    %v1617 = vpop.f32.mrb[0].mxu0
    %1618 = vdwg.mxu0
    %1619 = vmatprep.subr.mxu0 0.0
    %1620 = vmatpush1.msra.mxu0 %v58
    %1621 = vmatprep.subr.mxu0 0.0
    %1622 = vmatpush1.msra.mxu0 %v59
    %1623 = vmatprep.subr.mxu0 0.0
    %1624 = vmatpush1.msra.mxu0 %v60
    %1625 = vmatprep.subr.mxu0 0.0
    %1626 = vmatpush1.msra.mxu0 %v61
    %1627 = vmatprep.subr.mxu0 0.0
    %1628 = vmatpush1.msra.mxu0 %v62
    %1629 = vmatprep.subr.mxu0 0.0
    %1630 = vmatpush1.msra.mxu0 %v63
    %1631 = vmatprep.subr.mxu0 0.0
    %1632 = vmatpush1.msra.mxu0 %v64
    %1633 = vmatprep.subr.mxu0 0.0
    %1634 = vmatpush1.msra.mxu0 %v65
    %1635 = vmatprep.subr.mxu0 0.0
    %1636 = vmatpush1.msra.mxu0 %v66
    %1637 = vmatprep.subr.mxu0 0.0
    %1638 = vmatpush1.msra.mxu0 %v67
    %1639 = vmatprep.subr.mxu0 0.0
    %1640 = vmatpush1.msra.mxu0 %v68
    %1641 = vmatprep.subr.mxu0 0.0
    %1642 = vmatpush1.msra.mxu0 %v69
    %1643 = vmatprep.subr.mxu0 0.0
    %1644 = vmatpush1.msra.mxu0 %v70
    %1645 = vmatprep.subr.mxu0 0.0
    %1646 = vmatpush1.msra.mxu0 %v71
    %1647 = vmatprep.subr.mxu0 0.0
    %1648 = vmatpush1.msra.mxu0 %v72
    %1649 = vmatprep.subr.mxu0 0.0
    %1650 = vmatpush1.msra.mxu0 %v73
    %1651 = vmatprep.subr.mxu0 0.0
    %1652 = vmatpush1.msra.mxu0 0.0
    %1653 = vmatprep.subr.mxu0 0.0
    %1654 = vmatpush1.msra.mxu0 0.0
    %1655 = vmatprep.subr.mxu0 0.0
    %1656 = vmatpush1.msra.mxu0 0.0
    %1657 = vmatprep.subr.mxu0 0.0
    %1658 = vmatpush1.msra.mxu0 0.0
    %1659 = vmatprep.subr.mxu0 0.0
    %1660 = vmatpush1.msra.mxu0 0.0
    %1661 = vmatprep.subr.mxu0 0.0
    %1662 = vmatpush1.msra.mxu0 0.0
    %1663 = vmatprep.subr.mxu0 0.0
    %1664 = vmatpush1.msra.mxu0 0.0
    %1665 = vmatprep.subr.mxu0 0.0
    %1666 = vmatpush1.msra.mxu0 0.0
    %1667 = vmatprep.subr.mxu0 0.0
    %1668 = vmatpush1.msra.mxu0 0.0
    %1669 = vmatprep.subr.mxu0 0.0
    %1670 = vmatpush1.msra.mxu0 0.0
    %1671 = vmatprep.subr.mxu0 0.0
    %1672 = vmatpush1.msra.mxu0 0.0
    %1673 = vmatprep.subr.mxu0 0.0
    %1674 = vmatpush1.msra.mxu0 0.0
    %1675 = vmatprep.subr.mxu0 0.0
    %1676 = vmatpush1.msra.mxu0 0.0
    %1677 = vmatprep.subr.mxu0 0.0
    %1678 = vmatpush1.msra.mxu0 0.0
    %1679 = vmatprep.subr.mxu0 0.0
    %1680 = vmatpush1.msra.mxu0 0.0
    %1681 = vmatprep.subr.mxu0 0.0
    %1682 = vmatpush1.msra.mxu0 0.0
    %1683 = vmatprep.mubr.f32.mxu0 0.0
    %1684 = vmatmul.mubr.f32.gmra.mrb[0].mxu0 %v1548
    %v1685 = vpop.f32.mrb[0].mxu0
    %v1686 = vadd.f32 %v1616, %v1685
    %v1687 = vpop.f32.mrb[0].mxu0
    %1688 = vdwg.mxu0
    %v1689 = vadd.f32 %v1686, %v356
    %v1690 = vxor.u32 %v1689, 2147483648
    %v1691 = vmul.f32 %v1690, 1.442695
    %v1692 = vpow.pop %v1691
    %v1693 = vadd.f32 %v1692, 1.0
    %v1694 = vrcp.pop %v1693
    %v1695 = vmul.f32 1.0, %v1694
    %1696 = vmatprep.subr.mxu0 0.0
    %1697 = vmatpush1.msra.mxu0 %v110
    %1698 = vmatprep.subr.mxu0 0.0
    %1699 = vmatpush1.msra.mxu0 %v111
    %1700 = vmatprep.subr.mxu0 0.0
    %1701 = vmatpush1.msra.mxu0 %v112
    %1702 = vmatprep.subr.mxu0 0.0
    %1703 = vmatpush1.msra.mxu0 %v113
    %1704 = vmatprep.subr.mxu0 0.0
    %1705 = vmatpush1.msra.mxu0 0.0
    %1706 = vmatprep.subr.mxu0 0.0
    %1707 = vmatpush1.msra.mxu0 0.0
    %1708 = vmatprep.subr.mxu0 0.0
    %1709 = vmatpush1.msra.mxu0 0.0
    %1710 = vmatprep.subr.mxu0 0.0
    %1711 = vmatpush1.msra.mxu0 0.0
    %1712 = vmatprep.subr.mxu0 0.0
    %1713 = vmatpush1.msra.mxu0 0.0
    %1714 = vmatprep.subr.mxu0 0.0
    %1715 = vmatpush1.msra.mxu0 0.0
    %1716 = vmatprep.subr.mxu0 0.0
    %1717 = vmatpush1.msra.mxu0 0.0
    %1718 = vmatprep.subr.mxu0 0.0
    %1719 = vmatpush1.msra.mxu0 0.0
    %1720 = vmatprep.subr.mxu0 0.0
    %1721 = vmatpush1.msra.mxu0 0.0
    %1722 = vmatprep.subr.mxu0 0.0
    %1723 = vmatpush1.msra.mxu0 0.0
    %1724 = vmatprep.subr.mxu0 0.0
    %1725 = vmatpush1.msra.mxu0 0.0
    %1726 = vmatprep.subr.mxu0 0.0
    %1727 = vmatpush1.msra.mxu0 0.0
    %1728 = vmatprep.subr.mxu0 0.0
    %1729 = vmatpush1.msra.mxu0 0.0
    %1730 = vmatprep.subr.mxu0 0.0
    %1731 = vmatpush1.msra.mxu0 0.0
    %1732 = vmatprep.subr.mxu0 0.0
    %1733 = vmatpush1.msra.mxu0 0.0
    %1734 = vmatprep.subr.mxu0 0.0
    %1735 = vmatpush1.msra.mxu0 0.0
    %1736 = vmatprep.subr.mxu0 0.0
    %1737 = vmatpush1.msra.mxu0 0.0
    %1738 = vmatprep.subr.mxu0 0.0
    %1739 = vmatpush1.msra.mxu0 0.0
    %1740 = vmatprep.subr.mxu0 0.0
    %1741 = vmatpush1.msra.mxu0 0.0
    %1742 = vmatprep.subr.mxu0 0.0
    %1743 = vmatpush1.msra.mxu0 0.0
    %1744 = vmatprep.subr.mxu0 0.0
    %1745 = vmatpush1.msra.mxu0 0.0
    %1746 = vmatprep.subr.mxu0 0.0
    %1747 = vmatpush1.msra.mxu0 0.0
    %1748 = vmatprep.subr.mxu0 0.0
    %1749 = vmatpush1.msra.mxu0 0.0
    %1750 = vmatprep.subr.mxu0 0.0
    %1751 = vmatpush1.msra.mxu0 0.0
    %1752 = vmatprep.subr.mxu0 0.0
    %1753 = vmatpush1.msra.mxu0 0.0
    %1754 = vmatprep.subr.mxu0 0.0
    %1755 = vmatpush1.msra.mxu0 0.0
    %1756 = vmatprep.subr.mxu0 0.0
    %1757 = vmatpush1.msra.mxu0 0.0
    %1758 = vmatprep.subr.mxu0 0.0
    %1759 = vmatpush1.msra.mxu0 0.0
    %1760 = vmatprep.mubr.f32.mxu0 0.0
    %1761 = vmatmul.mubr.f32.gmra.mrb[0].mxu0 %v1338
    %v1762 = vpop.f32.mrb[0].mxu0
    %v1763 = vadd.f32 0.0, %v1762
    %v1764 = vpop.f32.mrb[0].mxu0
    %1765 = vdwg.mxu0
    %1766 = vmatprep.subr.mxu0 0.0
    %1767 = vmatpush1.msra.mxu0 %v74
    %1768 = vmatprep.subr.mxu0 0.0
    %1769 = vmatpush1.msra.mxu0 %v75
    %1770 = vmatprep.subr.mxu0 0.0
    %1771 = vmatpush1.msra.mxu0 %v76
    %1772 = vmatprep.subr.mxu0 0.0
    %1773 = vmatpush1.msra.mxu0 %v77
    %1774 = vmatprep.subr.mxu0 0.0
    %1775 = vmatpush1.msra.mxu0 %v78
    %1776 = vmatprep.subr.mxu0 0.0
    %1777 = vmatpush1.msra.mxu0 %v79
    %1778 = vmatprep.subr.mxu0 0.0
    %1779 = vmatpush1.msra.mxu0 %v80
    %1780 = vmatprep.subr.mxu0 0.0
    %1781 = vmatpush1.msra.mxu0 %v81
    %1782 = vmatprep.subr.mxu0 0.0
    %1783 = vmatpush1.msra.mxu0 %v82
    %1784 = vmatprep.subr.mxu0 0.0
    %1785 = vmatpush1.msra.mxu0 %v83
    %1786 = vmatprep.subr.mxu0 0.0
    %1787 = vmatpush1.msra.mxu0 %v84
    %1788 = vmatprep.subr.mxu0 0.0
    %1789 = vmatpush1.msra.mxu0 %v85
    %1790 = vmatprep.subr.mxu0 0.0
    %1791 = vmatpush1.msra.mxu0 %v86
    %1792 = vmatprep.subr.mxu0 0.0
    %1793 = vmatpush1.msra.mxu0 %v87
    %1794 = vmatprep.subr.mxu0 0.0
    %1795 = vmatpush1.msra.mxu0 %v88
    %1796 = vmatprep.subr.mxu0 0.0
    %1797 = vmatpush1.msra.mxu0 %v89
    %1798 = vmatprep.subr.mxu0 0.0
    %1799 = vmatpush1.msra.mxu0 0.0
    %1800 = vmatprep.subr.mxu0 0.0
    %1801 = vmatpush1.msra.mxu0 0.0
    %1802 = vmatprep.subr.mxu0 0.0
    %1803 = vmatpush1.msra.mxu0 0.0
    %1804 = vmatprep.subr.mxu0 0.0
    %1805 = vmatpush1.msra.mxu0 0.0
    %1806 = vmatprep.subr.mxu0 0.0
    %1807 = vmatpush1.msra.mxu0 0.0
    %1808 = vmatprep.subr.mxu0 0.0
    %1809 = vmatpush1.msra.mxu0 0.0
    %1810 = vmatprep.subr.mxu0 0.0
    %1811 = vmatpush1.msra.mxu0 0.0
    %1812 = vmatprep.subr.mxu0 0.0
    %1813 = vmatpush1.msra.mxu0 0.0
    %1814 = vmatprep.subr.mxu0 0.0
    %1815 = vmatpush1.msra.mxu0 0.0
    %1816 = vmatprep.subr.mxu0 0.0
    %1817 = vmatpush1.msra.mxu0 0.0
    %1818 = vmatprep.subr.mxu0 0.0
    %1819 = vmatpush1.msra.mxu0 0.0
    %1820 = vmatprep.subr.mxu0 0.0
    %1821 = vmatpush1.msra.mxu0 0.0
    %1822 = vmatprep.subr.mxu0 0.0
    %1823 = vmatpush1.msra.mxu0 0.0
    %1824 = vmatprep.subr.mxu0 0.0
    %1825 = vmatpush1.msra.mxu0 0.0
    %1826 = vmatprep.subr.mxu0 0.0
    %1827 = vmatpush1.msra.mxu0 0.0
    %1828 = vmatprep.subr.mxu0 0.0
    %1829 = vmatpush1.msra.mxu0 0.0
    %1830 = vmatprep.mubr.f32.mxu0 0.0
    %1831 = vmatmul.mubr.f32.gmra.mrb[0].mxu0 %v1548
    %v1832 = vpop.f32.mrb[0].mxu0
    %v1833 = vadd.f32 %v1763, %v1832
    %v1834 = vpop.f32.mrb[0].mxu0
    %1835 = vdwg.mxu0
    %v1836 = vadd.f32 %v1833, %v509
    %v1837 = vxor.u32 %v1836, 2147483648
    %v1838 = vmul.f32 %v1837, 1.442695
    %v1839 = vpow.pop %v1838
    %v1840 = vadd.f32 %v1839, 1.0
    %v1841 = vrcp.pop %v1840
    %v1842 = vmul.f32 1.0, %v1841
    %1843 = vmatprep.subr.mxu0 0.0
    %1844 = vmatpush1.msra.mxu0 %v90
    %1845 = vmatprep.subr.mxu0 0.0
    %1846 = vmatpush1.msra.mxu0 %v91
    %1847 = vmatprep.subr.mxu0 0.0
    %1848 = vmatpush1.msra.mxu0 %v92
    %1849 = vmatprep.subr.mxu0 0.0
    %1850 = vmatpush1.msra.mxu0 %v93
    %1851 = vmatprep.subr.mxu0 0.0
    %1852 = vmatpush1.msra.mxu0 %v94
    %1853 = vmatprep.subr.mxu0 0.0
    %1854 = vmatpush1.msra.mxu0 %v95
    %1855 = vmatprep.subr.mxu0 0.0
    %1856 = vmatpush1.msra.mxu0 %v96
    %1857 = vmatprep.subr.mxu0 0.0
    %1858 = vmatpush1.msra.mxu0 %v97
    %1859 = vmatprep.subr.mxu0 0.0
    %1860 = vmatpush1.msra.mxu0 %v98
    %1861 = vmatprep.subr.mxu0 0.0
    %1862 = vmatpush1.msra.mxu0 %v99
    %1863 = vmatprep.subr.mxu0 0.0
    %1864 = vmatpush1.msra.mxu0 %v100
    %1865 = vmatprep.subr.mxu0 0.0
    %1866 = vmatpush1.msra.mxu0 %v101
    %1867 = vmatprep.subr.mxu0 0.0
    %1868 = vmatpush1.msra.mxu0 %v102
    %1869 = vmatprep.subr.mxu0 0.0
    %1870 = vmatpush1.msra.mxu0 %v103
    %1871 = vmatprep.subr.mxu0 0.0
    %1872 = vmatpush1.msra.mxu0 %v104
    %1873 = vmatprep.subr.mxu0 0.0
    %1874 = vmatpush1.msra.mxu0 %v105
    %1875 = vmatprep.subr.mxu0 0.0
    %1876 = vmatpush1.msra.mxu0 0.0
    %1877 = vmatprep.subr.mxu0 0.0
    %1878 = vmatpush1.msra.mxu0 0.0
    %1879 = vmatprep.subr.mxu0 0.0
    %1880 = vmatpush1.msra.mxu0 0.0
    %1881 = vmatprep.subr.mxu0 0.0
    %1882 = vmatpush1.msra.mxu0 0.0
    %1883 = vmatprep.subr.mxu0 0.0
    %1884 = vmatpush1.msra.mxu0 0.0
    %1885 = vmatprep.subr.mxu0 0.0
    %1886 = vmatpush1.msra.mxu0 0.0
    %1887 = vmatprep.subr.mxu0 0.0
    %1888 = vmatpush1.msra.mxu0 0.0
    %1889 = vmatprep.subr.mxu0 0.0
    %1890 = vmatpush1.msra.mxu0 0.0
    %1891 = vmatprep.subr.mxu0 0.0
    %1892 = vmatpush1.msra.mxu0 0.0
    %1893 = vmatprep.subr.mxu0 0.0
    %1894 = vmatpush1.msra.mxu0 0.0
    %1895 = vmatprep.subr.mxu0 0.0
    %1896 = vmatpush1.msra.mxu0 0.0
    %1897 = vmatprep.subr.mxu0 0.0
    %1898 = vmatpush1.msra.mxu0 0.0
    %1899 = vmatprep.subr.mxu0 0.0
    %1900 = vmatpush1.msra.mxu0 0.0
    %1901 = vmatprep.subr.mxu0 0.0
    %1902 = vmatpush1.msra.mxu0 0.0
    %1903 = vmatprep.subr.mxu0 0.0
    %1904 = vmatpush1.msra.mxu0 0.0
    %1905 = vmatprep.subr.mxu0 0.0
    %1906 = vmatpush1.msra.mxu0 0.0
    %1907 = vmatprep.mubr.f32.mxu0 0.0
    %1908 = vmatmul.mubr.f32.gmra.mrb[0].mxu0 %v1548
    %v1909 = vpop.f32.mrb[0].mxu0
    %v1910 = vadd.f32 %v522, %v1909
    %v1911 = vpop.f32.mrb[0].mxu0
    %1912 = vdwg.mxu0
    %1913 = vmatprep.subr.mxu0 0.0
    %1914 = vmatpush1.msra.mxu0 %v114
    %1915 = vmatprep.subr.mxu0 0.0
    %1916 = vmatpush1.msra.mxu0 %v115
    %1917 = vmatprep.subr.mxu0 0.0
    %1918 = vmatpush1.msra.mxu0 %v116
    %1919 = vmatprep.subr.mxu0 0.0
    %1920 = vmatpush1.msra.mxu0 %v117
    %1921 = vmatprep.subr.mxu0 0.0
    %1922 = vmatpush1.msra.mxu0 0.0
    %1923 = vmatprep.subr.mxu0 0.0
    %1924 = vmatpush1.msra.mxu0 0.0
    %1925 = vmatprep.subr.mxu0 0.0
    %1926 = vmatpush1.msra.mxu0 0.0
    %1927 = vmatprep.subr.mxu0 0.0
    %1928 = vmatpush1.msra.mxu0 0.0
    %1929 = vmatprep.subr.mxu0 0.0
    %1930 = vmatpush1.msra.mxu0 0.0
    %1931 = vmatprep.subr.mxu0 0.0
    %1932 = vmatpush1.msra.mxu0 0.0
    %1933 = vmatprep.subr.mxu0 0.0
    %1934 = vmatpush1.msra.mxu0 0.0
    %1935 = vmatprep.subr.mxu0 0.0
    %1936 = vmatpush1.msra.mxu0 0.0
    %1937 = vmatprep.subr.mxu0 0.0
    %1938 = vmatpush1.msra.mxu0 0.0
    %1939 = vmatprep.subr.mxu0 0.0
    %1940 = vmatpush1.msra.mxu0 0.0
    %1941 = vmatprep.subr.mxu0 0.0
    %1942 = vmatpush1.msra.mxu0 0.0
    %1943 = vmatprep.subr.mxu0 0.0
    %1944 = vmatpush1.msra.mxu0 0.0
    %1945 = vmatprep.subr.mxu0 0.0
    %1946 = vmatpush1.msra.mxu0 0.0
    %1947 = vmatprep.subr.mxu0 0.0
    %1948 = vmatpush1.msra.mxu0 0.0
    %1949 = vmatprep.subr.mxu0 0.0
    %1950 = vmatpush1.msra.mxu0 0.0
    %1951 = vmatprep.subr.mxu0 0.0
    %1952 = vmatpush1.msra.mxu0 0.0
    %1953 = vmatprep.subr.mxu0 0.0
    %1954 = vmatpush1.msra.mxu0 0.0
    %1955 = vmatprep.subr.mxu0 0.0
    %1956 = vmatpush1.msra.mxu0 0.0
    %1957 = vmatprep.subr.mxu0 0.0
    %1958 = vmatpush1.msra.mxu0 0.0
    %1959 = vmatprep.subr.mxu0 0.0
    %1960 = vmatpush1.msra.mxu0 0.0
    %1961 = vmatprep.subr.mxu0 0.0
    %1962 = vmatpush1.msra.mxu0 0.0
    %1963 = vmatprep.subr.mxu0 0.0
    %1964 = vmatpush1.msra.mxu0 0.0
    %1965 = vmatprep.subr.mxu0 0.0
    %1966 = vmatpush1.msra.mxu0 0.0
    %1967 = vmatprep.subr.mxu0 0.0
    %1968 = vmatpush1.msra.mxu0 0.0
    %1969 = vmatprep.subr.mxu0 0.0
    %1970 = vmatpush1.msra.mxu0 0.0
    %1971 = vmatprep.subr.mxu0 0.0
    %1972 = vmatpush1.msra.mxu0 0.0
    %1973 = vmatprep.subr.mxu0 0.0
    %1974 = vmatpush1.msra.mxu0 0.0
    %1975 = vmatprep.subr.mxu0 0.0
    %1976 = vmatpush1.msra.mxu0 0.0
    %1977 = vmatprep.mubr.f32.mxu0 0.0
    %1978 = vmatmul.mubr.f32.gmra.mrb[0].mxu0 %v1338
    %v1979 = vpop.f32.mrb[0].mxu0
    %v1980 = vadd.f32 %v598, %v1979
    %v1981 = vpop.f32.mrb[0].mxu0
    %1982 = vdwg.mxu0
    %v1983 = vmul.f32 %v1695, %v1980
    %v1984 = vadd.f32 %v1910, %v1983
    %v1985 = vtanh.pop %v1984
    %v1986 = vsub.f32 1.0, %v1842
    %v1987 = vmul.f32 %v1986, %v1985
    %v1988 = vmul.f32 %v1842, %v1336
    %v1989 = vadd.f32 %v1987, %v1988
    %v1991 = vsel %vm208, %v1989, 0
    %1993 = vmatprep.subr.mxu0 0.0
    %1994 = vmatpush1.msra.mxu0 %v122
    %1995 = vmatprep.subr.mxu0 0.0
    %1996 = vmatpush1.msra.mxu0 %v123
    %1997 = vmatprep.subr.mxu0 0.0
    %1998 = vmatpush1.msra.mxu0 %v124
    %1999 = vmatprep.subr.mxu0 0.0
    %2000 = vmatpush1.msra.mxu0 %v125
    %2001 = vmatprep.subr.mxu0 0.0
    %2002 = vmatpush1.msra.mxu0 0.0
    %2003 = vmatprep.subr.mxu0 0.0
    %2004 = vmatpush1.msra.mxu0 0.0
    %2005 = vmatprep.subr.mxu0 0.0
    %2006 = vmatpush1.msra.mxu0 0.0
    %2007 = vmatprep.subr.mxu0 0.0
    %2008 = vmatpush1.msra.mxu0 0.0
    %2009 = vmatprep.subr.mxu0 0.0
    %2010 = vmatpush1.msra.mxu0 0.0
    %2011 = vmatprep.subr.mxu0 0.0
    %2012 = vmatpush1.msra.mxu0 0.0
    %2013 = vmatprep.subr.mxu0 0.0
    %2014 = vmatpush1.msra.mxu0 0.0
    %2015 = vmatprep.subr.mxu0 0.0
    %2016 = vmatpush1.msra.mxu0 0.0
    %2017 = vmatprep.subr.mxu0 0.0
    %2018 = vmatpush1.msra.mxu0 0.0
    %2019 = vmatprep.subr.mxu0 0.0
    %2020 = vmatpush1.msra.mxu0 0.0
    %2021 = vmatprep.subr.mxu0 0.0
    %2022 = vmatpush1.msra.mxu0 0.0
    %2023 = vmatprep.subr.mxu0 0.0
    %2024 = vmatpush1.msra.mxu0 0.0
    %2025 = vmatprep.subr.mxu0 0.0
    %2026 = vmatpush1.msra.mxu0 0.0
    %2027 = vmatprep.subr.mxu0 0.0
    %2028 = vmatpush1.msra.mxu0 0.0
    %2029 = vmatprep.subr.mxu0 0.0
    %2030 = vmatpush1.msra.mxu0 0.0
    %2031 = vmatprep.subr.mxu0 0.0
    %2032 = vmatpush1.msra.mxu0 0.0
    %2033 = vmatprep.subr.mxu0 0.0
    %2034 = vmatpush1.msra.mxu0 0.0
    %2035 = vmatprep.subr.mxu0 0.0
    %2036 = vmatpush1.msra.mxu0 0.0
    %2037 = vmatprep.subr.mxu0 0.0
    %2038 = vmatpush1.msra.mxu0 0.0
    %2039 = vmatprep.subr.mxu0 0.0
    %2040 = vmatpush1.msra.mxu0 0.0
    %2041 = vmatprep.subr.mxu0 0.0
    %2042 = vmatpush1.msra.mxu0 0.0
    %2043 = vmatprep.subr.mxu0 0.0
    %2044 = vmatpush1.msra.mxu0 0.0
    %2045 = vmatprep.subr.mxu0 0.0
    %2046 = vmatpush1.msra.mxu0 0.0
    %2047 = vmatprep.subr.mxu0 0.0
    %2048 = vmatpush1.msra.mxu0 0.0
    %2049 = vmatprep.subr.mxu0 0.0
    %2050 = vmatpush1.msra.mxu0 0.0
    %2051 = vmatprep.subr.mxu0 0.0
    %2052 = vmatpush1.msra.mxu0 0.0
    %2053 = vmatprep.subr.mxu0 0.0
    %2054 = vmatpush1.msra.mxu0 0.0
    %2055 = vmatprep.subr.mxu0 0.0
    %2056 = vmatpush1.msra.mxu0 0.0
    %2057 = vmatprep.mubr.f32.mxu0 0.0
    %2058 = vmatmul.mubr.f32.gmra.mrb[0].mxu0 %v1991
    %v2059 = vpop.f32.mrb[0].mxu0
    %v2060 = vadd.f32 %v681, %v2059
    %v2061 = vpop.f32.mrb[0].mxu0
    %2062 = vdwg.mxu0
    %v2064 = vcombine.high %v2060, %v2060
    %v2066 = vunpack.c.l.s4 1966171168
    %v2067 = vunpack.c.0.s8 %v2066
    %v2068 = vlaneseq
    %v2069 = vshrl.u32 %v2068, 7
    %v2070 = vsub.s32 %v2067, %v2069
    %v2071 = vrot.slane %v2060, %v2070
    %v2073 = vunpack.c.l.s4 1966171168
    %v2074 = vunpack.c.0.s8 %v2073
    %v2075 = vlaneseq
    %v2076 = vshrl.u32 %v2075, 7
    %v2077 = vsub.s32 %v2074, %v2076
    %v2078 = vrot.slane %v2064, %v2077
    %v2079 = vcombine.high %v2071, %v2071
    %v2080 = vcombine.high %v2078, %v2078
    %v2082 = vunpack.c.l.s4 1966171168
    %v2083 = vunpack.c.0.s8 %v2082
    %v2084 = vlaneseq
    %v2085 = vshrl.u32 %v2084, 7
    %v2086 = vsub.s32 %v2083, %v2085
    %v2087 = vrot.slane %v2071, %v2086
    %v2089 = vunpack.c.l.s4 1966171168
    %v2090 = vunpack.c.0.s8 %v2089
    %v2091 = vlaneseq
    %v2092 = vshrl.u32 %v2091, 7
    %v2093 = vsub.s32 %v2090, %v2092
    %v2094 = vrot.slane %v2078, %v2093
    %v2096 = vunpack.c.l.s4 1966171168
    %v2097 = vunpack.c.0.s8 %v2096
    %v2098 = vlaneseq
    %v2099 = vshrl.u32 %v2098, 7
    %v2100 = vsub.s32 %v2097, %v2099
    %v2101 = vrot.slane %v2079, %v2100
    %v2103 = vunpack.c.l.s4 1966171168
    %v2104 = vunpack.c.0.s8 %v2103
    %v2105 = vlaneseq
    %v2106 = vshrl.u32 %v2105, 7
    %v2107 = vsub.s32 %v2104, %v2106
    %v2108 = vrot.slane %v2080, %v2107
    %v2109 = vcombine.high %v2087, %v2087
    %v2110 = vcombine.high %v2094, %v2094
    %v2111 = vcombine.high %v2101, %v2101
    %v2112 = vcombine.high %v2108, %v2108
    %2121 = vst.msk [vmem:[#allocation2 + $0x2] sm:$0x1] %vm814, %v2087
    %2122 = vst.msk [vmem:[#allocation2 + $0x6] sm:$0x1] %vm814, %v2101
    %2123 = vst.msk [vmem:[#allocation2 + $0xa] sm:$0x1] %vm814, %v2109
    %2124 = vst.msk [vmem:[#allocation2 + $0xe] sm:$0x1] %vm814, %v2111
    %2125 = vst.msk [vmem:[#allocation2 + $0x12] sm:$0x1] %vm814, %v2094
    %2126 = vst.msk [vmem:[#allocation2 + $0x16] sm:$0x1] %vm814, %v2108
    %2127 = vst.msk [vmem:[#allocation2 + $0x1a] sm:$0x1] %vm814, %v2110
    %2128 = vst.msk [vmem:[#allocation2 + $0x1e] sm:$0x1] %vm814, %v2112
    %v2129 = vsel %vm133, %v2060, 0
    %2131 = vmatprep.subr.mxu0 0.0
    %2132 = vmatpush1.msra.mxu0 %v56
    %2133 = vmatprep.subr.mxu0 0.0
    %2134 = vmatpush1.msra.mxu0 0.0
    %2135 = vmatprep.subr.mxu0 0.0
    %2136 = vmatpush1.msra.mxu0 0.0
    %2137 = vmatprep.subr.mxu0 0.0
    %2138 = vmatpush1.msra.mxu0 0.0
    %2139 = vmatprep.subr.mxu0 0.0
    %2140 = vmatpush1.msra.mxu0 0.0
    %2141 = vmatprep.subr.mxu0 0.0
    %2142 = vmatpush1.msra.mxu0 0.0
    %2143 = vmatprep.subr.mxu0 0.0
    %2144 = vmatpush1.msra.mxu0 0.0
    %2145 = vmatprep.subr.mxu0 0.0
    %2146 = vmatpush1.msra.mxu0 0.0
    %2147 = vmatprep.subr.mxu0 0.0
    %2148 = vmatpush1.msra.mxu0 0.0
    %2149 = vmatprep.subr.mxu0 0.0
    %2150 = vmatpush1.msra.mxu0 0.0
    %2151 = vmatprep.subr.mxu0 0.0
    %2152 = vmatpush1.msra.mxu0 0.0
    %2153 = vmatprep.subr.mxu0 0.0
    %2154 = vmatpush1.msra.mxu0 0.0
    %2155 = vmatprep.subr.mxu0 0.0
    %2156 = vmatpush1.msra.mxu0 0.0
    %2157 = vmatprep.subr.mxu0 0.0
    %2158 = vmatpush1.msra.mxu0 0.0
    %2159 = vmatprep.subr.mxu0 0.0
    %2160 = vmatpush1.msra.mxu0 0.0
    %2161 = vmatprep.subr.mxu0 0.0
    %2162 = vmatpush1.msra.mxu0 0.0
    %2163 = vmatprep.subr.mxu0 0.0
    %2164 = vmatpush1.msra.mxu0 0.0
    %2165 = vmatprep.subr.mxu0 0.0
    %2166 = vmatpush1.msra.mxu0 0.0
    %2167 = vmatprep.subr.mxu0 0.0
    %2168 = vmatpush1.msra.mxu0 0.0
    %2169 = vmatprep.subr.mxu0 0.0
    %2170 = vmatpush1.msra.mxu0 0.0
    %2171 = vmatprep.subr.mxu0 0.0
    %2172 = vmatpush1.msra.mxu0 0.0
    %2173 = vmatprep.subr.mxu0 0.0
    %2174 = vmatpush1.msra.mxu0 0.0
    %2175 = vmatprep.subr.mxu0 0.0
    %2176 = vmatpush1.msra.mxu0 0.0
    %2177 = vmatprep.subr.mxu0 0.0
    %2178 = vmatpush1.msra.mxu0 0.0
    %2179 = vmatprep.subr.mxu0 0.0
    %2180 = vmatpush1.msra.mxu0 0.0
    %2181 = vmatprep.subr.mxu0 0.0
    %2182 = vmatpush1.msra.mxu0 0.0
    %2183 = vmatprep.subr.mxu0 0.0
    %2184 = vmatpush1.msra.mxu0 0.0
    %2185 = vmatprep.subr.mxu0 0.0
    %2186 = vmatpush1.msra.mxu0 0.0
    %2187 = vmatprep.subr.mxu0 0.0
    %2188 = vmatpush1.msra.mxu0 0.0
    %2189 = vmatprep.subr.mxu0 0.0
    %2190 = vmatpush1.msra.mxu0 0.0
    %2191 = vmatprep.subr.mxu0 0.0
    %2192 = vmatpush1.msra.mxu0 0.0
    %2193 = vmatprep.subr.mxu0 0.0
    %2194 = vmatpush1.msra.mxu0 0.0
    %2195 = vmatprep.mubr.f32.mxu0 0.0
    %2196 = vmatmul.mubr.f32.gmra.mrb[0].mxu0 %v2129
    %v2197 = vpop.f32.mrb[0].mxu0
    %v2198 = vadd.f32 %v131, %v2197
    %v2199 = vpop.f32.mrb[0].mxu0
    %2200 = vdwg.mxu0
    %v2201 = vmax.f32 %v2198, 0.0
    %2202 = vmatprep.subr.mxu0 0.0
    %2203 = vmatpush1.msra.mxu0 %v106
    %2204 = vmatprep.subr.mxu0 0.0
    %2205 = vmatpush1.msra.mxu0 %v107
    %2206 = vmatprep.subr.mxu0 0.0
    %2207 = vmatpush1.msra.mxu0 %v108
    %2208 = vmatprep.subr.mxu0 0.0
    %2209 = vmatpush1.msra.mxu0 %v109
    %2210 = vmatprep.subr.mxu0 0.0
    %2211 = vmatpush1.msra.mxu0 0.0
    %2212 = vmatprep.subr.mxu0 0.0
    %2213 = vmatpush1.msra.mxu0 0.0
    %2214 = vmatprep.subr.mxu0 0.0
    %2215 = vmatpush1.msra.mxu0 0.0
    %2216 = vmatprep.subr.mxu0 0.0
    %2217 = vmatpush1.msra.mxu0 0.0
    %2218 = vmatprep.subr.mxu0 0.0
    %2219 = vmatpush1.msra.mxu0 0.0
    %2220 = vmatprep.subr.mxu0 0.0
    %2221 = vmatpush1.msra.mxu0 0.0
    %2222 = vmatprep.subr.mxu0 0.0
    %2223 = vmatpush1.msra.mxu0 0.0
    %2224 = vmatprep.subr.mxu0 0.0
    %2225 = vmatpush1.msra.mxu0 0.0
    %2226 = vmatprep.subr.mxu0 0.0
    %2227 = vmatpush1.msra.mxu0 0.0
    %2228 = vmatprep.subr.mxu0 0.0
    %2229 = vmatpush1.msra.mxu0 0.0
    %2230 = vmatprep.subr.mxu0 0.0
    %2231 = vmatpush1.msra.mxu0 0.0
    %2232 = vmatprep.subr.mxu0 0.0
    %2233 = vmatpush1.msra.mxu0 0.0
    %2234 = vmatprep.subr.mxu0 0.0
    %2235 = vmatpush1.msra.mxu0 0.0
    %2236 = vmatprep.subr.mxu0 0.0
    %2237 = vmatpush1.msra.mxu0 0.0
    %2238 = vmatprep.subr.mxu0 0.0
    %2239 = vmatpush1.msra.mxu0 0.0
    %2240 = vmatprep.subr.mxu0 0.0
    %2241 = vmatpush1.msra.mxu0 0.0
    %2242 = vmatprep.subr.mxu0 0.0
    %2243 = vmatpush1.msra.mxu0 0.0
    %2244 = vmatprep.subr.mxu0 0.0
    %2245 = vmatpush1.msra.mxu0 0.0
    %2246 = vmatprep.subr.mxu0 0.0
    %2247 = vmatpush1.msra.mxu0 0.0
    %2248 = vmatprep.subr.mxu0 0.0
    %2249 = vmatpush1.msra.mxu0 0.0
    %2250 = vmatprep.subr.mxu0 0.0
    %2251 = vmatpush1.msra.mxu0 0.0
    %2252 = vmatprep.subr.mxu0 0.0
    %2253 = vmatpush1.msra.mxu0 0.0
    %2254 = vmatprep.subr.mxu0 0.0
    %2255 = vmatpush1.msra.mxu0 0.0
    %2256 = vmatprep.subr.mxu0 0.0
    %2257 = vmatpush1.msra.mxu0 0.0
    %2258 = vmatprep.subr.mxu0 0.0
    %2259 = vmatpush1.msra.mxu0 0.0
    %2260 = vmatprep.subr.mxu0 0.0
    %2261 = vmatpush1.msra.mxu0 0.0
    %2262 = vmatprep.subr.mxu0 0.0
    %2263 = vmatpush1.msra.mxu0 0.0
    %2264 = vmatprep.subr.mxu0 0.0
    %2265 = vmatpush1.msra.mxu0 0.0
    %2266 = vmatprep.mubr.f32.mxu0 0.0
    %2267 = vmatmul.mubr.f32.gmra.mrb[0].mxu0 %v1991
    %v2268 = vpop.f32.mrb[0].mxu0
    %v2269 = vadd.f32 0.0, %v2268
    %v2270 = vpop.f32.mrb[0].mxu0
    %2271 = vdwg.mxu0
    %2272 = vmatprep.subr.mxu0 0.0
    %2273 = vmatpush1.msra.mxu0 %v58
    %2274 = vmatprep.subr.mxu0 0.0
    %2275 = vmatpush1.msra.mxu0 %v59
    %2276 = vmatprep.subr.mxu0 0.0
    %2277 = vmatpush1.msra.mxu0 %v60
    %2278 = vmatprep.subr.mxu0 0.0
    %2279 = vmatpush1.msra.mxu0 %v61
    %2280 = vmatprep.subr.mxu0 0.0
    %2281 = vmatpush1.msra.mxu0 %v62
    %2282 = vmatprep.subr.mxu0 0.0
    %2283 = vmatpush1.msra.mxu0 %v63
    %2284 = vmatprep.subr.mxu0 0.0
    %2285 = vmatpush1.msra.mxu0 %v64
    %2286 = vmatprep.subr.mxu0 0.0
    %2287 = vmatpush1.msra.mxu0 %v65
    %2288 = vmatprep.subr.mxu0 0.0
    %2289 = vmatpush1.msra.mxu0 %v66
    %2290 = vmatprep.subr.mxu0 0.0
    %2291 = vmatpush1.msra.mxu0 %v67
    %2292 = vmatprep.subr.mxu0 0.0
    %2293 = vmatpush1.msra.mxu0 %v68
    %2294 = vmatprep.subr.mxu0 0.0
    %2295 = vmatpush1.msra.mxu0 %v69
    %2296 = vmatprep.subr.mxu0 0.0
    %2297 = vmatpush1.msra.mxu0 %v70
    %2298 = vmatprep.subr.mxu0 0.0
    %2299 = vmatpush1.msra.mxu0 %v71
    %2300 = vmatprep.subr.mxu0 0.0
    %2301 = vmatpush1.msra.mxu0 %v72
    %2302 = vmatprep.subr.mxu0 0.0
    %2303 = vmatpush1.msra.mxu0 %v73
    %2304 = vmatprep.subr.mxu0 0.0
    %2305 = vmatpush1.msra.mxu0 0.0
    %2306 = vmatprep.subr.mxu0 0.0
    %2307 = vmatpush1.msra.mxu0 0.0
    %2308 = vmatprep.subr.mxu0 0.0
    %2309 = vmatpush1.msra.mxu0 0.0
    %2310 = vmatprep.subr.mxu0 0.0
    %2311 = vmatpush1.msra.mxu0 0.0
    %2312 = vmatprep.subr.mxu0 0.0
    %2313 = vmatpush1.msra.mxu0 0.0
    %2314 = vmatprep.subr.mxu0 0.0
    %2315 = vmatpush1.msra.mxu0 0.0
    %2316 = vmatprep.subr.mxu0 0.0
    %2317 = vmatpush1.msra.mxu0 0.0
    %2318 = vmatprep.subr.mxu0 0.0
    %2319 = vmatpush1.msra.mxu0 0.0
    %2320 = vmatprep.subr.mxu0 0.0
    %2321 = vmatpush1.msra.mxu0 0.0
    %2322 = vmatprep.subr.mxu0 0.0
    %2323 = vmatpush1.msra.mxu0 0.0
    %2324 = vmatprep.subr.mxu0 0.0
    %2325 = vmatpush1.msra.mxu0 0.0
    %2326 = vmatprep.subr.mxu0 0.0
    %2327 = vmatpush1.msra.mxu0 0.0
    %2328 = vmatprep.subr.mxu0 0.0
    %2329 = vmatpush1.msra.mxu0 0.0
    %2330 = vmatprep.subr.mxu0 0.0
    %2331 = vmatpush1.msra.mxu0 0.0
    %2332 = vmatprep.subr.mxu0 0.0
    %2333 = vmatpush1.msra.mxu0 0.0
    %2334 = vmatprep.subr.mxu0 0.0
    %2335 = vmatpush1.msra.mxu0 0.0
    %2336 = vmatprep.mubr.f32.mxu0 0.0
    %2337 = vmatmul.mubr.f32.gmra.mrb[0].mxu0 %v2201
    %v2338 = vpop.f32.mrb[0].mxu0
    %v2339 = vadd.f32 %v2269, %v2338
    %v2340 = vpop.f32.mrb[0].mxu0
    %2341 = vdwg.mxu0
    %v2342 = vadd.f32 %v2339, %v356
    %v2343 = vxor.u32 %v2342, 2147483648
    %v2344 = vmul.f32 %v2343, 1.442695
    %v2345 = vpow.pop %v2344
    %v2346 = vadd.f32 %v2345, 1.0
    %v2347 = vrcp.pop %v2346
    %v2348 = vmul.f32 1.0, %v2347
    %2349 = vmatprep.subr.mxu0 0.0
    %2350 = vmatpush1.msra.mxu0 %v110
    %2351 = vmatprep.subr.mxu0 0.0
    %2352 = vmatpush1.msra.mxu0 %v111
    %2353 = vmatprep.subr.mxu0 0.0
    %2354 = vmatpush1.msra.mxu0 %v112
    %2355 = vmatprep.subr.mxu0 0.0
    %2356 = vmatpush1.msra.mxu0 %v113
    %2357 = vmatprep.subr.mxu0 0.0
    %2358 = vmatpush1.msra.mxu0 0.0
    %2359 = vmatprep.subr.mxu0 0.0
    %2360 = vmatpush1.msra.mxu0 0.0
    %2361 = vmatprep.subr.mxu0 0.0
    %2362 = vmatpush1.msra.mxu0 0.0
    %2363 = vmatprep.subr.mxu0 0.0
    %2364 = vmatpush1.msra.mxu0 0.0
    %2365 = vmatprep.subr.mxu0 0.0
    %2366 = vmatpush1.msra.mxu0 0.0
    %2367 = vmatprep.subr.mxu0 0.0
    %2368 = vmatpush1.msra.mxu0 0.0
    %2369 = vmatprep.subr.mxu0 0.0
    %2370 = vmatpush1.msra.mxu0 0.0
    %2371 = vmatprep.subr.mxu0 0.0
    %2372 = vmatpush1.msra.mxu0 0.0
    %2373 = vmatprep.subr.mxu0 0.0
    %2374 = vmatpush1.msra.mxu0 0.0
    %2375 = vmatprep.subr.mxu0 0.0
    %2376 = vmatpush1.msra.mxu0 0.0
    %2377 = vmatprep.subr.mxu0 0.0
    %2378 = vmatpush1.msra.mxu0 0.0
    %2379 = vmatprep.subr.mxu0 0.0
    %2380 = vmatpush1.msra.mxu0 0.0
    %2381 = vmatprep.subr.mxu0 0.0
    %2382 = vmatpush1.msra.mxu0 0.0
    %2383 = vmatprep.subr.mxu0 0.0
    %2384 = vmatpush1.msra.mxu0 0.0
    %2385 = vmatprep.subr.mxu0 0.0
    %2386 = vmatpush1.msra.mxu0 0.0
    %2387 = vmatprep.subr.mxu0 0.0
    %2388 = vmatpush1.msra.mxu0 0.0
    %2389 = vmatprep.subr.mxu0 0.0
    %2390 = vmatpush1.msra.mxu0 0.0
    %2391 = vmatprep.subr.mxu0 0.0
    %2392 = vmatpush1.msra.mxu0 0.0
    %2393 = vmatprep.subr.mxu0 0.0
    %2394 = vmatpush1.msra.mxu0 0.0
    %2395 = vmatprep.subr.mxu0 0.0
    %2396 = vmatpush1.msra.mxu0 0.0
    %2397 = vmatprep.subr.mxu0 0.0
    %2398 = vmatpush1.msra.mxu0 0.0
    %2399 = vmatprep.subr.mxu0 0.0
    %2400 = vmatpush1.msra.mxu0 0.0
    %2401 = vmatprep.subr.mxu0 0.0
    %2402 = vmatpush1.msra.mxu0 0.0
    %2403 = vmatprep.subr.mxu0 0.0
    %2404 = vmatpush1.msra.mxu0 0.0
    %2405 = vmatprep.subr.mxu0 0.0
    %2406 = vmatpush1.msra.mxu0 0.0
    %2407 = vmatprep.subr.mxu0 0.0
    %2408 = vmatpush1.msra.mxu0 0.0
    %2409 = vmatprep.subr.mxu0 0.0
    %2410 = vmatpush1.msra.mxu0 0.0
    %2411 = vmatprep.subr.mxu0 0.0
    %2412 = vmatpush1.msra.mxu0 0.0
    %2413 = vmatprep.mubr.f32.mxu0 0.0
    %2414 = vmatmul.mubr.f32.gmra.mrb[0].mxu0 %v1991
    %v2415 = vpop.f32.mrb[0].mxu0
    %v2416 = vadd.f32 0.0, %v2415
    %v2417 = vpop.f32.mrb[0].mxu0
    %2418 = vdwg.mxu0
    %2419 = vmatprep.subr.mxu0 0.0
    %2420 = vmatpush1.msra.mxu0 %v74
    %2421 = vmatprep.subr.mxu0 0.0
    %2422 = vmatpush1.msra.mxu0 %v75
    %2423 = vmatprep.subr.mxu0 0.0
    %2424 = vmatpush1.msra.mxu0 %v76
    %2425 = vmatprep.subr.mxu0 0.0
    %2426 = vmatpush1.msra.mxu0 %v77
    %2427 = vmatprep.subr.mxu0 0.0
    %2428 = vmatpush1.msra.mxu0 %v78
    %2429 = vmatprep.subr.mxu0 0.0
    %2430 = vmatpush1.msra.mxu0 %v79
    %2431 = vmatprep.subr.mxu0 0.0
    %2432 = vmatpush1.msra.mxu0 %v80
    %2433 = vmatprep.subr.mxu0 0.0
    %2434 = vmatpush1.msra.mxu0 %v81
    %2435 = vmatprep.subr.mxu0 0.0
    %2436 = vmatpush1.msra.mxu0 %v82
    %2437 = vmatprep.subr.mxu0 0.0
    %2438 = vmatpush1.msra.mxu0 %v83
    %2439 = vmatprep.subr.mxu0 0.0
    %2440 = vmatpush1.msra.mxu0 %v84
    %2441 = vmatprep.subr.mxu0 0.0
    %2442 = vmatpush1.msra.mxu0 %v85
    %2443 = vmatprep.subr.mxu0 0.0
    %2444 = vmatpush1.msra.mxu0 %v86
    %2445 = vmatprep.subr.mxu0 0.0
    %2446 = vmatpush1.msra.mxu0 %v87
    %2447 = vmatprep.subr.mxu0 0.0
    %2448 = vmatpush1.msra.mxu0 %v88
    %2449 = vmatprep.subr.mxu0 0.0
    %2450 = vmatpush1.msra.mxu0 %v89
    %2451 = vmatprep.subr.mxu0 0.0
    %2452 = vmatpush1.msra.mxu0 0.0
    %2453 = vmatprep.subr.mxu0 0.0
    %2454 = vmatpush1.msra.mxu0 0.0
    %2455 = vmatprep.subr.mxu0 0.0
    %2456 = vmatpush1.msra.mxu0 0.0
    %2457 = vmatprep.subr.mxu0 0.0
    %2458 = vmatpush1.msra.mxu0 0.0
    %2459 = vmatprep.subr.mxu0 0.0
    %2460 = vmatpush1.msra.mxu0 0.0
    %2461 = vmatprep.subr.mxu0 0.0
    %2462 = vmatpush1.msra.mxu0 0.0
    %2463 = vmatprep.subr.mxu0 0.0
    %2464 = vmatpush1.msra.mxu0 0.0
    %2465 = vmatprep.subr.mxu0 0.0
    %2466 = vmatpush1.msra.mxu0 0.0
    %2467 = vmatprep.subr.mxu0 0.0
    %2468 = vmatpush1.msra.mxu0 0.0
    %2469 = vmatprep.subr.mxu0 0.0
    %2470 = vmatpush1.msra.mxu0 0.0
    %2471 = vmatprep.subr.mxu0 0.0
    %2472 = vmatpush1.msra.mxu0 0.0
    %2473 = vmatprep.subr.mxu0 0.0
    %2474 = vmatpush1.msra.mxu0 0.0
    %2475 = vmatprep.subr.mxu0 0.0
    %2476 = vmatpush1.msra.mxu0 0.0
    %2477 = vmatprep.subr.mxu0 0.0
    %2478 = vmatpush1.msra.mxu0 0.0
    %2479 = vmatprep.subr.mxu0 0.0
    %2480 = vmatpush1.msra.mxu0 0.0
    %2481 = vmatprep.subr.mxu0 0.0
    %2482 = vmatpush1.msra.mxu0 0.0
    %2483 = vmatprep.mubr.f32.mxu0 0.0
    %2484 = vmatmul.mubr.f32.gmra.mrb[0].mxu0 %v2201
    %v2485 = vpop.f32.mrb[0].mxu0
    %v2486 = vadd.f32 %v2416, %v2485
    %v2487 = vpop.f32.mrb[0].mxu0
    %2488 = vdwg.mxu0
    %v2489 = vadd.f32 %v2486, %v509
    %v2490 = vxor.u32 %v2489, 2147483648
    %v2491 = vmul.f32 %v2490, 1.442695
    %v2492 = vpow.pop %v2491
    %v2493 = vadd.f32 %v2492, 1.0
    %v2494 = vrcp.pop %v2493
    %v2495 = vmul.f32 1.0, %v2494
    %2496 = vmatprep.subr.mxu0 0.0
    %2497 = vmatpush1.msra.mxu0 %v90
    %2498 = vmatprep.subr.mxu0 0.0
    %2499 = vmatpush1.msra.mxu0 %v91
    %2500 = vmatprep.subr.mxu0 0.0
    %2501 = vmatpush1.msra.mxu0 %v92
    %2502 = vmatprep.subr.mxu0 0.0
    %2503 = vmatpush1.msra.mxu0 %v93
    %2504 = vmatprep.subr.mxu0 0.0
    %2505 = vmatpush1.msra.mxu0 %v94
    %2506 = vmatprep.subr.mxu0 0.0
    %2507 = vmatpush1.msra.mxu0 %v95
    %2508 = vmatprep.subr.mxu0 0.0
    %2509 = vmatpush1.msra.mxu0 %v96
    %2510 = vmatprep.subr.mxu0 0.0
    %2511 = vmatpush1.msra.mxu0 %v97
    %2512 = vmatprep.subr.mxu0 0.0
    %2513 = vmatpush1.msra.mxu0 %v98
    %2514 = vmatprep.subr.mxu0 0.0
    %2515 = vmatpush1.msra.mxu0 %v99
    %2516 = vmatprep.subr.mxu0 0.0
    %2517 = vmatpush1.msra.mxu0 %v100
    %2518 = vmatprep.subr.mxu0 0.0
    %2519 = vmatpush1.msra.mxu0 %v101
    %2520 = vmatprep.subr.mxu0 0.0
    %2521 = vmatpush1.msra.mxu0 %v102
    %2522 = vmatprep.subr.mxu0 0.0
    %2523 = vmatpush1.msra.mxu0 %v103
    %2524 = vmatprep.subr.mxu0 0.0
    %2525 = vmatpush1.msra.mxu0 %v104
    %2526 = vmatprep.subr.mxu0 0.0
    %2527 = vmatpush1.msra.mxu0 %v105
    %2528 = vmatprep.subr.mxu0 0.0
    %2529 = vmatpush1.msra.mxu0 0.0
    %2530 = vmatprep.subr.mxu0 0.0
    %2531 = vmatpush1.msra.mxu0 0.0
    %2532 = vmatprep.subr.mxu0 0.0
    %2533 = vmatpush1.msra.mxu0 0.0
    %2534 = vmatprep.subr.mxu0 0.0
    %2535 = vmatpush1.msra.mxu0 0.0
    %2536 = vmatprep.subr.mxu0 0.0
    %2537 = vmatpush1.msra.mxu0 0.0
    %2538 = vmatprep.subr.mxu0 0.0
    %2539 = vmatpush1.msra.mxu0 0.0
    %2540 = vmatprep.subr.mxu0 0.0
    %2541 = vmatpush1.msra.mxu0 0.0
    %2542 = vmatprep.subr.mxu0 0.0
    %2543 = vmatpush1.msra.mxu0 0.0
    %2544 = vmatprep.subr.mxu0 0.0
    %2545 = vmatpush1.msra.mxu0 0.0
    %2546 = vmatprep.subr.mxu0 0.0
    %2547 = vmatpush1.msra.mxu0 0.0
    %2548 = vmatprep.subr.mxu0 0.0
    %2549 = vmatpush1.msra.mxu0 0.0
    %2550 = vmatprep.subr.mxu0 0.0
    %2551 = vmatpush1.msra.mxu0 0.0
    %2552 = vmatprep.subr.mxu0 0.0
    %2553 = vmatpush1.msra.mxu0 0.0
    %2554 = vmatprep.subr.mxu0 0.0
    %2555 = vmatpush1.msra.mxu0 0.0
    %2556 = vmatprep.subr.mxu0 0.0
    %2557 = vmatpush1.msra.mxu0 0.0
    %2558 = vmatprep.subr.mxu0 0.0
    %2559 = vmatpush1.msra.mxu0 0.0
    %2560 = vmatprep.mubr.f32.mxu0 0.0
    %2561 = vmatmul.mubr.f32.gmra.mrb[0].mxu0 %v2201
    %v2562 = vpop.f32.mrb[0].mxu0
    %v2563 = vadd.f32 %v522, %v2562
    %v2564 = vpop.f32.mrb[0].mxu0
    %2565 = vdwg.mxu0
    %2566 = vmatprep.subr.mxu0 0.0
    %2567 = vmatpush1.msra.mxu0 %v114
    %2568 = vmatprep.subr.mxu0 0.0
    %2569 = vmatpush1.msra.mxu0 %v115
    %2570 = vmatprep.subr.mxu0 0.0
    %2571 = vmatpush1.msra.mxu0 %v116
    %2572 = vmatprep.subr.mxu0 0.0
    %2573 = vmatpush1.msra.mxu0 %v117
    %2574 = vmatprep.subr.mxu0 0.0
    %2575 = vmatpush1.msra.mxu0 0.0
    %2576 = vmatprep.subr.mxu0 0.0
    %2577 = vmatpush1.msra.mxu0 0.0
    %2578 = vmatprep.subr.mxu0 0.0
    %2579 = vmatpush1.msra.mxu0 0.0
    %2580 = vmatprep.subr.mxu0 0.0
    %2581 = vmatpush1.msra.mxu0 0.0
    %2582 = vmatprep.subr.mxu0 0.0
    %2583 = vmatpush1.msra.mxu0 0.0
    %2584 = vmatprep.subr.mxu0 0.0
    %2585 = vmatpush1.msra.mxu0 0.0
    %2586 = vmatprep.subr.mxu0 0.0
    %2587 = vmatpush1.msra.mxu0 0.0
    %2588 = vmatprep.subr.mxu0 0.0
    %2589 = vmatpush1.msra.mxu0 0.0
    %2590 = vmatprep.subr.mxu0 0.0
    %2591 = vmatpush1.msra.mxu0 0.0
    %2592 = vmatprep.subr.mxu0 0.0
    %2593 = vmatpush1.msra.mxu0 0.0
    %2594 = vmatprep.subr.mxu0 0.0
    %2595 = vmatpush1.msra.mxu0 0.0
    %2596 = vmatprep.subr.mxu0 0.0
    %2597 = vmatpush1.msra.mxu0 0.0
    %2598 = vmatprep.subr.mxu0 0.0
    %2599 = vmatpush1.msra.mxu0 0.0
    %2600 = vmatprep.subr.mxu0 0.0
    %2601 = vmatpush1.msra.mxu0 0.0
    %2602 = vmatprep.subr.mxu0 0.0
    %2603 = vmatpush1.msra.mxu0 0.0
    %2604 = vmatprep.subr.mxu0 0.0
    %2605 = vmatpush1.msra.mxu0 0.0
    %2606 = vmatprep.subr.mxu0 0.0
    %2607 = vmatpush1.msra.mxu0 0.0
    %2608 = vmatprep.subr.mxu0 0.0
    %2609 = vmatpush1.msra.mxu0 0.0
    %2610 = vmatprep.subr.mxu0 0.0
    %2611 = vmatpush1.msra.mxu0 0.0
    %2612 = vmatprep.subr.mxu0 0.0
    %2613 = vmatpush1.msra.mxu0 0.0
    %2614 = vmatprep.subr.mxu0 0.0
    %2615 = vmatpush1.msra.mxu0 0.0
    %2616 = vmatprep.subr.mxu0 0.0
    %2617 = vmatpush1.msra.mxu0 0.0
    %2618 = vmatprep.subr.mxu0 0.0
    %2619 = vmatpush1.msra.mxu0 0.0
    %2620 = vmatprep.subr.mxu0 0.0
    %2621 = vmatpush1.msra.mxu0 0.0
    %2622 = vmatprep.subr.mxu0 0.0
    %2623 = vmatpush1.msra.mxu0 0.0
    %2624 = vmatprep.subr.mxu0 0.0
    %2625 = vmatpush1.msra.mxu0 0.0
    %2626 = vmatprep.subr.mxu0 0.0
    %2627 = vmatpush1.msra.mxu0 0.0
    %2628 = vmatprep.subr.mxu0 0.0
    %2629 = vmatpush1.msra.mxu0 0.0
    %2630 = vmatprep.mubr.f32.mxu0 0.0
    %2631 = vmatmul.mubr.f32.gmra.mrb[0].mxu0 %v1991
    %v2632 = vpop.f32.mrb[0].mxu0
    %v2633 = vadd.f32 %v598, %v2632
    %v2634 = vpop.f32.mrb[0].mxu0
    %2635 = vdwg.mxu0
    %v2636 = vmul.f32 %v2348, %v2633
    %v2637 = vadd.f32 %v2563, %v2636
    %v2638 = vtanh.pop %v2637
    %v2639 = vsub.f32 1.0, %v2495
    %v2640 = vmul.f32 %v2639, %v2638
    %v2641 = vmul.f32 %v2495, %v1989
    %v2642 = vadd.f32 %v2640, %v2641
    %v2644 = vsel %vm208, %v2642, 0
    %2646 = vmatprep.subr.mxu0 0.0
    %2647 = vmatpush1.msra.mxu0 %v122
    %2648 = vmatprep.subr.mxu0 0.0
    %2649 = vmatpush1.msra.mxu0 %v123
    %2650 = vmatprep.subr.mxu0 0.0
    %2651 = vmatpush1.msra.mxu0 %v124
    %2652 = vmatprep.subr.mxu0 0.0
    %2653 = vmatpush1.msra.mxu0 %v125
    %2654 = vmatprep.subr.mxu0 0.0
    %2655 = vmatpush1.msra.mxu0 0.0
    %2656 = vmatprep.subr.mxu0 0.0
    %2657 = vmatpush1.msra.mxu0 0.0
    %2658 = vmatprep.subr.mxu0 0.0
    %2659 = vmatpush1.msra.mxu0 0.0
    %2660 = vmatprep.subr.mxu0 0.0
    %2661 = vmatpush1.msra.mxu0 0.0
    %2662 = vmatprep.subr.mxu0 0.0
    %2663 = vmatpush1.msra.mxu0 0.0
    %2664 = vmatprep.subr.mxu0 0.0
    %2665 = vmatpush1.msra.mxu0 0.0
    %2666 = vmatprep.subr.mxu0 0.0
    %2667 = vmatpush1.msra.mxu0 0.0
    %2668 = vmatprep.subr.mxu0 0.0
    %2669 = vmatpush1.msra.mxu0 0.0
    %2670 = vmatprep.subr.mxu0 0.0
    %2671 = vmatpush1.msra.mxu0 0.0
    %2672 = vmatprep.subr.mxu0 0.0
    %2673 = vmatpush1.msra.mxu0 0.0
    %2674 = vmatprep.subr.mxu0 0.0
    %2675 = vmatpush1.msra.mxu0 0.0
    %2676 = vmatprep.subr.mxu0 0.0
    %2677 = vmatpush1.msra.mxu0 0.0
    %2678 = vmatprep.subr.mxu0 0.0
    %2679 = vmatpush1.msra.mxu0 0.0
    %2680 = vmatprep.subr.mxu0 0.0
    %2681 = vmatpush1.msra.mxu0 0.0
    %2682 = vmatprep.subr.mxu0 0.0
    %2683 = vmatpush1.msra.mxu0 0.0
    %2684 = vmatprep.subr.mxu0 0.0
    %2685 = vmatpush1.msra.mxu0 0.0
    %2686 = vmatprep.subr.mxu0 0.0
    %2687 = vmatpush1.msra.mxu0 0.0
    %2688 = vmatprep.subr.mxu0 0.0
    %2689 = vmatpush1.msra.mxu0 0.0
    %2690 = vmatprep.subr.mxu0 0.0
    %2691 = vmatpush1.msra.mxu0 0.0
    %2692 = vmatprep.subr.mxu0 0.0
    %2693 = vmatpush1.msra.mxu0 0.0
    %2694 = vmatprep.subr.mxu0 0.0
    %2695 = vmatpush1.msra.mxu0 0.0
    %2696 = vmatprep.subr.mxu0 0.0
    %2697 = vmatpush1.msra.mxu0 0.0
    %2698 = vmatprep.subr.mxu0 0.0
    %2699 = vmatpush1.msra.mxu0 0.0
    %2700 = vmatprep.subr.mxu0 0.0
    %2701 = vmatpush1.msra.mxu0 0.0
    %2702 = vmatprep.subr.mxu0 0.0
    %2703 = vmatpush1.msra.mxu0 0.0
    %2704 = vmatprep.subr.mxu0 0.0
    %2705 = vmatpush1.msra.mxu0 0.0
    %2706 = vmatprep.subr.mxu0 0.0
    %2707 = vmatpush1.msra.mxu0 0.0
    %2708 = vmatprep.subr.mxu0 0.0
    %2709 = vmatpush1.msra.mxu0 0.0
    %2710 = vmatprep.mubr.f32.mxu0 0.0
    %2711 = vmatmul.mubr.f32.gmra.mrb[0].mxu0 %v2644
    %v2712 = vpop.f32.mrb[0].mxu0
    %v2713 = vadd.f32 %v681, %v2712
    %v2714 = vpop.f32.mrb[0].mxu0
    %2715 = vdwg.mxu0
    %v2717 = vcombine.high %v2713, %v2713
    %v2719 = vunpack.c.l.s4 1966171168
    %v2720 = vunpack.c.0.s8 %v2719
    %v2721 = vlaneseq
    %v2722 = vshrl.u32 %v2721, 7
    %v2723 = vsub.s32 %v2720, %v2722
    %v2724 = vrot.slane %v2713, %v2723
    %v2726 = vunpack.c.l.s4 1966171168
    %v2727 = vunpack.c.0.s8 %v2726
    %v2728 = vlaneseq
    %v2729 = vshrl.u32 %v2728, 7
    %v2730 = vsub.s32 %v2727, %v2729
    %v2731 = vrot.slane %v2717, %v2730
    %v2732 = vcombine.high %v2724, %v2724
    %v2733 = vcombine.high %v2731, %v2731
    %v2735 = vunpack.c.l.s4 1966171168
    %v2736 = vunpack.c.0.s8 %v2735
    %v2737 = vlaneseq
    %v2738 = vshrl.u32 %v2737, 7
    %v2739 = vsub.s32 %v2736, %v2738
    %v2740 = vrot.slane %v2724, %v2739
    %v2742 = vunpack.c.l.s4 1966171168
    %v2743 = vunpack.c.0.s8 %v2742
    %v2744 = vlaneseq
    %v2745 = vshrl.u32 %v2744, 7
    %v2746 = vsub.s32 %v2743, %v2745
    %v2747 = vrot.slane %v2731, %v2746
    %v2749 = vunpack.c.l.s4 1966171168
    %v2750 = vunpack.c.0.s8 %v2749
    %v2751 = vlaneseq
    %v2752 = vshrl.u32 %v2751, 7
    %v2753 = vsub.s32 %v2750, %v2752
    %v2754 = vrot.slane %v2732, %v2753
    %v2756 = vunpack.c.l.s4 1966171168
    %v2757 = vunpack.c.0.s8 %v2756
    %v2758 = vlaneseq
    %v2759 = vshrl.u32 %v2758, 7
    %v2760 = vsub.s32 %v2757, %v2759
    %v2761 = vrot.slane %v2733, %v2760
    %v2762 = vcombine.high %v2740, %v2740
    %v2763 = vcombine.high %v2747, %v2747
    %v2764 = vcombine.high %v2754, %v2754
    %v2765 = vcombine.high %v2761, %v2761
    %2774 = vst.msk [vmem:[#allocation2 + $0x3] sm:$0x1] %vm814, %v2740
    %2775 = vst.msk [vmem:[#allocation2 + $0x7] sm:$0x1] %vm814, %v2754
    %2776 = vst.msk [vmem:[#allocation2 + $0xb] sm:$0x1] %vm814, %v2762
    %2777 = vst.msk [vmem:[#allocation2 + $0xf] sm:$0x1] %vm814, %v2764
    %2778 = vst.msk [vmem:[#allocation2 + $0x13] sm:$0x1] %vm814, %v2747
    %2779 = vst.msk [vmem:[#allocation2 + $0x17] sm:$0x1] %vm814, %v2761
    %2780 = vst.msk [vmem:[#allocation2 + $0x1b] sm:$0x1] %vm814, %v2763
    %2781 = vst.msk [vmem:[#allocation2 + $0x1f] sm:$0x1] %vm814, %v2765
    // Predicated region
    $region66: #{tpu_custom_call.1} parent=1 // pred_check
      _
    $region67: #{tpu_custom_call.1} parent=1 // pred_check_branch
      %2783 = sbr.rel (0) target = $region69
    $region68: #{tpu_custom_call.1} parent=1 // pred_region
      %s2785 = ssub.s32 512, 512
      %2786 = vsyncadd [#allocation3], %s2785
      %s2787 = sshll.u32 [#allocation2], 4
      %s2788 = int_to_ptr.vmem [resolvable:$true] %s2787
      %2793 = dma.vmem_to_hbm [thread:$0]  %s2788, 512, %s16, [#allocation3], 64, 64, 4
    $region69: #{tpu_custom_call.1} parent=1 // pred_fallthru
      _
    // Predicated region
    $region70: #{tpu_custom_call.1} parent=1 // pred_check
      _
    $region71: #{tpu_custom_call.1} parent=1 // pred_check_branch
      %2795 = sbr.rel (0) target = $region73
    $region72: #{tpu_custom_call.1} parent=1 // pred_region
      %2796 = dma.done [#allocation3], 512
    $region73: #{tpu_custom_call.1} parent=1 // pred_fallthru
      _
    %2797 = vsyncpa [#allocation3], 1

</llo_original>
